<compile_context>
chip_gen: v5e
topology: v5e:2x2
jax: 0.10.0
libtpu: 0.0.40
codegen_flags: <defaults>
</compile_context>

<pallas_src>
import functools

import jax
import jax.numpy as jnp
from jax.experimental import pallas as pl
from jax.experimental.pallas import tpu as pltpu

EPS = 1e-6                     # T5 layer_norm_epsilon
GELU_C = 0.7978845608028654    # sqrt(2/pi), "gelu_new" tanh approximation


# ----------------------------------------------------------------------------
# Fused T5Block kernel (bt global-batch elements per grid step)
# ----------------------------------------------------------------------------
def _t5_global_block_kernel(
        g_ref, enc_ref, mask_ref,
        ln_sa_ref, sa_q_ref, sa_k_ref, sa_v_ref, sa_o_ref,
        ln_ca_ref, ca_q_ref, ca_k_ref, ca_v_ref, ca_o_ref,
        ln_ff_ref, ff_wi_ref, ff_wo_ref,
        out_ref, *, num_heads, d_ff, eps):
    bt, gq, d = g_ref.shape
    sk = enc_ref.shape[1]

    g = g_ref[...].reshape(bt * gq, d)        # f32 residual stream (never cast)
    enc = enc_ref[...]                        # (bt, sk, d) bf16 K/V source
    bias3 = mask_ref[...]                     # (bt, 1, sk) raw 0/1 additive mask

    def rms(x, w_ref):
        var = jnp.mean(x * x, axis=-1, keepdims=True)
        return x * jax.lax.rsqrt(var + eps) * w_ref[...]

    def attention(xq, kv_b, bias, wq_ref, wk_ref, wv_ref, wo_ref):
        """Multi-head attention on VMEM-resident activations.

        T5/Pix2Struct attention: no 1/sqrt(dk) scaling.  Big-M projections on
        the flattened (bt*seq, D) activations, per-(batch, head) softmax, and
        a single fused full-depth output projection.
        """
        sq = xq.shape[0] // bt
        skv = kv_b.shape[1]
        inner = wq_ref.shape[1]
        dk = inner // num_heads

        kv_flat = kv_b.reshape(bt * skv, d)                       # bf16
        q = jnp.dot(xq.astype(jnp.bfloat16), wq_ref[...],
                    preferred_element_type=jnp.float32)
        k = jnp.dot(kv_flat, wk_ref[...], preferred_element_type=jnp.float32)
        v = jnp.dot(kv_flat, wv_ref[...], preferred_element_type=jnp.float32)
        # head-invariant casts hoisted out of the loops
        q3 = q.astype(jnp.bfloat16).reshape(bt, sq, inner)
        k3 = k.astype(jnp.bfloat16).reshape(bt, skv, inner)
        v3 = v.astype(jnp.bfloat16).reshape(bt, skv, inner)

        ctx_rows = []
        for b in range(bt):                       # static, tiny
            qb, kb, vb = q3[b], k3[b], v3[b]
            b_bias = None
            if bias is not None:                  # broadcast once per batch elem
                b_bias = jnp.broadcast_to(bias[b], (sq, skv))
            heads = []
            for h in range(num_heads):            # static, tiny
                lo = h * dk
                s = jax.lax.dot_general(
                    qb[:, lo:lo + dk], kb[:, lo:lo + dk],
                    (((1,), (1,)), ((), ())),
                    preferred_element_type=jnp.float32)           # (sq, skv)
                if b_bias is not None:
                    s = s + b_bias                # raw 0/1 mask, as in PyTorch
                s = s - jnp.max(s, axis=-1, keepdims=True)
                p = jnp.exp(s)
                p = p * pl.reciprocal(jnp.sum(p, axis=-1, keepdims=True),
                                      approx=True)
                heads.append(jnp.dot(p.astype(jnp.bfloat16), vb[:, lo:lo + dk],
                                     preferred_element_type=jnp.float32))
            ctx_rows.append(jnp.concatenate(heads, axis=-1))      # (sq, inner)
        ctx = jnp.concatenate(ctx_rows, axis=0).astype(jnp.bfloat16)
        # ONE full-depth output projection (bt*sq, inner) @ (inner, d)
        return jnp.dot(ctx, wo_ref[...], preferred_element_type=jnp.float32)

    # --- T5LayerSelfAttention (no mask, no relative attention bias) ---
    x = rms(g, ln_sa_ref)
    g = g + attention(x, x.astype(jnp.bfloat16).reshape(bt, gq, d), None,
                      sa_q_ref, sa_k_ref, sa_v_ref, sa_o_ref)

    # --- T5LayerCrossAttention over the gathered global-token embeddings ---
    # TODO(synk): the PyTorch module hands the RAW 0/1 mask to T5Block (no HF
    # invert_attention_mask / -inf extension); we replicate that raw additive
    # behavior, broadcast over heads and query positions.
    x = rms(g, ln_ca_ref)
    g = g + attention(x, enc, bias3,
                      ca_q_ref, ca_k_ref, ca_v_ref, ca_o_ref)

    # --- T5LayerFF: gated gelu_new, fused (D, 2F) input projection ---
    x = rms(g, ln_ff_ref)
    h01 = jnp.dot(x.astype(jnp.bfloat16), ff_wi_ref[...],
                  preferred_element_type=jnp.float32)             # (bt*gq, 2F)
    hg = h01[:, :d_ff]
    hl = h01[:, d_ff:]
    gate = 0.5 * hg * (1.0 + jnp.tanh(GELU_C * (hg + 0.044715 * hg * hg * hg)))
    ff = jnp.dot((gate * hl).astype(jnp.bfloat16), ff_wo_ref[...],
                 preferred_element_type=jnp.float32)
    out_ref[...] = (g + ff).reshape(bt, gq, d)


# ----------------------------------------------------------------------------
# Wrapper
# ----------------------------------------------------------------------------
def global_layer_pallas(params, hidden_states, global_hidden_states,
                        attention_mask, global_attention_mask=None,
                        *, num_global_tokens, num_heads, eps=EPS,
                        batch_tile=None):
    # global_attention_mask / head_mask are accepted but unused, as in PyTorch.
    del global_attention_mask
    B, GQ, D = global_hidden_states.shape
    ngt = num_global_tokens

    # Gather of the trailing global tokens (kept in the wrapper; small), in
    # bf16 since it only ever feeds bf16 MXU operands.
    enc = hidden_states[:, -ngt:, :].reshape(B, -1, D).astype(jnp.bfloat16)
    Sk = enc.shape[1]
    mask = attention_mask[:, -ngt:].reshape(B, 1, Sk).astype(jnp.float32)
    g = global_hidden_states.astype(jnp.float32)

    # Weights: bf16 once in the wrapper; ff_wi0/ff_wi1 fused into (D, 2F).
    def bf(w):
        return w.astype(jnp.bfloat16)
    sa_q, sa_k, sa_v, sa_o = (bf(params["sa_q"]), bf(params["sa_k"]),
                              bf(params["sa_v"]), bf(params["sa_o"]))
    ca_q, ca_k, ca_v, ca_o = (bf(params["ca_q"]), bf(params["ca_k"]),
                              bf(params["ca_v"]), bf(params["ca_o"]))
    ff_wi = jnp.concatenate([params["ff_wi0"], params["ff_wi1"]], axis=1).astype(jnp.bfloat16)
    ff_wo = bf(params["ff_wo"])
    ln_sa = params["ln_sa"].reshape(1, D).astype(jnp.float32)
    ln_ca = params["ln_ca"].reshape(1, D).astype(jnp.float32)
    ln_ff = params["ln_ff"].reshape(1, D).astype(jnp.float32)

    inner = sa_q.shape[1]
    F = params["ff_wi0"].shape[1]

    # Batch tile: fill MXU M-rows (bt*GQ -> ~128) but keep >=2 grid steps when
    # B > 1 so v7x's second TensorCore gets work.
    if batch_tile is None:
        bt = min(B, max(1, 128 // max(GQ, 1)))
        if B > 1 and bt >= B:
            bt = max(1, B // 2)
    else:
        bt = min(batch_tile, B)
    while B % bt:
        bt -= 1
    grid = (B // bt,)

    # Explicit scoped-VMEM budget: single-buffered weights + double-buffered
    # activation blocks + scratch headroom (defaults are 16/32 MiB only).
    weight_bytes = sum(int(w.size) * w.dtype.itemsize for w in
                       (sa_q, sa_k, sa_v, sa_o, ca_q, ca_k, ca_v, ca_o,
                        ff_wi, ff_wo, ln_sa, ln_ca, ln_ff))
    act_block_bytes = (bt * GQ * D * 4 * 2      # g in + out blocks (f32)
                       + bt * Sk * D * 2        # enc block (bf16)
                       + bt * Sk * 4)           # mask block (f32)
    vmem_limit = int(min(100 << 20,
                         2 * weight_bytes + 4 * act_block_bytes + (24 << 20)))

    act_spec = pl.BlockSpec((bt, GQ, D), lambda i: (i, 0, 0))
    enc_spec = pl.BlockSpec((bt, Sk, D), lambda i: (i, 0, 0))
    mask_spec = pl.BlockSpec((bt, 1, Sk), lambda i: (i, 0, 0))

    kernel = functools.partial(_t5_global_block_kernel,
                               num_heads=num_heads, d_ff=F, eps=eps)

    def build(single_buffer_weights):
        def w_spec(shape):
            # Constant block index -> weights stay VMEM-resident; request
            # single buffering (double-buffering a constant block wastes VMEM).
            if single_buffer_weights:
                return pl.BlockSpec(shape, lambda i: (0,) * len(shape),
                                    pipeline_mode=pl.Buffered(1))
            return pl.BlockSpec(shape, lambda i: (0,) * len(shape))

        return pl.pallas_call(
            kernel,
            out_shape=jax.ShapeDtypeStruct((B, GQ, D), jnp.float32),
            grid=grid,
            in_specs=[
                act_spec, enc_spec, mask_spec,
                w_spec((1, D)), w_spec((D, inner)), w_spec((D, inner)),
                w_spec((D, inner)), w_spec((inner, D)),
                w_spec((1, D)), w_spec((D, inner)), w_spec((D, inner)),
                w_spec((D, inner)), w_spec((inner, D)),
                w_spec((1, D)), w_spec((D, 2 * F)), w_spec((F, D)),
            ],
            out_specs=act_spec,
            compiler_params=pltpu.CompilerParams(
                dimension_semantics=("parallel",),
                vmem_limit_bytes=vmem_limit),
        )

    args = (g, enc, mask,
            ln_sa, sa_q, sa_k, sa_v, sa_o,
            ln_ca, ca_q, ca_k, ca_v, ca_o,
            ln_ff, ff_wi, ff_wo)
    try:
        new_global = build(True)(*args)
    except Exception:
        # pl.Buffered(1) is a VMEM-only optimization; fall back to the default
        # double-buffered weight specs if this JAX build rejects it.
        new_global = build(False)(*args)
    return hidden_states, new_global


# ----------------------------------------------------------------------------
# Pure-JAX reference (f32) for the correctness check
# ----------------------------------------------------------------------------
def global_layer_ref(params, hidden_states, global_hidden_states,
                     attention_mask, global_attention_mask=None,
                     *, num_global_tokens, num_heads, eps=EPS):
    del global_attention_mask
    B, GQ, D = global_hidden_states.shape
    ngt = num_global_tokens
    enc = hidden_states[:, -ngt:, :].reshape(B, -1, D)
    mask = attention_mask[:, -ngt:].reshape(B, -1).astype(jnp.float32)
    bias = mask[:, None, None, :]        # raw 0/1 added to logits, per head/query

    def rms(x, w):
        var = jnp.mean(x * x, axis=-1, keepdims=True)
        return x * jax.lax.rsqrt(var + eps) * w

    def mha(xq, xkv, b, wq, wk, wv, wo):
        Bq, Sq, _ = xq.shape
        Skk = xkv.shape[1]
        inner = wq.shape[1]
        dk = inner // num_heads
        q = jnp.einsum("bsd,de->bse", xq, wq).reshape(Bq, Sq, num_heads, dk)
        k = jnp.einsum("bsd,de->bse", xkv, wk).reshape(Bq, Skk, num_heads, dk)
        v = jnp.einsum("bsd,de->bse", xkv, wv).reshape(Bq, Skk, num_heads, dk)
        s = jnp.einsum("bqhd,bkhd->bhqk", q, k)
        if b is not None:
            s = s + b
        p = jax.nn.softmax(s, axis=-1)
        ctx = jnp.einsum("bhqk,bkhd->bqhd", p, v).reshape(Bq, Sq, inner)
        return jnp.einsum("bse,ed->bsd", ctx, wo)

    g = global_hidden_states
    x = rms(g, params["ln_sa"])
    g = g + mha(x, x, None, params["sa_q"], params["sa_k"], params["sa_v"], params["sa_o"])
    x = rms(g, params["ln_ca"])
    g = g + mha(x, enc, bias, params["ca_q"], params["ca_k"], params["ca_v"], params["ca_o"])
    x = rms(g, params["ln_ff"])
    hg = jnp.einsum("bsd,df->bsf", x, params["ff_wi0"])
    hl = jnp.einsum("bsd,df->bsf", x, params["ff_wi1"])
    gate = 0.5 * hg * (1.0 + jnp.tanh(GELU_C * (hg + 0.044715 * hg ** 3)))
    g = g + jnp.einsum("bsf,fd->bsd", gate * hl, params["ff_wo"])
    return hidden_states, g


# ----------------------------------------------------------------------------
# Deterministic synthetic parameters (nn.Linear weights stored as (in, out))
# ----------------------------------------------------------------------------
def _dense(key, shape, scale=0.02):
    return (scale * jax.random.normal(key, shape)).astype(jnp.float32)


def _norm(key, d):
    return (1.0 + 0.05 * jax.random.normal(key, (d,))).astype(jnp.float32)


def init_global_layer(key, D, inner, F):
    ks = jax.random.split(key, 14)
    return dict(
        ln_sa=_norm(ks[0], D),
        sa_q=_dense(ks[1], (D, inner)), sa_k=_dense(ks[2], (D, inner)),
        sa_v=_dense(ks[3], (D, inner)), sa_o=_dense(ks[4], (inner, D)),
        ln_ca=_norm(ks[5], D),
        ca_q=_dense(ks[6], (D, inner)), ca_k=_dense(ks[7], (D, inner)),
        ca_v=_dense(ks[8], (D, inner)), ca_o=_dense(ks[9], (inner, D)),
        ln_ff=_norm(ks[10], D),
        ff_wi0=_dense(ks[11], (D, F)), ff_wi1=_dense(ks[12], (D, F)),
        ff_wo=_dense(ks[13], (F, D)),
    )


# ----------------------------------------------------------------------------
if __name__ == "__main__":
    # Small synthetic config consistent with the module
    D = 32              # hidden_size
    NUM_HEADS = 4       # num_attention_heads
    D_KV = 8            # d_kv -> inner_dim = 32
    INNER = NUM_HEADS * D_KV
    F = 64              # d_ff
    NGT = 2             # num_global_tokens
    B = 2               # global batch (global_hidden_states batch)
    NB = 3              # blocks per image -> local batch = 6
    S = 16              # local sequence (14 patch tokens + 2 global tokens)
    GQ = 4              # global_hidden_states sequence length

    root = jax.random.PRNGKey(0)
    k_par, k1, k2 = jax.random.split(root, 3)

    params = init_global_layer(k_par, D, INNER, F)

    hidden_states = jax.random.normal(k1, (B * NB, S, D), dtype=jnp.float32)
    global_hidden_states = jax.random.normal(k2, (B, GQ, D), dtype=jnp.float32)
    attention_mask = jnp.ones((B * NB, S), dtype=jnp.float32)
    # exercise a non-trivial mask on one of the gathered global tokens
    attention_mask = attention_mask.at[1, -1].set(0.0)
    global_attention_mask = jnp.ones((B, GQ), dtype=jnp.float32)

    last_hidden, global_out = global_layer_pallas(
        params, hidden_states, global_hidden_states,
        attention_mask, global_attention_mask,
        num_global_tokens=NGT, num_heads=NUM_HEADS)
    jax.block_until_ready((last_hidden, global_out))

    ref_hidden, ref_global = global_layer_ref(
        params, hidden_states, global_hidden_states,
        attention_mask, global_attention_mask,
        num_global_tokens=NGT, num_heads=NUM_HEADS)
    jax.block_until_ready((ref_hidden, ref_global))

    assert last_hidden.shape == (B * NB, S, D)
    assert global_out.shape == (B, GQ, D)
    assert bool(jnp.all(jnp.isfinite(global_out)))
    # hidden_states is passed through unchanged, exactly as in PyTorch
    assert bool(jnp.array_equal(last_hidden, hidden_states))
    # bf16 MXU operands with f32 accumulation -> slightly looser tolerance
    assert jnp.allclose(global_out, ref_global, atol=2e-2, rtol=2e-2), (
        float(jnp.max(jnp.abs(global_out - ref_global))))

    print("KERNEL_OK")
</pallas_src>

<mosaic_0001>
module attributes {stable_mosaic.version = 11 : i64} {
  func.func @_t5_global_block_kernel(%arg0: i32, %arg1: memref<1x4x32xf32, #tpu.memory_space<vmem>>, %arg2: memref<1x6x32xbf16, #tpu.memory_space<vmem>>, %arg3: memref<1x1x6xf32, #tpu.memory_space<vmem>>, %arg4: memref<1x32xf32, #tpu.memory_space<vmem>>, %arg5: memref<32x32xbf16, #tpu.memory_space<vmem>>, %arg6: memref<32x32xbf16, #tpu.memory_space<vmem>>, %arg7: memref<32x32xbf16, #tpu.memory_space<vmem>>, %arg8: memref<32x32xbf16, #tpu.memory_space<vmem>>, %arg9: memref<1x32xf32, #tpu.memory_space<vmem>>, %arg10: memref<32x32xbf16, #tpu.memory_space<vmem>>, %arg11: memref<32x32xbf16, #tpu.memory_space<vmem>>, %arg12: memref<32x32xbf16, #tpu.memory_space<vmem>>, %arg13: memref<32x32xbf16, #tpu.memory_space<vmem>>, %arg14: memref<1x32xf32, #tpu.memory_space<vmem>>, %arg15: memref<32x128xbf16, #tpu.memory_space<vmem>>, %arg16: memref<64x32xbf16, #tpu.memory_space<vmem>>, %arg17: memref<1x4x32xf32, #tpu.memory_space<vmem>>) attributes {dimension_semantics = [#tpu.dimension_semantics<parallel>], iteration_bounds = array<i64: 2>, scalar_prefetch = 0 : i64, scratch_operands = 0 : i64, tpu.core_type = #tpu.core_type<tc>, window_params = [{transform_indices = @transform_0, window_bounds = array<i64: 1, 4, 32>}, {transform_indices = @transform_1, window_bounds = array<i64: 1, 6, 32>}, {transform_indices = @transform_2, window_bounds = array<i64: 1, 1, 6>}, {pipeline_mode = #tpu.pipeline_mode<synchronous>, transform_indices = @transform_3, window_bounds = array<i64: 1, 32>}, {pipeline_mode = #tpu.pipeline_mode<synchronous>, transform_indices = @transform_4, window_bounds = array<i64: 32, 32>}, {pipeline_mode = #tpu.pipeline_mode<synchronous>, transform_indices = @transform_5, window_bounds = array<i64: 32, 32>}, {pipeline_mode = #tpu.pipeline_mode<synchronous>, transform_indices = @transform_6, window_bounds = array<i64: 32, 32>}, {pipeline_mode = #tpu.pipeline_mode<synchronous>, transform_indices = @transform_7, window_bounds = array<i64: 32, 32>}, {pipeline_mode = #tpu.pipeline_mode<synchronous>, transform_indices = @transform_8, window_bounds = array<i64: 1, 32>}, {pipeline_mode = #tpu.pipeline_mode<synchronous>, transform_indices = @transform_9, window_bounds = array<i64: 32, 32>}, {pipeline_mode = #tpu.pipeline_mode<synchronous>, transform_indices = @transform_10, window_bounds = array<i64: 32, 32>}, {pipeline_mode = #tpu.pipeline_mode<synchronous>, transform_indices = @transform_11, window_bounds = array<i64: 32, 32>}, {pipeline_mode = #tpu.pipeline_mode<synchronous>, transform_indices = @transform_12, window_bounds = array<i64: 32, 32>}, {pipeline_mode = #tpu.pipeline_mode<synchronous>, transform_indices = @transform_13, window_bounds = array<i64: 1, 32>}, {pipeline_mode = #tpu.pipeline_mode<synchronous>, transform_indices = @transform_14, window_bounds = array<i64: 32, 128>}, {pipeline_mode = #tpu.pipeline_mode<synchronous>, transform_indices = @transform_15, window_bounds = array<i64: 64, 32>}, {transform_indices = @transform_16, window_bounds = array<i64: 1, 4, 32>}]} {
    %c0 = arith.constant 0 : index
    %c0_0 = arith.constant 0 : index
    %c0_1 = arith.constant 0 : index
    %0 = vector.load %arg1[%c0, %c0_0, %c0_1] : memref<1x4x32xf32, #tpu.memory_space<vmem>>, vector<1x4x32xf32>
    %1 = vector.shape_cast %0 : vector<1x4x32xf32> to vector<4x32xf32>
    %c0_2 = arith.constant 0 : index
    %c0_3 = arith.constant 0 : index
    %c0_4 = arith.constant 0 : index
    %2 = vector.load %arg2[%c0_2, %c0_3, %c0_4] : memref<1x6x32xbf16, #tpu.memory_space<vmem>>, vector<1x6x32xbf16>
    %c0_5 = arith.constant 0 : index
    %c0_6 = arith.constant 0 : index
    %c0_7 = arith.constant 0 : index
    %3 = vector.load %arg3[%c0_5, %c0_6, %c0_7] : memref<1x1x6xf32, #tpu.memory_space<vmem>>, vector<1x1x6xf32>
    %4 = arith.mulf %1, %1 : vector<4x32xf32>
    %cst = arith.constant dense<0.000000e+00> : vector<4xf32>
    %5 = vector.multi_reduction <add>, %4, %cst [1] : vector<4x32xf32> to vector<4xf32>
    %6 = vector.shape_cast %5 : vector<4xf32> to vector<4x1xf32>
    %cst_8 = arith.constant 3.200000e+01 : f32
    %7 = vector.broadcast %cst_8 : f32 to vector<4x1xf32>
    %8 = arith.divf %6, %7 : vector<4x1xf32>
    %cst_9 = arith.constant 9.99999997E-7 : f32
    %9 = vector.broadcast %cst_9 : f32 to vector<4x1xf32>
    %10 = arith.addf %8, %9 : vector<4x1xf32>
    %11 = math.rsqrt %10 : vector<4x1xf32>
    %12 = vector.broadcast %11 : vector<4x1xf32> to vector<4x32xf32>
    %13 = arith.mulf %1, %12 : vector<4x32xf32>
    %c0_10 = arith.constant 0 : index
    %c0_11 = arith.constant 0 : index
    %14 = vector.load %arg4[%c0_10, %c0_11] : memref<1x32xf32, #tpu.memory_space<vmem>>, vector<1x32xf32>
    %15 = vector.broadcast %14 : vector<1x32xf32> to vector<4x32xf32>
    %16 = arith.mulf %13, %15 : vector<4x32xf32>
    %17 = arith.truncf %16 : vector<4x32xf32> to vector<4x32xbf16>
    %18 = vector.shape_cast %17 : vector<4x32xbf16> to vector<1x4x32xbf16>
    %19 = vector.shape_cast %18 : vector<1x4x32xbf16> to vector<4x32xbf16>
    %20 = arith.truncf %16 : vector<4x32xf32> to vector<4x32xbf16>
    %c0_12 = arith.constant 0 : index
    %c0_13 = arith.constant 0 : index
    %21 = vector.load %arg5[%c0_12, %c0_13] : memref<32x32xbf16, #tpu.memory_space<vmem>>, vector<32x32xbf16>
    %cst_14 = arith.constant dense<0.000000e+00> : vector<4x32xf32>
    %22 = tpu.matmul %20, %21, %cst_14 {dimension_numbers = #tpu.dot_dimension_numbers<[1], [0], [0], [1], [0, 0, 1, 1], [], []>} : vector<4x32xbf16>, vector<32x32xbf16>, vector<4x32xf32> -> vector<4x32xf32>
    %c0_15 = arith.constant 0 : index
    %c0_16 = arith.constant 0 : index
    %23 = vector.load %arg6[%c0_15, %c0_16] : memref<32x32xbf16, #tpu.memory_space<vmem>>, vector<32x32xbf16>
    %cst_17 = arith.constant dense<0.000000e+00> : vector<4x32xf32>
    %24 = tpu.matmul %19, %23, %cst_17 {dimension_numbers = #tpu.dot_dimension_numbers<[1], [0], [0], [1], [0, 0, 1, 1], [], []>} : vector<4x32xbf16>, vector<32x32xbf16>, vector<4x32xf32> -> vector<4x32xf32>
    %c0_18 = arith.constant 0 : index
    %c0_19 = arith.constant 0 : index
    %25 = vector.load %arg7[%c0_18, %c0_19] : memref<32x32xbf16, #tpu.memory_space<vmem>>, vector<32x32xbf16>
    %cst_20 = arith.constant dense<0.000000e+00> : vector<4x32xf32>
    %26 = tpu.matmul %19, %25, %cst_20 {dimension_numbers = #tpu.dot_dimension_numbers<[1], [0], [0], [1], [0, 0, 1, 1], [], []>} : vector<4x32xbf16>, vector<32x32xbf16>, vector<4x32xf32> -> vector<4x32xf32>
    %27 = arith.truncf %22 : vector<4x32xf32> to vector<4x32xbf16>
    %28 = vector.shape_cast %27 : vector<4x32xbf16> to vector<1x4x32xbf16>
    %29 = arith.truncf %24 : vector<4x32xf32> to vector<4x32xbf16>
    %30 = vector.shape_cast %29 : vector<4x32xbf16> to vector<1x4x32xbf16>
    %31 = arith.truncf %26 : vector<4x32xf32> to vector<4x32xbf16>
    %32 = vector.shape_cast %31 : vector<4x32xbf16> to vector<1x4x32xbf16>
    %33 = vector.shape_cast %28 : vector<1x4x32xbf16> to vector<4x32xbf16>
    %34 = vector.shape_cast %30 : vector<1x4x32xbf16> to vector<4x32xbf16>
    %35 = vector.shape_cast %32 : vector<1x4x32xbf16> to vector<4x32xbf16>
    %36 = vector.extract_strided_slice %33 {offsets = [0, 0], sizes = [4, 8], strides = [1, 1]} : vector<4x32xbf16> to vector<4x8xbf16>
    %37 = vector.extract_strided_slice %34 {offsets = [0, 0], sizes = [4, 8], strides = [1, 1]} : vector<4x32xbf16> to vector<4x8xbf16>
    %cst_21 = arith.constant dense<0.000000e+00> : vector<4x4xf32>
    %38 = tpu.matmul %36, %37, %cst_21 {dimension_numbers = #tpu.dot_dimension_numbers<[1], [1], [0], [0], [0, 0, 1, 0], [], []>} : vector<4x8xbf16>, vector<4x8xbf16>, vector<4x4xf32> -> vector<4x4xf32>
    %cst_22 = arith.constant dense<0xFF800000> : vector<4xf32>
    %39 = vector.multi_reduction <maximumf>, %38, %cst_22 [1] : vector<4x4xf32> to vector<4xf32>
    %40 = vector.shape_cast %39 : vector<4xf32> to vector<4x1xf32>
    %41 = vector.broadcast %40 : vector<4x1xf32> to vector<4x4xf32>
    %42 = arith.subf %38, %41 : vector<4x4xf32>
    %43 = math.exp %42 : vector<4x4xf32>
    %cst_23 = arith.constant dense<0.000000e+00> : vector<4xf32>
    %44 = vector.multi_reduction <add>, %43, %cst_23 [1] : vector<4x4xf32> to vector<4xf32>
    %45 = vector.shape_cast %44 : vector<4xf32> to vector<4x1xf32>
    %46 = tpu.reciprocal %45 {approx = true} : vector<4x1xf32> -> vector<4x1xf32>
    %47 = vector.broadcast %46 : vector<4x1xf32> to vector<4x4xf32>
    %48 = arith.mulf %43, %47 : vector<4x4xf32>
    %49 = arith.truncf %48 : vector<4x4xf32> to vector<4x4xbf16>
    %50 = vector.extract_strided_slice %35 {offsets = [0, 0], sizes = [4, 8], strides = [1, 1]} : vector<4x32xbf16> to vector<4x8xbf16>
    %cst_24 = arith.constant dense<0.000000e+00> : vector<4x8xf32>
    %51 = tpu.matmul %49, %50, %cst_24 {dimension_numbers = #tpu.dot_dimension_numbers<[1], [0], [0], [1], [0, 0, 1, 1], [], []>} : vector<4x4xbf16>, vector<4x8xbf16>, vector<4x8xf32> -> vector<4x8xf32>
    %52 = vector.extract_strided_slice %33 {offsets = [0, 8], sizes = [4, 8], strides = [1, 1]} : vector<4x32xbf16> to vector<4x8xbf16>
    %53 = vector.extract_strided_slice %34 {offsets = [0, 8], sizes = [4, 8], strides = [1, 1]} : vector<4x32xbf16> to vector<4x8xbf16>
    %cst_25 = arith.constant dense<0.000000e+00> : vector<4x4xf32>
    %54 = tpu.matmul %52, %53, %cst_25 {dimension_numbers = #tpu.dot_dimension_numbers<[1], [1], [0], [0], [0, 0, 1, 0], [], []>} : vector<4x8xbf16>, vector<4x8xbf16>, vector<4x4xf32> -> vector<4x4xf32>
    %cst_26 = arith.constant dense<0xFF800000> : vector<4xf32>
    %55 = vector.multi_reduction <maximumf>, %54, %cst_26 [1] : vector<4x4xf32> to vector<4xf32>
    %56 = vector.shape_cast %55 : vector<4xf32> to vector<4x1xf32>
    %57 = vector.broadcast %56 : vector<4x1xf32> to vector<4x4xf32>
    %58 = arith.subf %54, %57 : vector<4x4xf32>
    %59 = math.exp %58 : vector<4x4xf32>
    %cst_27 = arith.constant dense<0.000000e+00> : vector<4xf32>
    %60 = vector.multi_reduction <add>, %59, %cst_27 [1] : vector<4x4xf32> to vector<4xf32>
    %61 = vector.shape_cast %60 : vector<4xf32> to vector<4x1xf32>
    %62 = tpu.reciprocal %61 {approx = true} : vector<4x1xf32> -> vector<4x1xf32>
    %63 = vector.broadcast %62 : vector<4x1xf32> to vector<4x4xf32>
    %64 = arith.mulf %59, %63 : vector<4x4xf32>
    %65 = arith.truncf %64 : vector<4x4xf32> to vector<4x4xbf16>
    %66 = vector.extract_strided_slice %35 {offsets = [0, 8], sizes = [4, 8], strides = [1, 1]} : vector<4x32xbf16> to vector<4x8xbf16>
    %cst_28 = arith.constant dense<0.000000e+00> : vector<4x8xf32>
    %67 = tpu.matmul %65, %66, %cst_28 {dimension_numbers = #tpu.dot_dimension_numbers<[1], [0], [0], [1], [0, 0, 1, 1], [], []>} : vector<4x4xbf16>, vector<4x8xbf16>, vector<4x8xf32> -> vector<4x8xf32>
    %68 = vector.extract_strided_slice %33 {offsets = [0, 16], sizes = [4, 8], strides = [1, 1]} : vector<4x32xbf16> to vector<4x8xbf16>
    %69 = vector.extract_strided_slice %34 {offsets = [0, 16], sizes = [4, 8], strides = [1, 1]} : vector<4x32xbf16> to vector<4x8xbf16>
    %cst_29 = arith.constant dense<0.000000e+00> : vector<4x4xf32>
    %70 = tpu.matmul %68, %69, %cst_29 {dimension_numbers = #tpu.dot_dimension_numbers<[1], [1], [0], [0], [0, 0, 1, 0], [], []>} : vector<4x8xbf16>, vector<4x8xbf16>, vector<4x4xf32> -> vector<4x4xf32>
    %cst_30 = arith.constant dense<0xFF800000> : vector<4xf32>
    %71 = vector.multi_reduction <maximumf>, %70, %cst_30 [1] : vector<4x4xf32> to vector<4xf32>
    %72 = vector.shape_cast %71 : vector<4xf32> to vector<4x1xf32>
    %73 = vector.broadcast %72 : vector<4x1xf32> to vector<4x4xf32>
    %74 = arith.subf %70, %73 : vector<4x4xf32>
    %75 = math.exp %74 : vector<4x4xf32>
    %cst_31 = arith.constant dense<0.000000e+00> : vector<4xf32>
    %76 = vector.multi_reduction <add>, %75, %cst_31 [1] : vector<4x4xf32> to vector<4xf32>
    %77 = vector.shape_cast %76 : vector<4xf32> to vector<4x1xf32>
    %78 = tpu.reciprocal %77 {approx = true} : vector<4x1xf32> -> vector<4x1xf32>
    %79 = vector.broadcast %78 : vector<4x1xf32> to vector<4x4xf32>
    %80 = arith.mulf %75, %79 : vector<4x4xf32>
    %81 = arith.truncf %80 : vector<4x4xf32> to vector<4x4xbf16>
    %82 = vector.extract_strided_slice %35 {offsets = [0, 16], sizes = [4, 8], strides = [1, 1]} : vector<4x32xbf16> to vector<4x8xbf16>
    %cst_32 = arith.constant dense<0.000000e+00> : vector<4x8xf32>
    %83 = tpu.matmul %81, %82, %cst_32 {dimension_numbers = #tpu.dot_dimension_numbers<[1], [0], [0], [1], [0, 0, 1, 1], [], []>} : vector<4x4xbf16>, vector<4x8xbf16>, vector<4x8xf32> -> vector<4x8xf32>
    %84 = vector.extract_strided_slice %33 {offsets = [0, 24], sizes = [4, 8], strides = [1, 1]} : vector<4x32xbf16> to vector<4x8xbf16>
    %85 = vector.extract_strided_slice %34 {offsets = [0, 24], sizes = [4, 8], strides = [1, 1]} : vector<4x32xbf16> to vector<4x8xbf16>
    %cst_33 = arith.constant dense<0.000000e+00> : vector<4x4xf32>
    %86 = tpu.matmul %84, %85, %cst_33 {dimension_numbers = #tpu.dot_dimension_numbers<[1], [1], [0], [0], [0, 0, 1, 0], [], []>} : vector<4x8xbf16>, vector<4x8xbf16>, vector<4x4xf32> -> vector<4x4xf32>
    %cst_34 = arith.constant dense<0xFF800000> : vector<4xf32>
    %87 = vector.multi_reduction <maximumf>, %86, %cst_34 [1] : vector<4x4xf32> to vector<4xf32>
    %88 = vector.shape_cast %87 : vector<4xf32> to vector<4x1xf32>
    %89 = vector.broadcast %88 : vector<4x1xf32> to vector<4x4xf32>
    %90 = arith.subf %86, %89 : vector<4x4xf32>
    %91 = math.exp %90 : vector<4x4xf32>
    %cst_35 = arith.constant dense<0.000000e+00> : vector<4xf32>
    %92 = vector.multi_reduction <add>, %91, %cst_35 [1] : vector<4x4xf32> to vector<4xf32>
    %93 = vector.shape_cast %92 : vector<4xf32> to vector<4x1xf32>
    %94 = tpu.reciprocal %93 {approx = true} : vector<4x1xf32> -> vector<4x1xf32>
    %95 = vector.broadcast %94 : vector<4x1xf32> to vector<4x4xf32>
    %96 = arith.mulf %91, %95 : vector<4x4xf32>
    %97 = arith.truncf %96 : vector<4x4xf32> to vector<4x4xbf16>
    %98 = vector.extract_strided_slice %35 {offsets = [0, 24], sizes = [4, 8], strides = [1, 1]} : vector<4x32xbf16> to vector<4x8xbf16>
    %cst_36 = arith.constant dense<0.000000e+00> : vector<4x8xf32>
    %99 = tpu.matmul %97, %98, %cst_36 {dimension_numbers = #tpu.dot_dimension_numbers<[1], [0], [0], [1], [0, 0, 1, 1], [], []>} : vector<4x4xbf16>, vector<4x8xbf16>, vector<4x8xf32> -> vector<4x8xf32>
    %100 = tpu.concatenate %51, %67, %83, %99 in 1 : vector<4x8xf32>, vector<4x8xf32>, vector<4x8xf32>, vector<4x8xf32> -> vector<4x32xf32>
    %101 = arith.truncf %100 : vector<4x32xf32> to vector<4x32xbf16>
    %c0_37 = arith.constant 0 : index
    %c0_38 = arith.constant 0 : index
    %102 = vector.load %arg8[%c0_37, %c0_38] : memref<32x32xbf16, #tpu.memory_space<vmem>>, vector<32x32xbf16>
    %cst_39 = arith.constant dense<0.000000e+00> : vector<4x32xf32>
    %103 = tpu.matmul %101, %102, %cst_39 {dimension_numbers = #tpu.dot_dimension_numbers<[1], [0], [0], [1], [0, 0, 1, 1], [], []>} : vector<4x32xbf16>, vector<32x32xbf16>, vector<4x32xf32> -> vector<4x32xf32>
    %104 = arith.addf %1, %103 : vector<4x32xf32>
    %105 = arith.mulf %104, %104 : vector<4x32xf32>
    %cst_40 = arith.constant dense<0.000000e+00> : vector<4xf32>
    %106 = vector.multi_reduction <add>, %105, %cst_40 [1] : vector<4x32xf32> to vector<4xf32>
    %107 = vector.shape_cast %106 : vector<4xf32> to vector<4x1xf32>
    %cst_41 = arith.constant 3.200000e+01 : f32
    %108 = vector.broadcast %cst_41 : f32 to vector<4x1xf32>
    %109 = arith.divf %107, %108 : vector<4x1xf32>
    %cst_42 = arith.constant 9.99999997E-7 : f32
    %110 = vector.broadcast %cst_42 : f32 to vector<4x1xf32>
    %111 = arith.addf %109, %110 : vector<4x1xf32>
    %112 = math.rsqrt %111 : vector<4x1xf32>
    %113 = vector.broadcast %112 : vector<4x1xf32> to vector<4x32xf32>
    %114 = arith.mulf %104, %113 : vector<4x32xf32>
    %c0_43 = arith.constant 0 : index
    %c0_44 = arith.constant 0 : index
    %115 = vector.load %arg9[%c0_43, %c0_44] : memref<1x32xf32, #tpu.memory_space<vmem>>, vector<1x32xf32>
    %116 = vector.broadcast %115 : vector<1x32xf32> to vector<4x32xf32>
    %117 = arith.mulf %114, %116 : vector<4x32xf32>
    %118 = vector.shape_cast %2 : vector<1x6x32xbf16> to vector<6x32xbf16>
    %119 = arith.truncf %117 : vector<4x32xf32> to vector<4x32xbf16>
    %c0_45 = arith.constant 0 : index
    %c0_46 = arith.constant 0 : index
    %120 = vector.load %arg10[%c0_45, %c0_46] : memref<32x32xbf16, #tpu.memory_space<vmem>>, vector<32x32xbf16>
    %cst_47 = arith.constant dense<0.000000e+00> : vector<4x32xf32>
    %121 = tpu.matmul %119, %120, %cst_47 {dimension_numbers = #tpu.dot_dimension_numbers<[1], [0], [0], [1], [0, 0, 1, 1], [], []>} : vector<4x32xbf16>, vector<32x32xbf16>, vector<4x32xf32> -> vector<4x32xf32>
    %c0_48 = arith.constant 0 : index
    %c0_49 = arith.constant 0 : index
    %122 = vector.load %arg11[%c0_48, %c0_49] : memref<32x32xbf16, #tpu.memory_space<vmem>>, vector<32x32xbf16>
    %cst_50 = arith.constant dense<0.000000e+00> : vector<6x32xf32>
    %123 = tpu.matmul %118, %122, %cst_50 {dimension_numbers = #tpu.dot_dimension_numbers<[1], [0], [0], [1], [0, 0, 1, 1], [], []>} : vector<6x32xbf16>, vector<32x32xbf16>, vector<6x32xf32> -> vector<6x32xf32>
    %c0_51 = arith.constant 0 : index
    %c0_52 = arith.constant 0 : index
    %124 = vector.load %arg12[%c0_51, %c0_52] : memref<32x32xbf16, #tpu.memory_space<vmem>>, vector<32x32xbf16>
    %cst_53 = arith.constant dense<0.000000e+00> : vector<6x32xf32>
    %125 = tpu.matmul %118, %124, %cst_53 {dimension_numbers = #tpu.dot_dimension_numbers<[1], [0], [0], [1], [0, 0, 1, 1], [], []>} : vector<6x32xbf16>, vector<32x32xbf16>, vector<6x32xf32> -> vector<6x32xf32>
    %126 = arith.truncf %121 : vector<4x32xf32> to vector<4x32xbf16>
    %127 = vector.shape_cast %126 : vector<4x32xbf16> to vector<1x4x32xbf16>
    %128 = arith.truncf %123 : vector<6x32xf32> to vector<6x32xbf16>
    %129 = vector.shape_cast %128 : vector<6x32xbf16> to vector<1x6x32xbf16>
    %130 = arith.truncf %125 : vector<6x32xf32> to vector<6x32xbf16>
    %131 = vector.shape_cast %130 : vector<6x32xbf16> to vector<1x6x32xbf16>
    %132 = vector.shape_cast %127 : vector<1x4x32xbf16> to vector<4x32xbf16>
    %133 = vector.shape_cast %129 : vector<1x6x32xbf16> to vector<6x32xbf16>
    %134 = vector.shape_cast %131 : vector<1x6x32xbf16> to vector<6x32xbf16>
    %135 = vector.shape_cast %3 : vector<1x1x6xf32> to vector<1x6xf32>
    %136 = vector.shape_cast %135 : vector<1x6xf32> to vector<1x6xf32>
    %137 = vector.broadcast %136 : vector<1x6xf32> to vector<4x6xf32>
    %138 = vector.extract_strided_slice %132 {offsets = [0, 0], sizes = [4, 8], strides = [1, 1]} : vector<4x32xbf16> to vector<4x8xbf16>
    %139 = vector.extract_strided_slice %133 {offsets = [0, 0], sizes = [6, 8], strides = [1, 1]} : vector<6x32xbf16> to vector<6x8xbf16>
    %cst_54 = arith.constant dense<0.000000e+00> : vector<4x6xf32>
    %140 = tpu.matmul %138, %139, %cst_54 {dimension_numbers = #tpu.dot_dimension_numbers<[1], [1], [0], [0], [0, 0, 1, 0], [], []>} : vector<4x8xbf16>, vector<6x8xbf16>, vector<4x6xf32> -> vector<4x6xf32>
    %141 = arith.addf %140, %137 : vector<4x6xf32>
    %cst_55 = arith.constant dense<0xFF800000> : vector<4xf32>
    %142 = vector.multi_reduction <maximumf>, %141, %cst_55 [1] : vector<4x6xf32> to vector<4xf32>
    %143 = vector.shape_cast %142 : vector<4xf32> to vector<4x1xf32>
    %144 = vector.broadcast %143 : vector<4x1xf32> to vector<4x6xf32>
    %145 = arith.subf %141, %144 : vector<4x6xf32>
    %146 = math.exp %145 : vector<4x6xf32>
    %cst_56 = arith.constant dense<0.000000e+00> : vector<4xf32>
    %147 = vector.multi_reduction <add>, %146, %cst_56 [1] : vector<4x6xf32> to vector<4xf32>
    %148 = vector.shape_cast %147 : vector<4xf32> to vector<4x1xf32>
    %149 = tpu.reciprocal %148 {approx = true} : vector<4x1xf32> -> vector<4x1xf32>
    %150 = vector.broadcast %149 : vector<4x1xf32> to vector<4x6xf32>
    %151 = arith.mulf %146, %150 : vector<4x6xf32>
    %152 = arith.truncf %151 : vector<4x6xf32> to vector<4x6xbf16>
    %153 = vector.extract_strided_slice %134 {offsets = [0, 0], sizes = [6, 8], strides = [1, 1]} : vector<6x32xbf16> to vector<6x8xbf16>
    %cst_57 = arith.constant dense<0.000000e+00> : vector<4x8xf32>
    %154 = tpu.matmul %152, %153, %cst_57 {dimension_numbers = #tpu.dot_dimension_numbers<[1], [0], [0], [1], [0, 0, 1, 1], [], []>} : vector<4x6xbf16>, vector<6x8xbf16>, vector<4x8xf32> -> vector<4x8xf32>
    %155 = vector.extract_strided_slice %132 {offsets = [0, 8], sizes = [4, 8], strides = [1, 1]} : vector<4x32xbf16> to vector<4x8xbf16>
    %156 = vector.extract_strided_slice %133 {offsets = [0, 8], sizes = [6, 8], strides = [1, 1]} : vector<6x32xbf16> to vector<6x8xbf16>
    %cst_58 = arith.constant dense<0.000000e+00> : vector<4x6xf32>
    %157 = tpu.matmul %155, %156, %cst_58 {dimension_numbers = #tpu.dot_dimension_numbers<[1], [1], [0], [0], [0, 0, 1, 0], [], []>} : vector<4x8xbf16>, vector<6x8xbf16>, vector<4x6xf32> -> vector<4x6xf32>
    %158 = arith.addf %157, %137 : vector<4x6xf32>
    %cst_59 = arith.constant dense<0xFF800000> : vector<4xf32>
    %159 = vector.multi_reduction <maximumf>, %158, %cst_59 [1] : vector<4x6xf32> to vector<4xf32>
    %160 = vector.shape_cast %159 : vector<4xf32> to vector<4x1xf32>
    %161 = vector.broadcast %160 : vector<4x1xf32> to vector<4x6xf32>
    %162 = arith.subf %158, %161 : vector<4x6xf32>
    %163 = math.exp %162 : vector<4x6xf32>
    %cst_60 = arith.constant dense<0.000000e+00> : vector<4xf32>
    %164 = vector.multi_reduction <add>, %163, %cst_60 [1] : vector<4x6xf32> to vector<4xf32>
    %165 = vector.shape_cast %164 : vector<4xf32> to vector<4x1xf32>
    %166 = tpu.reciprocal %165 {approx = true} : vector<4x1xf32> -> vector<4x1xf32>
    %167 = vector.broadcast %166 : vector<4x1xf32> to vector<4x6xf32>
    %168 = arith.mulf %163, %167 : vector<4x6xf32>
    %169 = arith.truncf %168 : vector<4x6xf32> to vector<4x6xbf16>
    %170 = vector.extract_strided_slice %134 {offsets = [0, 8], sizes = [6, 8], strides = [1, 1]} : vector<6x32xbf16> to vector<6x8xbf16>
    %cst_61 = arith.constant dense<0.000000e+00> : vector<4x8xf32>
    %171 = tpu.matmul %169, %170, %cst_61 {dimension_numbers = #tpu.dot_dimension_numbers<[1], [0], [0], [1], [0, 0, 1, 1], [], []>} : vector<4x6xbf16>, vector<6x8xbf16>, vector<4x8xf32> -> vector<4x8xf32>
    %172 = vector.extract_strided_slice %132 {offsets = [0, 16], sizes = [4, 8], strides = [1, 1]} : vector<4x32xbf16> to vector<4x8xbf16>
    %173 = vector.extract_strided_slice %133 {offsets = [0, 16], sizes = [6, 8], strides = [1, 1]} : vector<6x32xbf16> to vector<6x8xbf16>
    %cst_62 = arith.constant dense<0.000000e+00> : vector<4x6xf32>
    %174 = tpu.matmul %172, %173, %cst_62 {dimension_numbers = #tpu.dot_dimension_numbers<[1], [1], [0], [0], [0, 0, 1, 0], [], []>} : vector<4x8xbf16>, vector<6x8xbf16>, vector<4x6xf32> -> vector<4x6xf32>
    %175 = arith.addf %174, %137 : vector<4x6xf32>
    %cst_63 = arith.constant dense<0xFF800000> : vector<4xf32>
    %176 = vector.multi_reduction <maximumf>, %175, %cst_63 [1] : vector<4x6xf32> to vector<4xf32>
    %177 = vector.shape_cast %176 : vector<4xf32> to vector<4x1xf32>
    %178 = vector.broadcast %177 : vector<4x1xf32> to vector<4x6xf32>
    %179 = arith.subf %175, %178 : vector<4x6xf32>
    %180 = math.exp %179 : vector<4x6xf32>
    %cst_64 = arith.constant dense<0.000000e+00> : vector<4xf32>
    %181 = vector.multi_reduction <add>, %180, %cst_64 [1] : vector<4x6xf32> to vector<4xf32>
    %182 = vector.shape_cast %181 : vector<4xf32> to vector<4x1xf32>
    %183 = tpu.reciprocal %182 {approx = true} : vector<4x1xf32> -> vector<4x1xf32>
    %184 = vector.broadcast %183 : vector<4x1xf32> to vector<4x6xf32>
    %185 = arith.mulf %180, %184 : vector<4x6xf32>
    %186 = arith.truncf %185 : vector<4x6xf32> to vector<4x6xbf16>
    %187 = vector.extract_strided_slice %134 {offsets = [0, 16], sizes = [6, 8], strides = [1, 1]} : vector<6x32xbf16> to vector<6x8xbf16>
    %cst_65 = arith.constant dense<0.000000e+00> : vector<4x8xf32>
    %188 = tpu.matmul %186, %187, %cst_65 {dimension_numbers = #tpu.dot_dimension_numbers<[1], [0], [0], [1], [0, 0, 1, 1], [], []>} : vector<4x6xbf16>, vector<6x8xbf16>, vector<4x8xf32> -> vector<4x8xf32>
    %189 = vector.extract_strided_slice %132 {offsets = [0, 24], sizes = [4, 8], strides = [1, 1]} : vector<4x32xbf16> to vector<4x8xbf16>
    %190 = vector.extract_strided_slice %133 {offsets = [0, 24], sizes = [6, 8], strides = [1, 1]} : vector<6x32xbf16> to vector<6x8xbf16>
    %cst_66 = arith.constant dense<0.000000e+00> : vector<4x6xf32>
    %191 = tpu.matmul %189, %190, %cst_66 {dimension_numbers = #tpu.dot_dimension_numbers<[1], [1], [0], [0], [0, 0, 1, 0], [], []>} : vector<4x8xbf16>, vector<6x8xbf16>, vector<4x6xf32> -> vector<4x6xf32>
    %192 = arith.addf %191, %137 : vector<4x6xf32>
    %cst_67 = arith.constant dense<0xFF800000> : vector<4xf32>
    %193 = vector.multi_reduction <maximumf>, %192, %cst_67 [1] : vector<4x6xf32> to vector<4xf32>
    %194 = vector.shape_cast %193 : vector<4xf32> to vector<4x1xf32>
    %195 = vector.broadcast %194 : vector<4x1xf32> to vector<4x6xf32>
    %196 = arith.subf %192, %195 : vector<4x6xf32>
    %197 = math.exp %196 : vector<4x6xf32>
    %cst_68 = arith.constant dense<0.000000e+00> : vector<4xf32>
    %198 = vector.multi_reduction <add>, %197, %cst_68 [1] : vector<4x6xf32> to vector<4xf32>
    %199 = vector.shape_cast %198 : vector<4xf32> to vector<4x1xf32>
    %200 = tpu.reciprocal %199 {approx = true} : vector<4x1xf32> -> vector<4x1xf32>
    %201 = vector.broadcast %200 : vector<4x1xf32> to vector<4x6xf32>
    %202 = arith.mulf %197, %201 : vector<4x6xf32>
    %203 = arith.truncf %202 : vector<4x6xf32> to vector<4x6xbf16>
    %204 = vector.extract_strided_slice %134 {offsets = [0, 24], sizes = [6, 8], strides = [1, 1]} : vector<6x32xbf16> to vector<6x8xbf16>
    %cst_69 = arith.constant dense<0.000000e+00> : vector<4x8xf32>
    %205 = tpu.matmul %203, %204, %cst_69 {dimension_numbers = #tpu.dot_dimension_numbers<[1], [0], [0], [1], [0, 0, 1, 1], [], []>} : vector<4x6xbf16>, vector<6x8xbf16>, vector<4x8xf32> -> vector<4x8xf32>
    %206 = tpu.concatenate %154, %171, %188, %205 in 1 : vector<4x8xf32>, vector<4x8xf32>, vector<4x8xf32>, vector<4x8xf32> -> vector<4x32xf32>
    %207 = arith.truncf %206 : vector<4x32xf32> to vector<4x32xbf16>
    %c0_70 = arith.constant 0 : index
    %c0_71 = arith.constant 0 : index
    %208 = vector.load %arg13[%c0_70, %c0_71] : memref<32x32xbf16, #tpu.memory_space<vmem>>, vector<32x32xbf16>
    %cst_72 = arith.constant dense<0.000000e+00> : vector<4x32xf32>
    %209 = tpu.matmul %207, %208, %cst_72 {dimension_numbers = #tpu.dot_dimension_numbers<[1], [0], [0], [1], [0, 0, 1, 1], [], []>} : vector<4x32xbf16>, vector<32x32xbf16>, vector<4x32xf32> -> vector<4x32xf32>
    %210 = arith.addf %104, %209 : vector<4x32xf32>
    %211 = arith.mulf %210, %210 : vector<4x32xf32>
    %cst_73 = arith.constant dense<0.000000e+00> : vector<4xf32>
    %212 = vector.multi_reduction <add>, %211, %cst_73 [1] : vector<4x32xf32> to vector<4xf32>
    %213 = vector.shape_cast %212 : vector<4xf32> to vector<4x1xf32>
    %cst_74 = arith.constant 3.200000e+01 : f32
    %214 = vector.broadcast %cst_74 : f32 to vector<4x1xf32>
    %215 = arith.divf %213, %214 : vector<4x1xf32>
    %cst_75 = arith.constant 9.99999997E-7 : f32
    %216 = vector.broadcast %cst_75 : f32 to vector<4x1xf32>
    %217 = arith.addf %215, %216 : vector<4x1xf32>
    %218 = math.rsqrt %217 : vector<4x1xf32>
    %219 = vector.broadcast %218 : vector<4x1xf32> to vector<4x32xf32>
    %220 = arith.mulf %210, %219 : vector<4x32xf32>
    %c0_76 = arith.constant 0 : index
    %c0_77 = arith.constant 0 : index
    %221 = vector.load %arg14[%c0_76, %c0_77] : memref<1x32xf32, #tpu.memory_space<vmem>>, vector<1x32xf32>
    %222 = vector.broadcast %221 : vector<1x32xf32> to vector<4x32xf32>
    %223 = arith.mulf %220, %222 : vector<4x32xf32>
    %224 = arith.truncf %223 : vector<4x32xf32> to vector<4x32xbf16>
    %c0_78 = arith.constant 0 : index
    %c0_79 = arith.constant 0 : index
    %225 = vector.load %arg15[%c0_78, %c0_79] : memref<32x128xbf16, #tpu.memory_space<vmem>>, vector<32x128xbf16>
    %cst_80 = arith.constant dense<0.000000e+00> : vector<4x128xf32>
    %226 = tpu.matmul %224, %225, %cst_80 {dimension_numbers = #tpu.dot_dimension_numbers<[1], [0], [0], [1], [0, 0, 1, 1], [], []>} : vector<4x32xbf16>, vector<32x128xbf16>, vector<4x128xf32> -> vector<4x128xf32>
    %227 = vector.extract_strided_slice %226 {offsets = [0, 0], sizes = [4, 64], strides = [1, 1]} : vector<4x128xf32> to vector<4x64xf32>
    %228 = vector.extract_strided_slice %226 {offsets = [0, 64], sizes = [4, 64], strides = [1, 1]} : vector<4x128xf32> to vector<4x64xf32>
    %cst_81 = arith.constant 5.000000e-01 : f32
    %229 = vector.broadcast %cst_81 : f32 to vector<4x64xf32>
    %230 = arith.mulf %229, %227 : vector<4x64xf32>
    %cst_82 = arith.constant 4.471500e-02 : f32
    %231 = vector.broadcast %cst_82 : f32 to vector<4x64xf32>
    %232 = arith.mulf %231, %227 : vector<4x64xf32>
    %233 = arith.mulf %232, %227 : vector<4x64xf32>
    %234 = arith.mulf %233, %227 : vector<4x64xf32>
    %235 = arith.addf %227, %234 : vector<4x64xf32>
    %cst_83 = arith.constant 0.797884583 : f32
    %236 = vector.broadcast %cst_83 : f32 to vector<4x64xf32>
    %237 = arith.mulf %236, %235 : vector<4x64xf32>
    %238 = math.tanh %237 : vector<4x64xf32>
    %cst_84 = arith.constant 1.000000e+00 : f32
    %239 = vector.broadcast %cst_84 : f32 to vector<4x64xf32>
    %240 = arith.addf %239, %238 : vector<4x64xf32>
    %241 = arith.mulf %230, %240 : vector<4x64xf32>
    %242 = arith.mulf %241, %228 : vector<4x64xf32>
    %243 = arith.truncf %242 : vector<4x64xf32> to vector<4x64xbf16>
    %c0_85 = arith.constant 0 : index
    %c0_86 = arith.constant 0 : index
    %244 = vector.load %arg16[%c0_85, %c0_86] : memref<64x32xbf16, #tpu.memory_space<vmem>>, vector<64x32xbf16>
    %cst_87 = arith.constant dense<0.000000e+00> : vector<4x32xf32>
    %245 = tpu.matmul %243, %244, %cst_87 {dimension_numbers = #tpu.dot_dimension_numbers<[1], [0], [0], [1], [0, 0, 1, 1], [], []>} : vector<4x64xbf16>, vector<64x32xbf16>, vector<4x32xf32> -> vector<4x32xf32>
    %246 = arith.addf %210, %245 : vector<4x32xf32>
    %247 = vector.shape_cast %246 : vector<4x32xf32> to vector<1x4x32xf32>
    %c0_88 = arith.constant 0 : index
    %c0_89 = arith.constant 0 : index
    %c0_90 = arith.constant 0 : index
    %248 = vector.load %arg17[%c0_88, %c0_89, %c0_90] : memref<1x4x32xf32, #tpu.memory_space<vmem>>, vector<1x4x32xf32>
    tpu.vector_store %arg17[%c0_88, %c0_89, %c0_90], %247 {strides = array<i32>} : memref<1x4x32xf32, #tpu.memory_space<vmem>>, vector<1x4x32xf32>,
    return
  }
  func.func @transform_0(%arg0: i32) -> (i32, i32, i32) {
    %c0_i32 = arith.constant 0 : i32
    %c0_i32_0 = arith.constant 0 : i32
    %c0_i32_1 = arith.constant 0 : i32
    return %arg0, %c0_i32, %c0_i32_0 : i32, i32, i32
  }
  func.func @transform_1(%arg0: i32) -> (i32, i32, i32) {
    %c0_i32 = arith.constant 0 : i32
    %c0_i32_0 = arith.constant 0 : i32
    %c0_i32_1 = arith.constant 0 : i32
    return %arg0, %c0_i32, %c0_i32_0 : i32, i32, i32
  }
  func.func @transform_2(%arg0: i32) -> (i32, i32, i32) {
    %c0_i32 = arith.constant 0 : i32
    %c0_i32_0 = arith.constant 0 : i32
    %c0_i32_1 = arith.constant 0 : i32
    return %arg0, %c0_i32, %c0_i32_0 : i32, i32, i32
  }
  func.func @transform_3(%arg0: i32) -> (i32, i32) {
    %c0_i32 = arith.constant 0 : i32
    %c0_i32_0 = arith.constant 0 : i32
    %c0_i32_1 = arith.constant 0 : i32
    return %c0_i32, %c0_i32_0 : i32, i32
  }
  func.func @transform_4(%arg0: i32) -> (i32, i32) {
    %c0_i32 = arith.constant 0 : i32
    %c0_i32_0 = arith.constant 0 : i32
    %c0_i32_1 = arith.constant 0 : i32
    return %c0_i32, %c0_i32_0 : i32, i32
  }
  func.func @transform_5(%arg0: i32) -> (i32, i32) {
    %c0_i32 = arith.constant 0 : i32
    %c0_i32_0 = arith.constant 0 : i32
    %c0_i32_1 = arith.constant 0 : i32
    return %c0_i32, %c0_i32_0 : i32, i32
  }
  func.func @transform_6(%arg0: i32) -> (i32, i32) {
    %c0_i32 = arith.constant 0 : i32
    %c0_i32_0 = arith.constant 0 : i32
    %c0_i32_1 = arith.constant 0 : i32
    return %c0_i32, %c0_i32_0 : i32, i32
  }
  func.func @transform_7(%arg0: i32) -> (i32, i32) {
    %c0_i32 = arith.constant 0 : i32
    %c0_i32_0 = arith.constant 0 : i32
    %c0_i32_1 = arith.constant 0 : i32
    return %c0_i32, %c0_i32_0 : i32, i32
  }
  func.func @transform_8(%arg0: i32) -> (i32, i32) {
    %c0_i32 = arith.constant 0 : i32
    %c0_i32_0 = arith.constant 0 : i32
    %c0_i32_1 = arith.constant 0 : i32
    return %c0_i32, %c0_i32_0 : i32, i32
  }
  func.func @transform_9(%arg0: i32) -> (i32, i32) {
    %c0_i32 = arith.constant 0 : i32
    %c0_i32_0 = arith.constant 0 : i32
    %c0_i32_1 = arith.constant 0 : i32
    return %c0_i32, %c0_i32_0 : i32, i32
  }
  func.func @transform_10(%arg0: i32) -> (i32, i32) {
    %c0_i32 = arith.constant 0 : i32
    %c0_i32_0 = arith.constant 0 : i32
    %c0_i32_1 = arith.constant 0 : i32
    return %c0_i32, %c0_i32_0 : i32, i32
  }
  func.func @transform_11(%arg0: i32) -> (i32, i32) {
    %c0_i32 = arith.constant 0 : i32
    %c0_i32_0 = arith.constant 0 : i32
    %c0_i32_1 = arith.constant 0 : i32
    return %c0_i32, %c0_i32_0 : i32, i32
  }
  func.func @transform_12(%arg0: i32) -> (i32, i32) {
    %c0_i32 = arith.constant 0 : i32
    %c0_i32_0 = arith.constant 0 : i32
    %c0_i32_1 = arith.constant 0 : i32
    return %c0_i32, %c0_i32_0 : i32, i32
  }
  func.func @transform_13(%arg0: i32) -> (i32, i32) {
    %c0_i32 = arith.constant 0 : i32
    %c0_i32_0 = arith.constant 0 : i32
    %c0_i32_1 = arith.constant 0 : i32
    return %c0_i32, %c0_i32_0 : i32, i32
  }
  func.func @transform_14(%arg0: i32) -> (i32, i32) {
    %c0_i32 = arith.constant 0 : i32
    %c0_i32_0 = arith.constant 0 : i32
    %c0_i32_1 = arith.constant 0 : i32
    return %c0_i32, %c0_i32_0 : i32, i32
  }
  func.func @transform_15(%arg0: i32) -> (i32, i32) {
    %c0_i32 = arith.constant 0 : i32
    %c0_i32_0 = arith.constant 0 : i32
    %c0_i32_1 = arith.constant 0 : i32
    return %c0_i32, %c0_i32_0 : i32, i32
  }
  func.func @transform_16(%arg0: i32) -> (i32, i32, i32) {
    %c0_i32 = arith.constant 0 : i32
    %c0_i32_0 = arith.constant 0 : i32
    %c0_i32_1 = arith.constant 0 : i32
    return %arg0, %c0_i32, %c0_i32_0 : i32, i32, i32
  }
}

module attributes {stable_mosaic.version = 11 : i64} {
  func.func @_t5_global_block_kernel(%arg0: i32, %arg1: memref<1x4x32xf32, #tpu.memory_space<vmem>>, %arg2: memref<1x6x32xbf16, #tpu.memory_space<vmem>>, %arg3: memref<1x1x6xf32, #tpu.memory_space<vmem>>, %arg4: memref<1x32xf32, #tpu.memory_space<vmem>>, %arg5: memref<32x32xbf16, #tpu.memory_space<vmem>>, %arg6: memref<32x32xbf16, #tpu.memory_space<vmem>>, %arg7: memref<32x32xbf16, #tpu.memory_space<vmem>>, %arg8: memref<32x32xbf16, #tpu.memory_space<vmem>>, %arg9: memref<1x32xf32, #tpu.memory_space<vmem>>, %arg10: memref<32x32xbf16, #tpu.memory_space<vmem>>, %arg11: memref<32x32xbf16, #tpu.memory_space<vmem>>, %arg12: memref<32x32xbf16, #tpu.memory_space<vmem>>, %arg13: memref<32x32xbf16, #tpu.memory_space<vmem>>, %arg14: memref<1x32xf32, #tpu.memory_space<vmem>>, %arg15: memref<32x128xbf16, #tpu.memory_space<vmem>>, %arg16: memref<64x32xbf16, #tpu.memory_space<vmem>>, %arg17: memref<1x4x32xf32, #tpu.memory_space<vmem>>) attributes {dimension_semantics = [#tpu.dimension_semantics<parallel>], iteration_bounds = array<i64: 2>, scalar_prefetch = 0 : i64, scratch_operands = 0 : i64, tpu.core_type = #tpu.core_type<tc>, window_params = [{transform_indices = @transform_0, window_bounds = array<i64: 1, 4, 32>}, {transform_indices = @transform_1, window_bounds = array<i64: 1, 6, 32>}, {transform_indices = @transform_2, window_bounds = array<i64: 1, 1, 6>}, {pipeline_mode = #tpu.pipeline_mode<synchronous>, transform_indices = @transform_3, window_bounds = array<i64: 1, 32>}, {pipeline_mode = #tpu.pipeline_mode<synchronous>, transform_indices = @transform_4, window_bounds = array<i64: 32, 32>}, {pipeline_mode = #tpu.pipeline_mode<synchronous>, transform_indices = @transform_5, window_bounds = array<i64: 32, 32>}, {pipeline_mode = #tpu.pipeline_mode<synchronous>, transform_indices = @transform_6, window_bounds = array<i64: 32, 32>}, {pipeline_mode = #tpu.pipeline_mode<synchronous>, transform_indices = @transform_7, window_bounds = array<i64: 32, 32>}, {pipeline_mode = #tpu.pipeline_mode<synchronous>, transform_indices = @transform_8, window_bounds = array<i64: 1, 32>}, {pipeline_mode = #tpu.pipeline_mode<synchronous>, transform_indices = @transform_9, window_bounds = array<i64: 32, 32>}, {pipeline_mode = #tpu.pipeline_mode<synchronous>, transform_indices = @transform_10, window_bounds = array<i64: 32, 32>}, {pipeline_mode = #tpu.pipeline_mode<synchronous>, transform_indices = @transform_11, window_bounds = array<i64: 32, 32>}, {pipeline_mode = #tpu.pipeline_mode<synchronous>, transform_indices = @transform_12, window_bounds = array<i64: 32, 32>}, {pipeline_mode = #tpu.pipeline_mode<synchronous>, transform_indices = @transform_13, window_bounds = array<i64: 1, 32>}, {pipeline_mode = #tpu.pipeline_mode<synchronous>, transform_indices = @transform_14, window_bounds = array<i64: 32, 128>}, {pipeline_mode = #tpu.pipeline_mode<synchronous>, transform_indices = @transform_15, window_bounds = array<i64: 64, 32>}, {transform_indices = @transform_16, window_bounds = array<i64: 1, 4, 32>}]} {
    %c0 = arith.constant 0 : index
    %c0_0 = arith.constant 0 : index
    %c0_1 = arith.constant 0 : index
    %0 = vector.load %arg1[%c0, %c0_0, %c0_1] : memref<1x4x32xf32, #tpu.memory_space<vmem>>, vector<1x4x32xf32>
    %1 = vector.shape_cast %0 : vector<1x4x32xf32> to vector<4x32xf32>
    %c0_2 = arith.constant 0 : index
    %c0_3 = arith.constant 0 : index
    %c0_4 = arith.constant 0 : index
    %2 = vector.load %arg2[%c0_2, %c0_3, %c0_4] : memref<1x6x32xbf16, #tpu.memory_space<vmem>>, vector<1x6x32xbf16>
    %c0_5 = arith.constant 0 : index
    %c0_6 = arith.constant 0 : index
    %c0_7 = arith.constant 0 : index
    %3 = vector.load %arg3[%c0_5, %c0_6, %c0_7] : memref<1x1x6xf32, #tpu.memory_space<vmem>>, vector<1x1x6xf32>
    %4 = arith.mulf %1, %1 : vector<4x32xf32>
    %cst = arith.constant dense<0.000000e+00> : vector<4xf32>
    %5 = vector.multi_reduction <add>, %4, %cst [1] : vector<4x32xf32> to vector<4xf32>
    %6 = vector.shape_cast %5 : vector<4xf32> to vector<4x1xf32>
    %cst_8 = arith.constant 3.200000e+01 : f32
    %7 = vector.broadcast %cst_8 : f32 to vector<4x1xf32>
    %8 = arith.divf %6, %7 : vector<4x1xf32>
    %cst_9 = arith.constant 9.99999997E-7 : f32
    %9 = vector.broadcast %cst_9 : f32 to vector<4x1xf32>
    %10 = arith.addf %8, %9 : vector<4x1xf32>
    %11 = math.rsqrt %10 : vector<4x1xf32>
    %12 = vector.broadcast %11 : vector<4x1xf32> to vector<4x32xf32>
    %13 = arith.mulf %1, %12 : vector<4x32xf32>
    %c0_10 = arith.constant 0 : index
    %c0_11 = arith.constant 0 : index
    %14 = vector.load %arg4[%c0_10, %c0_11] : memref<1x32xf32, #tpu.memory_space<vmem>>, vector<1x32xf32>
    %15 = vector.broadcast %14 : vector<1x32xf32> to vector<4x32xf32>
    %16 = arith.mulf %13, %15 : vector<4x32xf32>
    %17 = arith.truncf %16 : vector<4x32xf32> to vector<4x32xbf16>
    %18 = vector.shape_cast %17 : vector<4x32xbf16> to vector<1x4x32xbf16>
    %19 = vector.shape_cast %18 : vector<1x4x32xbf16> to vector<4x32xbf16>
    %20 = arith.truncf %16 : vector<4x32xf32> to vector<4x32xbf16>
    %c0_12 = arith.constant 0 : index
    %c0_13 = arith.constant 0 : index
    %21 = vector.load %arg5[%c0_12, %c0_13] : memref<32x32xbf16, #tpu.memory_space<vmem>>, vector<32x32xbf16>
    %cst_14 = arith.constant dense<0.000000e+00> : vector<4x32xf32>
    %22 = tpu.matmul %20, %21, %cst_14 {dimension_numbers = #tpu.dot_dimension_numbers<[1], [0], [0], [1], [0, 0, 1, 1], [], []>} : vector<4x32xbf16>, vector<32x32xbf16>, vector<4x32xf32> -> vector<4x32xf32>
    %c0_15 = arith.constant 0 : index
    %c0_16 = arith.constant 0 : index
    %23 = vector.load %arg6[%c0_15, %c0_16] : memref<32x32xbf16, #tpu.memory_space<vmem>>, vector<32x32xbf16>
    %cst_17 = arith.constant dense<0.000000e+00> : vector<4x32xf32>
    %24 = tpu.matmul %19, %23, %cst_17 {dimension_numbers = #tpu.dot_dimension_numbers<[1], [0], [0], [1], [0, 0, 1, 1], [], []>} : vector<4x32xbf16>, vector<32x32xbf16>, vector<4x32xf32> -> vector<4x32xf32>
    %c0_18 = arith.constant 0 : index
    %c0_19 = arith.constant 0 : index
    %25 = vector.load %arg7[%c0_18, %c0_19] : memref<32x32xbf16, #tpu.memory_space<vmem>>, vector<32x32xbf16>
    %cst_20 = arith.constant dense<0.000000e+00> : vector<4x32xf32>
    %26 = tpu.matmul %19, %25, %cst_20 {dimension_numbers = #tpu.dot_dimension_numbers<[1], [0], [0], [1], [0, 0, 1, 1], [], []>} : vector<4x32xbf16>, vector<32x32xbf16>, vector<4x32xf32> -> vector<4x32xf32>
    %27 = arith.truncf %22 : vector<4x32xf32> to vector<4x32xbf16>
    %28 = vector.shape_cast %27 : vector<4x32xbf16> to vector<1x4x32xbf16>
    %29 = arith.truncf %24 : vector<4x32xf32> to vector<4x32xbf16>
    %30 = vector.shape_cast %29 : vector<4x32xbf16> to vector<1x4x32xbf16>
    %31 = arith.truncf %26 : vector<4x32xf32> to vector<4x32xbf16>
    %32 = vector.shape_cast %31 : vector<4x32xbf16> to vector<1x4x32xbf16>
    %33 = vector.shape_cast %28 : vector<1x4x32xbf16> to vector<4x32xbf16>
    %34 = vector.shape_cast %30 : vector<1x4x32xbf16> to vector<4x32xbf16>
    %35 = vector.shape_cast %32 : vector<1x4x32xbf16> to vector<4x32xbf16>
    %36 = vector.extract_strided_slice %33 {offsets = [0, 0], sizes = [4, 8], strides = [1, 1]} : vector<4x32xbf16> to vector<4x8xbf16>
    %37 = vector.extract_strided_slice %34 {offsets = [0, 0], sizes = [4, 8], strides = [1, 1]} : vector<4x32xbf16> to vector<4x8xbf16>
    %cst_21 = arith.constant dense<0.000000e+00> : vector<4x4xf32>
    %38 = tpu.matmul %36, %37, %cst_21 {dimension_numbers = #tpu.dot_dimension_numbers<[1], [1], [0], [0], [0, 0, 1, 0], [], []>} : vector<4x8xbf16>, vector<4x8xbf16>, vector<4x4xf32> -> vector<4x4xf32>
    %cst_22 = arith.constant dense<0xFF800000> : vector<4xf32>
    %39 = vector.multi_reduction <maximumf>, %38, %cst_22 [1] : vector<4x4xf32> to vector<4xf32>
    %40 = vector.shape_cast %39 : vector<4xf32> to vector<4x1xf32>
    %41 = vector.broadcast %40 : vector<4x1xf32> to vector<4x4xf32>
    %42 = arith.subf %38, %41 : vector<4x4xf32>
    %43 = math.exp %42 : vector<4x4xf32>
    %cst_23 = arith.constant dense<0.000000e+00> : vector<4xf32>
    %44 = vector.multi_reduction <add>, %43, %cst_23 [1] : vector<4x4xf32> to vector<4xf32>
    %45 = vector.shape_cast %44 : vector<4xf32> to vector<4x1xf32>
    %46 = tpu.reciprocal %45 {approx = true} : vector<4x1xf32> -> vector<4x1xf32>
    %47 = vector.broadcast %46 : vector<4x1xf32> to vector<4x4xf32>
    %48 = arith.mulf %43, %47 : vector<4x4xf32>
    %49 = arith.truncf %48 : vector<4x4xf32> to vector<4x4xbf16>
    %50 = vector.extract_strided_slice %35 {offsets = [0, 0], sizes = [4, 8], strides = [1, 1]} : vector<4x32xbf16> to vector<4x8xbf16>
    %cst_24 = arith.constant dense<0.000000e+00> : vector<4x8xf32>
    %51 = tpu.matmul %49, %50, %cst_24 {dimension_numbers = #tpu.dot_dimension_numbers<[1], [0], [0], [1], [0, 0, 1, 1], [], []>} : vector<4x4xbf16>, vector<4x8xbf16>, vector<4x8xf32> -> vector<4x8xf32>
    %52 = vector.extract_strided_slice %33 {offsets = [0, 8], sizes = [4, 8], strides = [1, 1]} : vector<4x32xbf16> to vector<4x8xbf16>
    %53 = vector.extract_strided_slice %34 {offsets = [0, 8], sizes = [4, 8], strides = [1, 1]} : vector<4x32xbf16> to vector<4x8xbf16>
    %cst_25 = arith.constant dense<0.000000e+00> : vector<4x4xf32>
    %54 = tpu.matmul %52, %53, %cst_25 {dimension_numbers = #tpu.dot_dimension_numbers<[1], [1], [0], [0], [0, 0, 1, 0], [], []>} : vector<4x8xbf16>, vector<4x8xbf16>, vector<4x4xf32> -> vector<4x4xf32>
    %cst_26 = arith.constant dense<0xFF800000> : vector<4xf32>
    %55 = vector.multi_reduction <maximumf>, %54, %cst_26 [1] : vector<4x4xf32> to vector<4xf32>
    %56 = vector.shape_cast %55 : vector<4xf32> to vector<4x1xf32>
    %57 = vector.broadcast %56 : vector<4x1xf32> to vector<4x4xf32>
    %58 = arith.subf %54, %57 : vector<4x4xf32>
    %59 = math.exp %58 : vector<4x4xf32>
    %cst_27 = arith.constant dense<0.000000e+00> : vector<4xf32>
    %60 = vector.multi_reduction <add>, %59, %cst_27 [1] : vector<4x4xf32> to vector<4xf32>
    %61 = vector.shape_cast %60 : vector<4xf32> to vector<4x1xf32>
    %62 = tpu.reciprocal %61 {approx = true} : vector<4x1xf32> -> vector<4x1xf32>
    %63 = vector.broadcast %62 : vector<4x1xf32> to vector<4x4xf32>
    %64 = arith.mulf %59, %63 : vector<4x4xf32>
    %65 = arith.truncf %64 : vector<4x4xf32> to vector<4x4xbf16>
    %66 = vector.extract_strided_slice %35 {offsets = [0, 8], sizes = [4, 8], strides = [1, 1]} : vector<4x32xbf16> to vector<4x8xbf16>
    %cst_28 = arith.constant dense<0.000000e+00> : vector<4x8xf32>
    %67 = tpu.matmul %65, %66, %cst_28 {dimension_numbers = #tpu.dot_dimension_numbers<[1], [0], [0], [1], [0, 0, 1, 1], [], []>} : vector<4x4xbf16>, vector<4x8xbf16>, vector<4x8xf32> -> vector<4x8xf32>
    %68 = vector.extract_strided_slice %33 {offsets = [0, 16], sizes = [4, 8], strides = [1, 1]} : vector<4x32xbf16> to vector<4x8xbf16>
    %69 = vector.extract_strided_slice %34 {offsets = [0, 16], sizes = [4, 8], strides = [1, 1]} : vector<4x32xbf16> to vector<4x8xbf16>
    %cst_29 = arith.constant dense<0.000000e+00> : vector<4x4xf32>
    %70 = tpu.matmul %68, %69, %cst_29 {dimension_numbers = #tpu.dot_dimension_numbers<[1], [1], [0], [0], [0, 0, 1, 0], [], []>} : vector<4x8xbf16>, vector<4x8xbf16>, vector<4x4xf32> -> vector<4x4xf32>
    %cst_30 = arith.constant dense<0xFF800000> : vector<4xf32>
    %71 = vector.multi_reduction <maximumf>, %70, %cst_30 [1] : vector<4x4xf32> to vector<4xf32>
    %72 = vector.shape_cast %71 : vector<4xf32> to vector<4x1xf32>
    %73 = vector.broadcast %72 : vector<4x1xf32> to vector<4x4xf32>
    %74 = arith.subf %70, %73 : vector<4x4xf32>
    %75 = math.exp %74 : vector<4x4xf32>
    %cst_31 = arith.constant dense<0.000000e+00> : vector<4xf32>
    %76 = vector.multi_reduction <add>, %75, %cst_31 [1] : vector<4x4xf32> to vector<4xf32>
    %77 = vector.shape_cast %76 : vector<4xf32> to vector<4x1xf32>
    %78 = tpu.reciprocal %77 {approx = true} : vector<4x1xf32> -> vector<4x1xf32>
    %79 = vector.broadcast %78 : vector<4x1xf32> to vector<4x4xf32>
    %80 = arith.mulf %75, %79 : vector<4x4xf32>
    %81 = arith.truncf %80 : vector<4x4xf32> to vector<4x4xbf16>
    %82 = vector.extract_strided_slice %35 {offsets = [0, 16], sizes = [4, 8], strides = [1, 1]} : vector<4x32xbf16> to vector<4x8xbf16>
    %cst_32 = arith.constant dense<0.000000e+00> : vector<4x8xf32>
    %83 = tpu.matmul %81, %82, %cst_32 {dimension_numbers = #tpu.dot_dimension_numbers<[1], [0], [0], [1], [0, 0, 1, 1], [], []>} : vector<4x4xbf16>, vector<4x8xbf16>, vector<4x8xf32> -> vector<4x8xf32>
    %84 = vector.extract_strided_slice %33 {offsets = [0, 24], sizes = [4, 8], strides = [1, 1]} : vector<4x32xbf16> to vector<4x8xbf16>
    %85 = vector.extract_strided_slice %34 {offsets = [0, 24], sizes = [4, 8], strides = [1, 1]} : vector<4x32xbf16> to vector<4x8xbf16>
    %cst_33 = arith.constant dense<0.000000e+00> : vector<4x4xf32>
    %86 = tpu.matmul %84, %85, %cst_33 {dimension_numbers = #tpu.dot_dimension_numbers<[1], [1], [0], [0], [0, 0, 1, 0], [], []>} : vector<4x8xbf16>, vector<4x8xbf16>, vector<4x4xf32> -> vector<4x4xf32>
    %cst_34 = arith.constant dense<0xFF800000> : vector<4xf32>
    %87 = vector.multi_reduction <maximumf>, %86, %cst_34 [1] : vector<4x4xf32> to vector<4xf32>
    %88 = vector.shape_cast %87 : vector<4xf32> to vector<4x1xf32>
    %89 = vector.broadcast %88 : vector<4x1xf32> to vector<4x4xf32>
    %90 = arith.subf %86, %89 : vector<4x4xf32>
    %91 = math.exp %90 : vector<4x4xf32>
    %cst_35 = arith.constant dense<0.000000e+00> : vector<4xf32>
    %92 = vector.multi_reduction <add>, %91, %cst_35 [1] : vector<4x4xf32> to vector<4xf32>
    %93 = vector.shape_cast %92 : vector<4xf32> to vector<4x1xf32>
    %94 = tpu.reciprocal %93 {approx = true} : vector<4x1xf32> -> vector<4x1xf32>
    %95 = vector.broadcast %94 : vector<4x1xf32> to vector<4x4xf32>
    %96 = arith.mulf %91, %95 : vector<4x4xf32>
    %97 = arith.truncf %96 : vector<4x4xf32> to vector<4x4xbf16>
    %98 = vector.extract_strided_slice %35 {offsets = [0, 24], sizes = [4, 8], strides = [1, 1]} : vector<4x32xbf16> to vector<4x8xbf16>
    %cst_36 = arith.constant dense<0.000000e+00> : vector<4x8xf32>
    %99 = tpu.matmul %97, %98, %cst_36 {dimension_numbers = #tpu.dot_dimension_numbers<[1], [0], [0], [1], [0, 0, 1, 1], [], []>} : vector<4x4xbf16>, vector<4x8xbf16>, vector<4x8xf32> -> vector<4x8xf32>
    %100 = tpu.concatenate %51, %67, %83, %99 in 1 : vector<4x8xf32>, vector<4x8xf32>, vector<4x8xf32>, vector<4x8xf32> -> vector<4x32xf32>
    %101 = arith.truncf %100 : vector<4x32xf32> to vector<4x32xbf16>
    %c0_37 = arith.constant 0 : index
    %c0_38 = arith.constant 0 : index
    %102 = vector.load %arg8[%c0_37, %c0_38] : memref<32x32xbf16, #tpu.memory_space<vmem>>, vector<32x32xbf16>
    %cst_39 = arith.constant dense<0.000000e+00> : vector<4x32xf32>
    %103 = tpu.matmul %101, %102, %cst_39 {dimension_numbers = #tpu.dot_dimension_numbers<[1], [0], [0], [1], [0, 0, 1, 1], [], []>} : vector<4x32xbf16>, vector<32x32xbf16>, vector<4x32xf32> -> vector<4x32xf32>
    %104 = arith.addf %1, %103 : vector<4x32xf32>
    %105 = arith.mulf %104, %104 : vector<4x32xf32>
    %cst_40 = arith.constant dense<0.000000e+00> : vector<4xf32>
    %106 = vector.multi_reduction <add>, %105, %cst_40 [1] : vector<4x32xf32> to vector<4xf32>
    %107 = vector.shape_cast %106 : vector<4xf32> to vector<4x1xf32>
    %cst_41 = arith.constant 3.200000e+01 : f32
    %108 = vector.broadcast %cst_41 : f32 to vector<4x1xf32>
    %109 = arith.divf %107, %108 : vector<4x1xf32>
    %cst_42 = arith.constant 9.99999997E-7 : f32
    %110 = vector.broadcast %cst_42 : f32 to vector<4x1xf32>
    %111 = arith.addf %109, %110 : vector<4x1xf32>
    %112 = math.rsqrt %111 : vector<4x1xf32>
    %113 = vector.broadcast %112 : vector<4x1xf32> to vector<4x32xf32>
    %114 = arith.mulf %104, %113 : vector<4x32xf32>
    %c0_43 = arith.constant 0 : index
    %c0_44 = arith.constant 0 : index
    %115 = vector.load %arg9[%c0_43, %c0_44] : memref<1x32xf32, #tpu.memory_space<vmem>>, vector<1x32xf32>
    %116 = vector.broadcast %115 : vector<1x32xf32> to vector<4x32xf32>
    %117 = arith.mulf %114, %116 : vector<4x32xf32>
    %118 = vector.shape_cast %2 : vector<1x6x32xbf16> to vector<6x32xbf16>
    %119 = arith.truncf %117 : vector<4x32xf32> to vector<4x32xbf16>
    %c0_45 = arith.constant 0 : index
    %c0_46 = arith.constant 0 : index
    %120 = vector.load %arg10[%c0_45, %c0_46] : memref<32x32xbf16, #tpu.memory_space<vmem>>, vector<32x32xbf16>
    %cst_47 = arith.constant dense<0.000000e+00> : vector<4x32xf32>
    %121 = tpu.matmul %119, %120, %cst_47 {dimension_numbers = #tpu.dot_dimension_numbers<[1], [0], [0], [1], [0, 0, 1, 1], [], []>} : vector<4x32xbf16>, vector<32x32xbf16>, vector<4x32xf32> -> vector<4x32xf32>
    %c0_48 = arith.constant 0 : index
    %c0_49 = arith.constant 0 : index
    %122 = vector.load %arg11[%c0_48, %c0_49] : memref<32x32xbf16, #tpu.memory_space<vmem>>, vector<32x32xbf16>
    %cst_50 = arith.constant dense<0.000000e+00> : vector<6x32xf32>
    %123 = tpu.matmul %118, %122, %cst_50 {dimension_numbers = #tpu.dot_dimension_numbers<[1], [0], [0], [1], [0, 0, 1, 1], [], []>} : vector<6x32xbf16>, vector<32x32xbf16>, vector<6x32xf32> -> vector<6x32xf32>
    %c0_51 = arith.constant 0 : index
    %c0_52 = arith.constant 0 : index
    %124 = vector.load %arg12[%c0_51, %c0_52] : memref<32x32xbf16, #tpu.memory_space<vmem>>, vector<32x32xbf16>
    %cst_53 = arith.constant dense<0.000000e+00> : vector<6x32xf32>
    %125 = tpu.matmul %118, %124, %cst_53 {dimension_numbers = #tpu.dot_dimension_numbers<[1], [0], [0], [1], [0, 0, 1, 1], [], []>} : vector<6x32xbf16>, vector<32x32xbf16>, vector<6x32xf32> -> vector<6x32xf32>
    %126 = arith.truncf %121 : vector<4x32xf32> to vector<4x32xbf16>
    %127 = vector.shape_cast %126 : vector<4x32xbf16> to vector<1x4x32xbf16>
    %128 = arith.truncf %123 : vector<6x32xf32> to vector<6x32xbf16>
    %129 = vector.shape_cast %128 : vector<6x32xbf16> to vector<1x6x32xbf16>
    %130 = arith.truncf %125 : vector<6x32xf32> to vector<6x32xbf16>
    %131 = vector.shape_cast %130 : vector<6x32xbf16> to vector<1x6x32xbf16>
    %132 = vector.shape_cast %127 : vector<1x4x32xbf16> to vector<4x32xbf16>
    %133 = vector.shape_cast %129 : vector<1x6x32xbf16> to vector<6x32xbf16>
    %134 = vector.shape_cast %131 : vector<1x6x32xbf16> to vector<6x32xbf16>
    %135 = vector.shape_cast %3 : vector<1x1x6xf32> to vector<1x6xf32>
    %136 = vector.shape_cast %135 : vector<1x6xf32> to vector<1x6xf32>
    %137 = vector.broadcast %136 : vector<1x6xf32> to vector<4x6xf32>
    %138 = vector.extract_strided_slice %132 {offsets = [0, 0], sizes = [4, 8], strides = [1, 1]} : vector<4x32xbf16> to vector<4x8xbf16>
    %139 = vector.extract_strided_slice %133 {offsets = [0, 0], sizes = [6, 8], strides = [1, 1]} : vector<6x32xbf16> to vector<6x8xbf16>
    %cst_54 = arith.constant dense<0.000000e+00> : vector<4x6xf32>
    %140 = tpu.matmul %138, %139, %cst_54 {dimension_numbers = #tpu.dot_dimension_numbers<[1], [1], [0], [0], [0, 0, 1, 0], [], []>} : vector<4x8xbf16>, vector<6x8xbf16>, vector<4x6xf32> -> vector<4x6xf32>
    %141 = arith.addf %140, %137 : vector<4x6xf32>
    %cst_55 = arith.constant dense<0xFF800000> : vector<4xf32>
    %142 = vector.multi_reduction <maximumf>, %141, %cst_55 [1] : vector<4x6xf32> to vector<4xf32>
    %143 = vector.shape_cast %142 : vector<4xf32> to vector<4x1xf32>
    %144 = vector.broadcast %143 : vector<4x1xf32> to vector<4x6xf32>
    %145 = arith.subf %141, %144 : vector<4x6xf32>
    %146 = math.exp %145 : vector<4x6xf32>
    %cst_56 = arith.constant dense<0.000000e+00> : vector<4xf32>
    %147 = vector.multi_reduction <add>, %146, %cst_56 [1] : vector<4x6xf32> to vector<4xf32>
    %148 = vector.shape_cast %147 : vector<4xf32> to vector<4x1xf32>
    %149 = tpu.reciprocal %148 {approx = true} : vector<4x1xf32> -> vector<4x1xf32>
    %150 = vector.broadcast %149 : vector<4x1xf32> to vector<4x6xf32>
    %151 = arith.mulf %146, %150 : vector<4x6xf32>
    %152 = arith.truncf %151 : vector<4x6xf32> to vector<4x6xbf16>
    %153 = vector.extract_strided_slice %134 {offsets = [0, 0], sizes = [6, 8], strides = [1, 1]} : vector<6x32xbf16> to vector<6x8xbf16>
    %cst_57 = arith.constant dense<0.000000e+00> : vector<4x8xf32>
    %154 = tpu.matmul %152, %153, %cst_57 {dimension_numbers = #tpu.dot_dimension_numbers<[1], [0], [0], [1], [0, 0, 1, 1], [], []>} : vector<4x6xbf16>, vector<6x8xbf16>, vector<4x8xf32> -> vector<4x8xf32>
    %155 = vector.extract_strided_slice %132 {offsets = [0, 8], sizes = [4, 8], strides = [1, 1]} : vector<4x32xbf16> to vector<4x8xbf16>
    %156 = vector.extract_strided_slice %133 {offsets = [0, 8], sizes = [6, 8], strides = [1, 1]} : vector<6x32xbf16> to vector<6x8xbf16>
    %cst_58 = arith.constant dense<0.000000e+00> : vector<4x6xf32>
    %157 = tpu.matmul %155, %156, %cst_58 {dimension_numbers = #tpu.dot_dimension_numbers<[1], [1], [0], [0], [0, 0, 1, 0], [], []>} : vector<4x8xbf16>, vector<6x8xbf16>, vector<4x6xf32> -> vector<4x6xf32>
    %158 = arith.addf %157, %137 : vector<4x6xf32>
    %cst_59 = arith.constant dense<0xFF800000> : vector<4xf32>
    %159 = vector.multi_reduction <maximumf>, %158, %cst_59 [1] : vector<4x6xf32> to vector<4xf32>
    %160 = vector.shape_cast %159 : vector<4xf32> to vector<4x1xf32>
    %161 = vector.broadcast %160 : vector<4x1xf32> to vector<4x6xf32>
    %162 = arith.subf %158, %161 : vector<4x6xf32>
    %163 = math.exp %162 : vector<4x6xf32>
    %cst_60 = arith.constant dense<0.000000e+00> : vector<4xf32>
    %164 = vector.multi_reduction <add>, %163, %cst_60 [1] : vector<4x6xf32> to vector<4xf32>
    %165 = vector.shape_cast %164 : vector<4xf32> to vector<4x1xf32>
    %166 = tpu.reciprocal %165 {approx = true} : vector<4x1xf32> -> vector<4x1xf32>
    %167 = vector.broadcast %166 : vector<4x1xf32> to vector<4x6xf32>
    %168 = arith.mulf %163, %167 : vector<4x6xf32>
    %169 = arith.truncf %168 : vector<4x6xf32> to vector<4x6xbf16>
    %170 = vector.extract_strided_slice %134 {offsets = [0, 8], sizes = [6, 8], strides = [1, 1]} : vector<6x32xbf16> to vector<6x8xbf16>
    %cst_61 = arith.constant dense<0.000000e+00> : vector<4x8xf32>
    %171 = tpu.matmul %169, %170, %cst_61 {dimension_numbers = #tpu.dot_dimension_numbers<[1], [0], [0], [1], [0, 0, 1, 1], [], []>} : vector<4x6xbf16>, vector<6x8xbf16>, vector<4x8xf32> -> vector<4x8xf32>
    %172 = vector.extract_strided_slice %132 {offsets = [0, 16], sizes = [4, 8], strides = [1, 1]} : vector<4x32xbf16> to vector<4x8xbf16>
    %173 = vector.extract_strided_slice %133 {offsets = [0, 16], sizes = [6, 8], strides = [1, 1]} : vector<6x32xbf16> to vector<6x8xbf16>
    %cst_62 = arith.constant dense<0.000000e+00> : vector<4x6xf32>
    %174 = tpu.matmul %172, %173, %cst_62 {dimension_numbers = #tpu.dot_dimension_numbers<[1], [1], [0], [0], [0, 0, 1, 0], [], []>} : vector<4x8xbf16>, vector<6x8xbf16>, vector<4x6xf32> -> vector<4x6xf32>
    %175 = arith.addf %174, %137 : vector<4x6xf32>
    %cst_63 = arith.constant dense<0xFF800000> : vector<4xf32>
    %176 = vector.multi_reduction <maximumf>, %175, %cst_63 [1] : vector<4x6xf32> to vector<4xf32>
    %177 = vector.shape_cast %176 : vector<4xf32> to vector<4x1xf32>
    %178 = vector.broadcast %177 : vector<4x1xf32> to vector<4x6xf32>
    %179 = arith.subf %175, %178 : vector<4x6xf32>
    %180 = math.exp %179 : vector<4x6xf32>
    %cst_64 = arith.constant dense<0.000000e+00> : vector<4xf32>
    %181 = vector.multi_reduction <add>, %180, %cst_64 [1] : vector<4x6xf32> to vector<4xf32>
    %182 = vector.shape_cast %181 : vector<4xf32> to vector<4x1xf32>
    %183 = tpu.reciprocal %182 {approx = true} : vector<4x1xf32> -> vector<4x1xf32>
    %184 = vector.broadcast %183 : vector<4x1xf32> to vector<4x6xf32>
    %185 = arith.mulf %180, %184 : vector<4x6xf32>
    %186 = arith.truncf %185 : vector<4x6xf32> to vector<4x6xbf16>
    %187 = vector.extract_strided_slice %134 {offsets = [0, 16], sizes = [6, 8], strides = [1, 1]} : vector<6x32xbf16> to vector<6x8xbf16>
    %cst_65 = arith.constant dense<0.000000e+00> : vector<4x8xf32>
    %188 = tpu.matmul %186, %187, %cst_65 {dimension_numbers = #tpu.dot_dimension_numbers<[1], [0], [0], [1], [0, 0, 1, 1], [], []>} : vector<4x6xbf16>, vector<6x8xbf16>, vector<4x8xf32> -> vector<4x8xf32>
    %189 = vector.extract_strided_slice %132 {offsets = [0, 24], sizes = [4, 8], strides = [1, 1]} : vector<4x32xbf16> to vector<4x8xbf16>
    %190 = vector.extract_strided_slice %133 {offsets = [0, 24], sizes = [6, 8], strides = [1, 1]} : vector<6x32xbf16> to vector<6x8xbf16>
    %cst_66 = arith.constant dense<0.000000e+00> : vector<4x6xf32>
    %191 = tpu.matmul %189, %190, %cst_66 {dimension_numbers = #tpu.dot_dimension_numbers<[1], [1], [0], [0], [0, 0, 1, 0], [], []>} : vector<4x8xbf16>, vector<6x8xbf16>, vector<4x6xf32> -> vector<4x6xf32>
    %192 = arith.addf %191, %137 : vector<4x6xf32>
    %cst_67 = arith.constant dense<0xFF800000> : vector<4xf32>
    %193 = vector.multi_reduction <maximumf>, %192, %cst_67 [1] : vector<4x6xf32> to vector<4xf32>
    %194 = vector.shape_cast %193 : vector<4xf32> to vector<4x1xf32>
    %195 = vector.broadcast %194 : vector<4x1xf32> to vector<4x6xf32>
    %196 = arith.subf %192, %195 : vector<4x6xf32>
    %197 = math.exp %196 : vector<4x6xf32>
    %cst_68 = arith.constant dense<0.000000e+00> : vector<4xf32>
    %198 = vector.multi_reduction <add>, %197, %cst_68 [1] : vector<4x6xf32> to vector<4xf32>
    %199 = vector.shape_cast %198 : vector<4xf32> to vector<4x1xf32>
    %200 = tpu.reciprocal %199 {approx = true} : vector<4x1xf32> -> vector<4x1xf32>
    %201 = vector.broadcast %200 : vector<4x1xf32> to vector<4x6xf32>
    %202 = arith.mulf %197, %201 : vector<4x6xf32>
    %203 = arith.truncf %202 : vector<4x6xf32> to vector<4x6xbf16>
    %204 = vector.extract_strided_slice %134 {offsets = [0, 24], sizes = [6, 8], strides = [1, 1]} : vector<6x32xbf16> to vector<6x8xbf16>
    %cst_69 = arith.constant dense<0.000000e+00> : vector<4x8xf32>
    %205 = tpu.matmul %203, %204, %cst_69 {dimension_numbers = #tpu.dot_dimension_numbers<[1], [0], [0], [1], [0, 0, 1, 1], [], []>} : vector<4x6xbf16>, vector<6x8xbf16>, vector<4x8xf32> -> vector<4x8xf32>
    %206 = tpu.concatenate %154, %171, %188, %205 in 1 : vector<4x8xf32>, vector<4x8xf32>, vector<4x8xf32>, vector<4x8xf32> -> vector<4x32xf32>
    %207 = arith.truncf %206 : vector<4x32xf32> to vector<4x32xbf16>
    %c0_70 = arith.constant 0 : index
    %c0_71 = arith.constant 0 : index
    %208 = vector.load %arg13[%c0_70, %c0_71] : memref<32x32xbf16, #tpu.memory_space<vmem>>, vector<32x32xbf16>
    %cst_72 = arith.constant dense<0.000000e+00> : vector<4x32xf32>
    %209 = tpu.matmul %207, %208, %cst_72 {dimension_numbers = #tpu.dot_dimension_numbers<[1], [0], [0], [1], [0, 0, 1, 1], [], []>} : vector<4x32xbf16>, vector<32x32xbf16>, vector<4x32xf32> -> vector<4x32xf32>
    %210 = arith.addf %104, %209 : vector<4x32xf32>
    %211 = arith.mulf %210, %210 : vector<4x32xf32>
    %cst_73 = arith.constant dense<0.000000e+00> : vector<4xf32>
    %212 = vector.multi_reduction <add>, %211, %cst_73 [1] : vector<4x32xf32> to vector<4xf32>
    %213 = vector.shape_cast %212 : vector<4xf32> to vector<4x1xf32>
    %cst_74 = arith.constant 3.200000e+01 : f32
    %214 = vector.broadcast %cst_74 : f32 to vector<4x1xf32>
    %215 = arith.divf %213, %214 : vector<4x1xf32>
    %cst_75 = arith.constant 9.99999997E-7 : f32
    %216 = vector.broadcast %cst_75 : f32 to vector<4x1xf32>
    %217 = arith.addf %215, %216 : vector<4x1xf32>
    %218 = math.rsqrt %217 : vector<4x1xf32>
    %219 = vector.broadcast %218 : vector<4x1xf32> to vector<4x32xf32>
    %220 = arith.mulf %210, %219 : vector<4x32xf32>
    %c0_76 = arith.constant 0 : index
    %c0_77 = arith.constant 0 : index
    %221 = vector.load %arg14[%c0_76, %c0_77] : memref<1x32xf32, #tpu.memory_space<vmem>>, vector<1x32xf32>
    %222 = vector.broadcast %221 : vector<1x32xf32> to vector<4x32xf32>
    %223 = arith.mulf %220, %222 : vector<4x32xf32>
    %224 = arith.truncf %223 : vector<4x32xf32> to vector<4x32xbf16>
    %c0_78 = arith.constant 0 : index
    %c0_79 = arith.constant 0 : index
    %225 = vector.load %arg15[%c0_78, %c0_79] : memref<32x128xbf16, #tpu.memory_space<vmem>>, vector<32x128xbf16>
    %cst_80 = arith.constant dense<0.000000e+00> : vector<4x128xf32>
    %226 = tpu.matmul %224, %225, %cst_80 {dimension_numbers = #tpu.dot_dimension_numbers<[1], [0], [0], [1], [0, 0, 1, 1], [], []>} : vector<4x32xbf16>, vector<32x128xbf16>, vector<4x128xf32> -> vector<4x128xf32>
    %227 = vector.extract_strided_slice %226 {offsets = [0, 0], sizes = [4, 64], strides = [1, 1]} : vector<4x128xf32> to vector<4x64xf32>
    %228 = vector.extract_strided_slice %226 {offsets = [0, 64], sizes = [4, 64], strides = [1, 1]} : vector<4x128xf32> to vector<4x64xf32>
    %cst_81 = arith.constant 5.000000e-01 : f32
    %229 = vector.broadcast %cst_81 : f32 to vector<4x64xf32>
    %230 = arith.mulf %229, %227 : vector<4x64xf32>
    %cst_82 = arith.constant 4.471500e-02 : f32
    %231 = vector.broadcast %cst_82 : f32 to vector<4x64xf32>
    %232 = arith.mulf %231, %227 : vector<4x64xf32>
    %233 = arith.mulf %232, %227 : vector<4x64xf32>
    %234 = arith.mulf %233, %227 : vector<4x64xf32>
    %235 = arith.addf %227, %234 : vector<4x64xf32>
    %cst_83 = arith.constant 0.797884583 : f32
    %236 = vector.broadcast %cst_83 : f32 to vector<4x64xf32>
    %237 = arith.mulf %236, %235 : vector<4x64xf32>
    %238 = math.tanh %237 : vector<4x64xf32>
    %cst_84 = arith.constant 1.000000e+00 : f32
    %239 = vector.broadcast %cst_84 : f32 to vector<4x64xf32>
    %240 = arith.addf %239, %238 : vector<4x64xf32>
    %241 = arith.mulf %230, %240 : vector<4x64xf32>
    %242 = arith.mulf %241, %228 : vector<4x64xf32>
    %243 = arith.truncf %242 : vector<4x64xf32> to vector<4x64xbf16>
    %c0_85 = arith.constant 0 : index
    %c0_86 = arith.constant 0 : index
    %244 = vector.load %arg16[%c0_85, %c0_86] : memref<64x32xbf16, #tpu.memory_space<vmem>>, vector<64x32xbf16>
    %cst_87 = arith.constant dense<0.000000e+00> : vector<4x32xf32>
    %245 = tpu.matmul %243, %244, %cst_87 {dimension_numbers = #tpu.dot_dimension_numbers<[1], [0], [0], [1], [0, 0, 1, 1], [], []>} : vector<4x64xbf16>, vector<64x32xbf16>, vector<4x32xf32> -> vector<4x32xf32>
    %246 = arith.addf %210, %245 : vector<4x32xf32>
    %247 = vector.shape_cast %246 : vector<4x32xf32> to vector<1x4x32xf32>
    %c0_88 = arith.constant 0 : index
    %c0_89 = arith.constant 0 : index
    %c0_90 = arith.constant 0 : index
    %248 = vector.load %arg17[%c0_88, %c0_89, %c0_90] : memref<1x4x32xf32, #tpu.memory_space<vmem>>, vector<1x4x32xf32>
    tpu.vector_store %arg17[%c0_88, %c0_89, %c0_90], %247 {strides = array<i32>} : memref<1x4x32xf32, #tpu.memory_space<vmem>>, vector<1x4x32xf32>,
    return
  }
  func.func @transform_0(%arg0: i32) -> (i32, i32, i32) {
    %c0_i32 = arith.constant 0 : i32
    %c0_i32_0 = arith.constant 0 : i32
    %c0_i32_1 = arith.constant 0 : i32
    return %arg0, %c0_i32, %c0_i32_0 : i32, i32, i32
  }
  func.func @transform_1(%arg0: i32) -> (i32, i32, i32) {
    %c0_i32 = arith.constant 0 : i32
    %c0_i32_0 = arith.constant 0 : i32
    %c0_i32_1 = arith.constant 0 : i32
    return %arg0, %c0_i32, %c0_i32_0 : i32, i32, i32
  }
  func.func @transform_2(%arg0: i32) -> (i32, i32, i32) {
    %c0_i32 = arith.constant 0 : i32
    %c0_i32_0 = arith.constant 0 : i32
    %c0_i32_1 = arith.constant 0 : i32
    return %arg0, %c0_i32, %c0_i32_0 : i32, i32, i32
  }
  func.func @transform_3(%arg0: i32) -> (i32, i32) {
    %c0_i32 = arith.constant 0 : i32
    %c0_i32_0 = arith.constant 0 : i32
    %c0_i32_1 = arith.constant 0 : i32
    return %c0_i32, %c0_i32_0 : i32, i32
  }
  func.func @transform_4(%arg0: i32) -> (i32, i32) {
    %c0_i32 = arith.constant 0 : i32
    %c0_i32_0 = arith.constant 0 : i32
    %c0_i32_1 = arith.constant 0 : i32
    return %c0_i32, %c0_i32_0 : i32, i32
  }
  func.func @transform_5(%arg0: i32) -> (i32, i32) {
    %c0_i32 = arith.constant 0 : i32
    %c0_i32_0 = arith.constant 0 : i32
    %c0_i32_1 = arith.constant 0 : i32
    return %c0_i32, %c0_i32_0 : i32, i32
  }
  func.func @transform_6(%arg0: i32) -> (i32, i32) {
    %c0_i32 = arith.constant 0 : i32
    %c0_i32_0 = arith.constant 0 : i32
    %c0_i32_1 = arith.constant 0 : i32
    return %c0_i32, %c0_i32_0 : i32, i32
  }
  func.func @transform_7(%arg0: i32) -> (i32, i32) {
    %c0_i32 = arith.constant 0 : i32
    %c0_i32_0 = arith.constant 0 : i32
    %c0_i32_1 = arith.constant 0 : i32
    return %c0_i32, %c0_i32_0 : i32, i32
  }
  func.func @transform_8(%arg0: i32) -> (i32, i32) {
    %c0_i32 = arith.constant 0 : i32
    %c0_i32_0 = arith.constant 0 : i32
    %c0_i32_1 = arith.constant 0 : i32
    return %c0_i32, %c0_i32_0 : i32, i32
  }
  func.func @transform_9(%arg0: i32) -> (i32, i32) {
    %c0_i32 = arith.constant 0 : i32
    %c0_i32_0 = arith.constant 0 : i32
    %c0_i32_1 = arith.constant 0 : i32
    return %c0_i32, %c0_i32_0 : i32, i32
  }
  func.func @transform_10(%arg0: i32) -> (i32, i32) {
    %c0_i32 = arith.constant 0 : i32
    %c0_i32_0 = arith.constant 0 : i32
    %c0_i32_1 = arith.constant 0 : i32
    return %c0_i32, %c0_i32_0 : i32, i32
  }
  func.func @transform_11(%arg0: i32) -> (i32, i32) {
    %c0_i32 = arith.constant 0 : i32
    %c0_i32_0 = arith.constant 0 : i32
    %c0_i32_1 = arith.constant 0 : i32
    return %c0_i32, %c0_i32_0 : i32, i32
  }
  func.func @transform_12(%arg0: i32) -> (i32, i32) {
    %c0_i32 = arith.constant 0 : i32
    %c0_i32_0 = arith.constant 0 : i32
    %c0_i32_1 = arith.constant 0 : i32
    return %c0_i32, %c0_i32_0 : i32, i32
  }
  func.func @transform_13(%arg0: i32) -> (i32, i32) {
    %c0_i32 = arith.constant 0 : i32
    %c0_i32_0 = arith.constant 0 : i32
    %c0_i32_1 = arith.constant 0 : i32
    return %c0_i32, %c0_i32_0 : i32, i32
  }
  func.func @transform_14(%arg0: i32) -> (i32, i32) {
    %c0_i32 = arith.constant 0 : i32
    %c0_i32_0 = arith.constant 0 : i32
    %c0_i32_1 = arith.constant 0 : i32
    return %c0_i32, %c0_i32_0 : i32, i32
  }
  func.func @transform_15(%arg0: i32) -> (i32, i32) {
    %c0_i32 = arith.constant 0 : i32
    %c0_i32_0 = arith.constant 0 : i32
    %c0_i32_1 = arith.constant 0 : i32
    return %c0_i32, %c0_i32_0 : i32, i32
  }
  func.func @transform_16(%arg0: i32) -> (i32, i32, i32) {
    %c0_i32 = arith.constant 0 : i32
    %c0_i32_0 = arith.constant 0 : i32
    %c0_i32_1 = arith.constant 0 : i32
    return %arg0, %c0_i32, %c0_i32_0 : i32, i32, i32
  }
}

</mosaic_0001>

<llo_original>
// kernel: tpu_custom_call.1
$region0: #{tpu_custom_call.1}
  #allocation0 [shape = 'u32[]', space=smem, size = 0x4, offset = 0x4, fixed_abs, tag = 'smem constant byte address 0x4 - core index']
  #allocation1 [shape = 'u32[72,128]{1,0:T(1,128)}', space=vmem, size = 0x9000, scoped, tag = 'internal scratch']
  %s0 = inlined_call_operand.vmem [shape: f32[2,4,32], index: 0, kind: input, shape index: {}]
  %s1 = inlined_call_operand.vmem [shape: bf16[2,6,32], index: 1, kind: input, shape index: {}]
  %s2 = inlined_call_operand.vmem [shape: f32[2,1,6], index: 2, kind: input, shape index: {}]
  %s3 = inlined_call_operand.vmem [shape: f32[1,32], index: 3, kind: input, shape index: {}]
  %s4 = inlined_call_operand.vmem [shape: bf16[32,32], index: 4, kind: input, shape index: {}]
  %s5 = inlined_call_operand.vmem [shape: bf16[32,32], index: 5, kind: input, shape index: {}]
  %s6 = inlined_call_operand.vmem [shape: bf16[32,32], index: 6, kind: input, shape index: {}]
  %s7 = inlined_call_operand.hbm [shape: bf16[32,32], index: 7, kind: input, shape index: {}]
  %s8 = inlined_call_operand.vmem [shape: f32[1,32], index: 8, kind: input, shape index: {}]
  %s9 = inlined_call_operand.hbm [shape: bf16[32,32], index: 9, kind: input, shape index: {}]
  %s10 = inlined_call_operand.hbm [shape: bf16[32,32], index: 10, kind: input, shape index: {}]
  %s11 = inlined_call_operand.hbm [shape: bf16[32,32], index: 11, kind: input, shape index: {}]
  %s12 = inlined_call_operand.hbm [shape: bf16[32,32], index: 12, kind: input, shape index: {}]
  %s13 = inlined_call_operand.hbm [shape: f32[1,32], index: 13, kind: input, shape index: {}]
  %s14 = inlined_call_operand.hbm [shape: bf16[32,128], index: 14, kind: input, shape index: {}]
  %s15 = inlined_call_operand.vmem [shape: bf16[64,32], index: 15, kind: input, shape index: {}]
  %s16 = inlined_call_operand.hbm [shape: f32[2,4,32], index: 16, kind: output, shape index: {}]
  %s17 = sld [smem:[#allocation0]]
  $region125: #{tpu_custom_call.1} parent=0
    _
  %s19 = ssub.s32 1, %s17
  %s20 = scalar_select 0, %s19, %s17
  $region1: #{tpu_custom_call.1} parent=0
    #allocation2 [shape = 'u8[8192]{0}', space=vmem, size = 0x2000, scoped, tag = 'input window, operand 7, single buffered']
    #allocation3 [shape = 's32[2]{0}', space=sflag, size = 0x8, scoped, tag = 'scoped memory for tpu_custom_call.1']
    #allocation4 [shape = 's32[2]{0}', space=sflag, size = 0x8, scoped, tag = 'scoped memory for tpu_custom_call.1']
    #allocation5 [shape = 'u8[8192]{0}', space=vmem, size = 0x2000, scoped, tag = 'input window, operand 9, single buffered']
    #allocation6 [shape = 's32[1]{0}', space=sflag, size = 0x4, scoped, tag = 'scoped memory for tpu_custom_call.1']
    #allocation7 [shape = 'u8[8192]{0}', space=vmem, size = 0x2000, scoped, tag = 'input window, operand 10, single buffered']
    #allocation8 [shape = 'u8[8192]{0}', space=vmem, size = 0x2000, scoped, tag = 'input window, operand 11, single buffered']
    #allocation9 [shape = 's32[1]{0}', space=sflag, size = 0x4, scoped, tag = 'scoped memory for tpu_custom_call.1']
    #allocation10 [shape = 'u8[8192]{0}', space=vmem, size = 0x2000, scoped, tag = 'input window, operand 12, single buffered']
    #allocation11 [shape = 'u8[512]{0}', space=vmem, size = 0x400, scoped, tag = 'input window, operand 13, single buffered']
    #allocation12 [shape = 's32[1]{0}', space=sflag, size = 0x4, scoped, tag = 'scoped memory for tpu_custom_call.1']
    #allocation13 [shape = 'u8[8192]{0}', space=vmem, size = 0x2000, scoped, tag = 'input window, operand 14, single buffered']
    #allocation14 [shape = 'u8[4096]{0}', space=vmem, size = 0x1000, scoped, tag = 'output window, operand 0']
    %21 = vsyncpa [#allocation3], 0
    %22 = vsyncpa [#allocation6], 0
    %23 = vsyncpa [#allocation9], 0
    %24 = vsyncpa [#allocation12], 0
    %25 = vsyncpa [#allocation4], 0
    %s26 = scalar_lea.sflag [#allocation4], 1
    %27 = vsyncpa %s26, 0
    loop: start=0, step=1, limit=4
    $region2: #{tpu_custom_call.1} parent=1 // loop_pre_header
      _
    $region3: #{tpu_custom_call.1} parent=1 // loop_header
      %s29 = sphi 0, %s33
      %p30 = scmp.ge.s32.totalorder %s29, 4
      %s39 = sphi 0, %s41
      %s42 = sphi 0, %s39
      %s43 = sphi 0, %s42
      %s59 = sphi 0, %s43
      %s65 = sphi 0, %s67
      %s68 = sphi 0, %s65
      %s69 = sphi 0, %s68
      %s85 = sphi 0, %s69
      %s91 = sphi 0, %s93
      %s94 = sphi 0, %s91
      %s95 = sphi 0, %s94
      %s111 = sphi 0, %s95
      %s115 = sphi 0, %s115
      %s117 = sphi 0, %s115
      %s118 = sphi 0, %s117
      %s132 = sphi 0, %s118
      %s136 = sphi 0, %s136
      %s138 = sphi 0, %s136
      %s139 = sphi 0, %s138
      %s153 = sphi 0, %s139
      %s157 = sphi 0, %s157
      %s159 = sphi 0, %s157
      %s160 = sphi 0, %s159
      %s174 = sphi 0, %s160
      %s178 = sphi 0, %s178
      %s180 = sphi 0, %s178
      %s181 = sphi 0, %s180
      %s195 = sphi 0, %s181
      %s199 = sphi 0, %s199
      %s201 = sphi 0, %s199
      %s202 = sphi 0, %s201
      %s216 = sphi 0, %s202
      %s220 = sphi 0, %s220
      %s222 = sphi 0, %s220
      %s223 = sphi 0, %s222
      %s237 = sphi 0, %s223
      %s241 = sphi 0, %s241
      %s243 = sphi 0, %s241
      %s244 = sphi 0, %s243
      %s258 = sphi 0, %s244
      %s262 = sphi 0, %s262
      %s264 = sphi 0, %s262
      %s265 = sphi 0, %s264
      %s279 = sphi 0, %s265
      %s283 = sphi 0, %s283
      %s285 = sphi 0, %s283
      %s286 = sphi 0, %s285
      %s300 = sphi 0, %s286
      %s304 = sphi 0, %s304
      %s306 = sphi 0, %s304
      %s307 = sphi 0, %s306
      %s321 = sphi 0, %s307
      %s325 = sphi 0, %s325
      %s327 = sphi 0, %s325
      %s328 = sphi 0, %s327
      %s342 = sphi 0, %s328
      %s346 = sphi 0, %s346
      %s348 = sphi 0, %s346
      %s349 = sphi 0, %s348
      %s363 = sphi 0, %s349
      %s367 = sphi 0, %s367
      %s369 = sphi 0, %s367
      %s370 = sphi 0, %s369
      %s384 = sphi 0, %s370
      %s390 = sphi 0, %s392
      %s393 = sphi 0, %s390
      %s394 = sphi 0, %s393
      %s410 = sphi 0, %s394
    $region4: #{tpu_custom_call.1} parent=1 // loop_header_branch
      %32 = sbr.rel (%p30) target = $region8
    $region5: #{tpu_custom_call.1} parent=1 // loop_body
      %s34 = ssub.s32 %s29, 1
      %s35 = ssub.s32 %s29, 2
      %s36 = sadd.s32 %s29, 1
      %s37 = ssub.s32 %s29, %s36
      %p38 = scmp.eq.s32.totalorder %s37, 0
      %s40 = sadd.s32 %s39, 1
      %s41 = scalar_select %p38, %s39, %s40
      %p44 = pneg %p38
      %p45 = scmp.eq.s32.totalorder %s29, 1
      %p46 = por %p44, %p45
      %p47 = scmp.ne.s32.totalorder %s39, %s42
      %p48 = scmp.eq.s32.totalorder %s29, 0
      %p49 = por %p47, %p48
      %p50 = scmp.ne.s32.totalorder %s39, %s42
      %p51 = scmp.eq.s32.totalorder %s34, 1
      %p52 = por %p50, %p51
      %p53 = scmp.ne.s32.totalorder %s42, %s43
      %p54 = scmp.eq.s32.totalorder %s34, 0
      %p55 = por %p53, %p54
      %p56 = scmp.ne.s32.totalorder %s42, %s43
      %p57 = scmp.eq.s32.totalorder %s35, 1
      %p58 = por %p56, %p57
      %p60 = scmp.ne.s32.totalorder %s43, %s59
      %p61 = scmp.eq.s32.totalorder %s35, 0
      %p62 = por %p60, %p61
      %s63 = ssub.s32 %s29, %s36
      %p64 = scmp.eq.s32.totalorder %s63, 0
      %s66 = sadd.s32 %s65, 1
      %s67 = scalar_select %p64, %s65, %s66
      %p70 = pneg %p64
      %p71 = scmp.eq.s32.totalorder %s29, 1
      %p72 = por %p70, %p71
      %p73 = scmp.ne.s32.totalorder %s65, %s68
      %p74 = scmp.eq.s32.totalorder %s29, 0
      %p75 = por %p73, %p74
      %p76 = scmp.ne.s32.totalorder %s65, %s68
      %p77 = scmp.eq.s32.totalorder %s34, 1
      %p78 = por %p76, %p77
      %p79 = scmp.ne.s32.totalorder %s68, %s69
      %p80 = scmp.eq.s32.totalorder %s34, 0
      %p81 = por %p79, %p80
      %p82 = scmp.ne.s32.totalorder %s68, %s69
      %p83 = scmp.eq.s32.totalorder %s35, 1
      %p84 = por %p82, %p83
      %p86 = scmp.ne.s32.totalorder %s69, %s85
      %p87 = scmp.eq.s32.totalorder %s35, 0
      %p88 = por %p86, %p87
      %s89 = ssub.s32 %s29, %s36
      %p90 = scmp.eq.s32.totalorder %s89, 0
      %s92 = sadd.s32 %s91, 1
      %s93 = scalar_select %p90, %s91, %s92
      %p96 = pneg %p90
      %p97 = scmp.eq.s32.totalorder %s29, 1
      %p98 = por %p96, %p97
      %p99 = scmp.ne.s32.totalorder %s91, %s94
      %p100 = scmp.eq.s32.totalorder %s29, 0
      %p101 = por %p99, %p100
      %p102 = scmp.ne.s32.totalorder %s91, %s94
      %p103 = scmp.eq.s32.totalorder %s34, 1
      %p104 = por %p102, %p103
      %p105 = scmp.ne.s32.totalorder %s94, %s95
      %p106 = scmp.eq.s32.totalorder %s34, 0
      %p107 = por %p105, %p106
      %p108 = scmp.ne.s32.totalorder %s94, %s95
      %p109 = scmp.eq.s32.totalorder %s35, 1
      %p110 = por %p108, %p109
      %p112 = scmp.ne.s32.totalorder %s95, %s111
      %p113 = scmp.eq.s32.totalorder %s35, 0
      %p114 = por %p112, %p113
      %s116 = sadd.s32 %s115, 1
      %p119 = scmp.eq.s32.totalorder %s29, 1
      %p120 = scmp.ne.s32.totalorder %s115, %s117
      %p121 = scmp.eq.s32.totalorder %s29, 0
      %p122 = por %p120, %p121
      %p123 = scmp.ne.s32.totalorder %s115, %s117
      %p124 = scmp.eq.s32.totalorder %s34, 1
      %p125 = por %p123, %p124
      %p126 = scmp.ne.s32.totalorder %s117, %s118
      %p127 = scmp.eq.s32.totalorder %s34, 0
      %p128 = por %p126, %p127
      %p129 = scmp.ne.s32.totalorder %s117, %s118
      %p130 = scmp.eq.s32.totalorder %s35, 1
      %p131 = por %p129, %p130
      %p133 = scmp.ne.s32.totalorder %s118, %s132
      %p134 = scmp.eq.s32.totalorder %s35, 0
      %p135 = por %p133, %p134
      %s137 = sadd.s32 %s136, 1
      %p140 = scmp.eq.s32.totalorder %s29, 1
      %p141 = scmp.ne.s32.totalorder %s136, %s138
      %p142 = scmp.eq.s32.totalorder %s29, 0
      %p143 = por %p141, %p142
      %p144 = scmp.ne.s32.totalorder %s136, %s138
      %p145 = scmp.eq.s32.totalorder %s34, 1
      %p146 = por %p144, %p145
      %p147 = scmp.ne.s32.totalorder %s138, %s139
      %p148 = scmp.eq.s32.totalorder %s34, 0
      %p149 = por %p147, %p148
      %p150 = scmp.ne.s32.totalorder %s138, %s139
      %p151 = scmp.eq.s32.totalorder %s35, 1
      %p152 = por %p150, %p151
      %p154 = scmp.ne.s32.totalorder %s139, %s153
      %p155 = scmp.eq.s32.totalorder %s35, 0
      %p156 = por %p154, %p155
      %s158 = sadd.s32 %s157, 1
      %p161 = scmp.eq.s32.totalorder %s29, 1
      %p162 = scmp.ne.s32.totalorder %s157, %s159
      %p163 = scmp.eq.s32.totalorder %s29, 0
      %p164 = por %p162, %p163
      %p165 = scmp.ne.s32.totalorder %s157, %s159
      %p166 = scmp.eq.s32.totalorder %s34, 1
      %p167 = por %p165, %p166
      %p168 = scmp.ne.s32.totalorder %s159, %s160
      %p169 = scmp.eq.s32.totalorder %s34, 0
      %p170 = por %p168, %p169
      %p171 = scmp.ne.s32.totalorder %s159, %s160
      %p172 = scmp.eq.s32.totalorder %s35, 1
      %p173 = por %p171, %p172
      %p175 = scmp.ne.s32.totalorder %s160, %s174
      %p176 = scmp.eq.s32.totalorder %s35, 0
      %p177 = por %p175, %p176
      %s179 = sadd.s32 %s178, 1
      %p182 = scmp.eq.s32.totalorder %s29, 1
      %p183 = scmp.ne.s32.totalorder %s178, %s180
      %p184 = scmp.eq.s32.totalorder %s29, 0
      %p185 = por %p183, %p184
      %p186 = scmp.ne.s32.totalorder %s178, %s180
      %p187 = scmp.eq.s32.totalorder %s34, 1
      %p188 = por %p186, %p187
      %p189 = scmp.ne.s32.totalorder %s180, %s181
      %p190 = scmp.eq.s32.totalorder %s34, 0
      %p191 = por %p189, %p190
      %p192 = scmp.ne.s32.totalorder %s180, %s181
      %p193 = scmp.eq.s32.totalorder %s35, 1
      %p194 = por %p192, %p193
      %p196 = scmp.ne.s32.totalorder %s181, %s195
      %p197 = scmp.eq.s32.totalorder %s35, 0
      %p198 = por %p196, %p197
      %s200 = sadd.s32 %s199, 1
      %p203 = scmp.eq.s32.totalorder %s29, 1
      %p204 = scmp.ne.s32.totalorder %s199, %s201
      %p205 = scmp.eq.s32.totalorder %s29, 0
      %p206 = por %p204, %p205
      %p207 = scmp.ne.s32.totalorder %s199, %s201
      %p208 = scmp.eq.s32.totalorder %s34, 1
      %p209 = por %p207, %p208
      %p210 = scmp.ne.s32.totalorder %s201, %s202
      %p211 = scmp.eq.s32.totalorder %s34, 0
      %p212 = por %p210, %p211
      %p213 = scmp.ne.s32.totalorder %s201, %s202
      %p214 = scmp.eq.s32.totalorder %s35, 1
      %p215 = por %p213, %p214
      %p217 = scmp.ne.s32.totalorder %s202, %s216
      %p218 = scmp.eq.s32.totalorder %s35, 0
      %p219 = por %p217, %p218
      %s221 = sadd.s32 %s220, 1
      %p224 = scmp.eq.s32.totalorder %s29, 1
      %p225 = scmp.ne.s32.totalorder %s220, %s222
      %p226 = scmp.eq.s32.totalorder %s29, 0
      %p227 = por %p225, %p226
      %p228 = scmp.ne.s32.totalorder %s220, %s222
      %p229 = scmp.eq.s32.totalorder %s34, 1
      %p230 = por %p228, %p229
      %p231 = scmp.ne.s32.totalorder %s222, %s223
      %p232 = scmp.eq.s32.totalorder %s34, 0
      %p233 = por %p231, %p232
      %p234 = scmp.ne.s32.totalorder %s222, %s223
      %p235 = scmp.eq.s32.totalorder %s35, 1
      %p236 = por %p234, %p235
      %p238 = scmp.ne.s32.totalorder %s223, %s237
      %p239 = scmp.eq.s32.totalorder %s35, 0
      %p240 = por %p238, %p239
      %s242 = sadd.s32 %s241, 1
      %p245 = scmp.eq.s32.totalorder %s29, 1
      %p246 = scmp.ne.s32.totalorder %s241, %s243
      %p247 = scmp.eq.s32.totalorder %s29, 0
      %p248 = por %p246, %p247
      %p249 = scmp.ne.s32.totalorder %s241, %s243
      %p250 = scmp.eq.s32.totalorder %s34, 1
      %p251 = por %p249, %p250
      %p252 = scmp.ne.s32.totalorder %s243, %s244
      %p253 = scmp.eq.s32.totalorder %s34, 0
      %p254 = por %p252, %p253
      %p255 = scmp.ne.s32.totalorder %s243, %s244
      %p256 = scmp.eq.s32.totalorder %s35, 1
      %p257 = por %p255, %p256
      %p259 = scmp.ne.s32.totalorder %s244, %s258
      %p260 = scmp.eq.s32.totalorder %s35, 0
      %p261 = por %p259, %p260
      %s263 = sadd.s32 %s262, 1
      %p266 = scmp.eq.s32.totalorder %s29, 1
      %p267 = scmp.ne.s32.totalorder %s262, %s264
      %p268 = scmp.eq.s32.totalorder %s29, 0
      %p269 = por %p267, %p268
      %p270 = scmp.ne.s32.totalorder %s262, %s264
      %p271 = scmp.eq.s32.totalorder %s34, 1
      %p272 = por %p270, %p271
      %p273 = scmp.ne.s32.totalorder %s264, %s265
      %p274 = scmp.eq.s32.totalorder %s34, 0
      %p275 = por %p273, %p274
      %p276 = scmp.ne.s32.totalorder %s264, %s265
      %p277 = scmp.eq.s32.totalorder %s35, 1
      %p278 = por %p276, %p277
      %p280 = scmp.ne.s32.totalorder %s265, %s279
      %p281 = scmp.eq.s32.totalorder %s35, 0
      %p282 = por %p280, %p281
      %s284 = sadd.s32 %s283, 1
      %p287 = scmp.eq.s32.totalorder %s29, 1
      %p288 = scmp.ne.s32.totalorder %s283, %s285
      %p289 = scmp.eq.s32.totalorder %s29, 0
      %p290 = por %p288, %p289
      %p291 = scmp.ne.s32.totalorder %s283, %s285
      %p292 = scmp.eq.s32.totalorder %s34, 1
      %p293 = por %p291, %p292
      %p294 = scmp.ne.s32.totalorder %s285, %s286
      %p295 = scmp.eq.s32.totalorder %s34, 0
      %p296 = por %p294, %p295
      %p297 = scmp.ne.s32.totalorder %s285, %s286
      %p298 = scmp.eq.s32.totalorder %s35, 1
      %p299 = por %p297, %p298
      %p301 = scmp.ne.s32.totalorder %s286, %s300
      %p302 = scmp.eq.s32.totalorder %s35, 0
      %p303 = por %p301, %p302
      %s305 = sadd.s32 %s304, 1
      %p308 = scmp.eq.s32.totalorder %s29, 1
      %p309 = scmp.ne.s32.totalorder %s304, %s306
      %p310 = scmp.eq.s32.totalorder %s29, 0
      %p311 = por %p309, %p310
      %p312 = scmp.ne.s32.totalorder %s304, %s306
      %p313 = scmp.eq.s32.totalorder %s34, 1
      %p314 = por %p312, %p313
      %p315 = scmp.ne.s32.totalorder %s306, %s307
      %p316 = scmp.eq.s32.totalorder %s34, 0
      %p317 = por %p315, %p316
      %p318 = scmp.ne.s32.totalorder %s306, %s307
      %p319 = scmp.eq.s32.totalorder %s35, 1
      %p320 = por %p318, %p319
      %p322 = scmp.ne.s32.totalorder %s307, %s321
      %p323 = scmp.eq.s32.totalorder %s35, 0
      %p324 = por %p322, %p323
      %s326 = sadd.s32 %s325, 1
      %p329 = scmp.eq.s32.totalorder %s29, 1
      %p330 = scmp.ne.s32.totalorder %s325, %s327
      %p331 = scmp.eq.s32.totalorder %s29, 0
      %p332 = por %p330, %p331
      %p333 = scmp.ne.s32.totalorder %s325, %s327
      %p334 = scmp.eq.s32.totalorder %s34, 1
      %p335 = por %p333, %p334
      %p336 = scmp.ne.s32.totalorder %s327, %s328
      %p337 = scmp.eq.s32.totalorder %s34, 0
      %p338 = por %p336, %p337
      %p339 = scmp.ne.s32.totalorder %s327, %s328
      %p340 = scmp.eq.s32.totalorder %s35, 1
      %p341 = por %p339, %p340
      %p343 = scmp.ne.s32.totalorder %s328, %s342
      %p344 = scmp.eq.s32.totalorder %s35, 0
      %p345 = por %p343, %p344
      %s347 = sadd.s32 %s346, 1
      %p350 = scmp.eq.s32.totalorder %s29, 1
      %p351 = scmp.ne.s32.totalorder %s346, %s348
      %p352 = scmp.eq.s32.totalorder %s29, 0
      %p353 = por %p351, %p352
      %p354 = scmp.ne.s32.totalorder %s346, %s348
      %p355 = scmp.eq.s32.totalorder %s34, 1
      %p356 = por %p354, %p355
      %p357 = scmp.ne.s32.totalorder %s348, %s349
      %p358 = scmp.eq.s32.totalorder %s34, 0
      %p359 = por %p357, %p358
      %p360 = scmp.ne.s32.totalorder %s348, %s349
      %p361 = scmp.eq.s32.totalorder %s35, 1
      %p362 = por %p360, %p361
      %p364 = scmp.ne.s32.totalorder %s349, %s363
      %p365 = scmp.eq.s32.totalorder %s35, 0
      %p366 = por %p364, %p365
      %s368 = sadd.s32 %s367, 1
      %p371 = scmp.eq.s32.totalorder %s29, 1
      %p372 = scmp.ne.s32.totalorder %s367, %s369
      %p373 = scmp.eq.s32.totalorder %s29, 0
      %p374 = por %p372, %p373
      %p375 = scmp.ne.s32.totalorder %s367, %s369
      %p376 = scmp.eq.s32.totalorder %s34, 1
      %p377 = por %p375, %p376
      %p378 = scmp.ne.s32.totalorder %s369, %s370
      %p379 = scmp.eq.s32.totalorder %s34, 0
      %p380 = por %p378, %p379
      %p381 = scmp.ne.s32.totalorder %s369, %s370
      %p382 = scmp.eq.s32.totalorder %s35, 1
      %p383 = por %p381, %p382
      %p385 = scmp.ne.s32.totalorder %s370, %s384
      %p386 = scmp.eq.s32.totalorder %s35, 0
      %p387 = por %p385, %p386
      %s388 = ssub.s32 %s29, %s36
      %p389 = scmp.eq.s32.totalorder %s388, 0
      %s391 = sadd.s32 %s390, 1
      %s392 = scalar_select %p389, %s390, %s391
      %p395 = pneg %p389
      %p396 = scmp.eq.s32.totalorder %s29, 1
      %p397 = por %p395, %p396
      %p398 = scmp.ne.s32.totalorder %s390, %s393
      %p399 = scmp.eq.s32.totalorder %s29, 0
      %p400 = por %p398, %p399
      %p401 = scmp.ne.s32.totalorder %s390, %s393
      %p402 = scmp.eq.s32.totalorder %s34, 1
      %p403 = por %p401, %p402
      %p404 = scmp.ne.s32.totalorder %s393, %s394
      %p405 = scmp.eq.s32.totalorder %s34, 0
      %p406 = por %p404, %p405
      %p407 = scmp.ne.s32.totalorder %s393, %s394
      %p408 = scmp.eq.s32.totalorder %s35, 1
      %p409 = por %p407, %p408
      %p411 = scmp.ne.s32.totalorder %s394, %s410
      %p412 = scmp.eq.s32.totalorder %s35, 0
      %p413 = por %p411, %p412
      %p414 = scmp.le.s32.totalorder 1, %s29
      %p415 = scmp.lt.s32.totalorder %s29, 3
      %p416 = pnand %p414, %p415
      %p417 = pneg %p416
      // Predicated region
      $region9: #{tpu_custom_call.1} parent=5 // pred_check
        _
      $region10: #{tpu_custom_call.1} parent=5 // pred_check_branch
        %419 = sbr.rel (%p416) target = $region12
      $region11: #{tpu_custom_call.1} parent=5 // pred_region
        %s420 = ssub.s32 %s29, 1
        // Predicated region
        $region13: #{tpu_custom_call.1} parent=11 // pred_check
          %p421 = pneg %p128
        $region14: #{tpu_custom_call.1} parent=11 // pred_check_branch
          %423 = sbr.rel (%p421) target = $region16
        $region15: #{tpu_custom_call.1} parent=11 // pred_region
          _
        $region16: #{tpu_custom_call.1} parent=11 // pred_fallthru
          _
        // Predicated region
        $region17: #{tpu_custom_call.1} parent=11 // pred_check
          %p424 = pneg %p149
        $region18: #{tpu_custom_call.1} parent=11 // pred_check_branch
          %426 = sbr.rel (%p424) target = $region20
        $region19: #{tpu_custom_call.1} parent=11 // pred_region
          _
        $region20: #{tpu_custom_call.1} parent=11 // pred_fallthru
          _
        // Predicated region
        $region21: #{tpu_custom_call.1} parent=11 // pred_check
          %p427 = pneg %p170
        $region22: #{tpu_custom_call.1} parent=11 // pred_check_branch
          %429 = sbr.rel (%p427) target = $region24
        $region23: #{tpu_custom_call.1} parent=11 // pred_region
          _
        $region24: #{tpu_custom_call.1} parent=11 // pred_fallthru
          _
        // Predicated region
        $region25: #{tpu_custom_call.1} parent=11 // pred_check
          %p430 = pneg %p191
        $region26: #{tpu_custom_call.1} parent=11 // pred_check_branch
          %432 = sbr.rel (%p430) target = $region28
        $region27: #{tpu_custom_call.1} parent=11 // pred_region
          _
        $region28: #{tpu_custom_call.1} parent=11 // pred_fallthru
          _
        // Predicated region
        $region29: #{tpu_custom_call.1} parent=11 // pred_check
          %p433 = pneg %p212
        $region30: #{tpu_custom_call.1} parent=11 // pred_check_branch
          %435 = sbr.rel (%p433) target = $region32
        $region31: #{tpu_custom_call.1} parent=11 // pred_region
          %437 = vsyncadd [#allocation3], 0
          %s438 = sshll.u32 %s7, 4
          %s439 = int_to_ptr.hbm [resolvable:$true] %s438
          %s440 = sshll.u32 [#allocation2], 4
          %s441 = int_to_ptr.vmem [resolvable:$true] %s440
          %446 = dma.hbm_to_vmem [thread:$0]  %s439, 256, %s441, [#allocation3], 64, 64, 4
        $region32: #{tpu_custom_call.1} parent=11 // pred_fallthru
          _
        // Predicated region
        $region33: #{tpu_custom_call.1} parent=11 // pred_check
          %p447 = pneg %p233
        $region34: #{tpu_custom_call.1} parent=11 // pred_check_branch
          %449 = sbr.rel (%p447) target = $region36
        $region35: #{tpu_custom_call.1} parent=11 // pred_region
          _
        $region36: #{tpu_custom_call.1} parent=11 // pred_fallthru
          _
        // Predicated region
        $region37: #{tpu_custom_call.1} parent=11 // pred_check
          %p450 = pneg %p254
        $region38: #{tpu_custom_call.1} parent=11 // pred_check_branch
          %452 = sbr.rel (%p450) target = $region40
        $region39: #{tpu_custom_call.1} parent=11 // pred_region
          %454 = vsyncadd [#allocation6], 0
          %s455 = sshll.u32 %s9, 4
          %s456 = int_to_ptr.hbm [resolvable:$true] %s455
          %s457 = sshll.u32 [#allocation5], 4
          %s458 = int_to_ptr.vmem [resolvable:$true] %s457
          %463 = dma.hbm_to_vmem [thread:$0]  %s456, 256, %s458, [#allocation6], 64, 64, 4
        $region40: #{tpu_custom_call.1} parent=11 // pred_fallthru
          _
        // Predicated region
        $region41: #{tpu_custom_call.1} parent=11 // pred_check
          %p464 = pneg %p275
        $region42: #{tpu_custom_call.1} parent=11 // pred_check_branch
          %466 = sbr.rel (%p464) target = $region44
        $region43: #{tpu_custom_call.1} parent=11 // pred_region
          %468 = vsyncadd [#allocation6], 0
          %s469 = sshll.u32 %s10, 4
          %s470 = int_to_ptr.hbm [resolvable:$true] %s469
          %s471 = sshll.u32 [#allocation7], 4
          %s472 = int_to_ptr.vmem [resolvable:$true] %s471
          %477 = dma.hbm_to_vmem [thread:$0]  %s470, 256, %s472, [#allocation6], 64, 64, 4
        $region44: #{tpu_custom_call.1} parent=11 // pred_fallthru
          _
        // Predicated region
        $region45: #{tpu_custom_call.1} parent=11 // pred_check
          %p478 = pneg %p296
        $region46: #{tpu_custom_call.1} parent=11 // pred_check_branch
          %480 = sbr.rel (%p478) target = $region48
        $region47: #{tpu_custom_call.1} parent=11 // pred_region
          %482 = vsyncadd [#allocation9], 0
          %s483 = sshll.u32 %s11, 4
          %s484 = int_to_ptr.hbm [resolvable:$true] %s483
          %s485 = sshll.u32 [#allocation8], 4
          %s486 = int_to_ptr.vmem [resolvable:$true] %s485
          %491 = dma.hbm_to_vmem [thread:$0]  %s484, 256, %s486, [#allocation9], 64, 64, 4
        $region48: #{tpu_custom_call.1} parent=11 // pred_fallthru
          _
        // Predicated region
        $region49: #{tpu_custom_call.1} parent=11 // pred_check
          %p492 = pneg %p317
        $region50: #{tpu_custom_call.1} parent=11 // pred_check_branch
          %494 = sbr.rel (%p492) target = $region52
        $region51: #{tpu_custom_call.1} parent=11 // pred_region
          %496 = vsyncadd [#allocation9], 0
          %s497 = sshll.u32 %s12, 4
          %s498 = int_to_ptr.hbm [resolvable:$true] %s497
          %s499 = sshll.u32 [#allocation10], 4
          %s500 = int_to_ptr.vmem [resolvable:$true] %s499
          %505 = dma.hbm_to_vmem [thread:$0]  %s498, 256, %s500, [#allocation9], 64, 64, 4
        $region52: #{tpu_custom_call.1} parent=11 // pred_fallthru
          _
        // Predicated region
        $region53: #{tpu_custom_call.1} parent=11 // pred_check
          %p506 = pneg %p338
        $region54: #{tpu_custom_call.1} parent=11 // pred_check_branch
          %508 = sbr.rel (%p506) target = $region56
        $region55: #{tpu_custom_call.1} parent=11 // pred_region
          %510 = vsyncadd [#allocation12], 0
          %s512 = sshll.u32 %s13, 4
          %s513 = int_to_ptr.hbm [resolvable:$true] %s512
          %s514 = sshll.u32 [#allocation11], 4
          %s515 = int_to_ptr.vmem [resolvable:$true] %s514
          %517 = dma.hbm_to_vmem [thread:$0]  %s513, 16, %s515, [#allocation12]
        $region56: #{tpu_custom_call.1} parent=11 // pred_fallthru
          _
        // Predicated region
        $region57: #{tpu_custom_call.1} parent=11 // pred_check
          %p518 = pneg %p359
        $region58: #{tpu_custom_call.1} parent=11 // pred_check_branch
          %520 = sbr.rel (%p518) target = $region60
        $region59: #{tpu_custom_call.1} parent=11 // pred_region
          %522 = vsyncadd [#allocation12], 0
          %s523 = sshll.u32 %s14, 4
          %s524 = int_to_ptr.hbm [resolvable:$true] %s523
          %s525 = sshll.u32 [#allocation13], 4
          %s526 = int_to_ptr.vmem [resolvable:$true] %s525
          %531 = dma.hbm_to_vmem [thread:$0]  %s524, 256, %s526, [#allocation12], 64, 64, 4
        $region60: #{tpu_custom_call.1} parent=11 // pred_fallthru
          _
        // Predicated region
        $region61: #{tpu_custom_call.1} parent=11 // pred_check
          %p532 = pneg %p380
        $region62: #{tpu_custom_call.1} parent=11 // pred_check_branch
          %534 = sbr.rel (%p532) target = $region64
        $region63: #{tpu_custom_call.1} parent=11 // pred_region
          _
        $region64: #{tpu_custom_call.1} parent=11 // pred_fallthru
          _
      $region12: #{tpu_custom_call.1} parent=5 // pred_fallthru
        _
      %p535 = scmp.lt.s32.totalorder %s29, 2
      // Predicated region
      $region65: #{tpu_custom_call.1} parent=5 // pred_check
        %p536 = pneg %p535
      $region66: #{tpu_custom_call.1} parent=5 // pred_check_branch
        %538 = sbr.rel (%p536) target = $region68
      $region67: #{tpu_custom_call.1} parent=5 // pred_region
        // Predicated region
        $region69: #{tpu_custom_call.1} parent=67 // pred_check
          %p539 = pneg %p49
        $region70: #{tpu_custom_call.1} parent=67 // pred_check_branch
          %541 = sbr.rel (%p539) target = $region72
        $region71: #{tpu_custom_call.1} parent=67 // pred_region
          %p542 = scmp.lt.s32.totalorder %s29, 1
          %s543 = scalar_select %p542, %s29, 1
          %s544 = smul.addr %s543, 4
          %s545 = scalar_lea.vmem %s0, %s544
        $region72: #{tpu_custom_call.1} parent=67 // pred_fallthru
          _
        // Predicated region
        $region73: #{tpu_custom_call.1} parent=67 // pred_check
          %p546 = pneg %p75
        $region74: #{tpu_custom_call.1} parent=67 // pred_check_branch
          %548 = sbr.rel (%p546) target = $region76
        $region75: #{tpu_custom_call.1} parent=67 // pred_region
          %p549 = scmp.lt.s32.totalorder %s29, 1
          %s550 = scalar_select %p549, %s29, 1
          %s551 = smul.addr %s550, 4
          %s552 = scalar_lea.vmem %s1, %s551
        $region76: #{tpu_custom_call.1} parent=67 // pred_fallthru
          _
        // Predicated region
        $region77: #{tpu_custom_call.1} parent=67 // pred_check
          %p553 = pneg %p101
        $region78: #{tpu_custom_call.1} parent=67 // pred_check_branch
          %555 = sbr.rel (%p553) target = $region80
        $region79: #{tpu_custom_call.1} parent=67 // pred_region
          %p556 = scmp.lt.s32.totalorder %s29, 1
          %s557 = scalar_select %p556, %s29, 1
          %s558 = scalar_lea.vmem %s2, %s557
        $region80: #{tpu_custom_call.1} parent=67 // pred_fallthru
          _
      $region68: #{tpu_custom_call.1} parent=5 // pred_fallthru
        _
      %p559 = scmp.le.s32.totalorder 1, %s29
      %p560 = scmp.lt.s32.totalorder %s29, 3
      %p561 = pnand %p559, %p560
      %p562 = pneg %p561
      // Predicated region
      $region81: #{tpu_custom_call.1} parent=5 // pred_check
        _
      $region82: #{tpu_custom_call.1} parent=5 // pred_check_branch
        %564 = sbr.rel (%p561) target = $region84
      $region83: #{tpu_custom_call.1} parent=5 // pred_region
        %s565 = ssub.s32 %s29, 1
        // Predicated region
        $region85: #{tpu_custom_call.1} parent=83 // pred_check
          %p566 = pneg %p212
        $region86: #{tpu_custom_call.1} parent=83 // pred_check_branch
          %568 = sbr.rel (%p566) target = $region88
        $region87: #{tpu_custom_call.1} parent=83 // pred_region
          %570 = dma.done [#allocation3], 256
        $region88: #{tpu_custom_call.1} parent=83 // pred_fallthru
          _
        // Predicated region
        $region89: #{tpu_custom_call.1} parent=83 // pred_check
          %p571 = pneg %p254
        $region90: #{tpu_custom_call.1} parent=83 // pred_check_branch
          %573 = sbr.rel (%p571) target = $region92
        $region91: #{tpu_custom_call.1} parent=83 // pred_region
          %575 = dma.done [#allocation6], 256
        $region92: #{tpu_custom_call.1} parent=83 // pred_fallthru
          _
        // Predicated region
        $region93: #{tpu_custom_call.1} parent=83 // pred_check
          %p576 = pneg %p275
        $region94: #{tpu_custom_call.1} parent=83 // pred_check_branch
          %578 = sbr.rel (%p576) target = $region96
        $region95: #{tpu_custom_call.1} parent=83 // pred_region
          %580 = dma.done [#allocation6], 256
        $region96: #{tpu_custom_call.1} parent=83 // pred_fallthru
          _
        // Predicated region
        $region97: #{tpu_custom_call.1} parent=83 // pred_check
          %p581 = pneg %p296
        $region98: #{tpu_custom_call.1} parent=83 // pred_check_branch
          %583 = sbr.rel (%p581) target = $region100
        $region99: #{tpu_custom_call.1} parent=83 // pred_region
          %585 = dma.done [#allocation9], 256
        $region100: #{tpu_custom_call.1} parent=83 // pred_fallthru
          _
        // Predicated region
        $region101: #{tpu_custom_call.1} parent=83 // pred_check
          %p586 = pneg %p317
        $region102: #{tpu_custom_call.1} parent=83 // pred_check_branch
          %588 = sbr.rel (%p586) target = $region104
        $region103: #{tpu_custom_call.1} parent=83 // pred_region
          %590 = dma.done [#allocation9], 256
        $region104: #{tpu_custom_call.1} parent=83 // pred_fallthru
          _
        // Predicated region
        $region105: #{tpu_custom_call.1} parent=83 // pred_check
          %p591 = pneg %p338
        $region106: #{tpu_custom_call.1} parent=83 // pred_check_branch
          %593 = sbr.rel (%p591) target = $region108
        $region107: #{tpu_custom_call.1} parent=83 // pred_region
          %595 = dma.done [#allocation12], 16
        $region108: #{tpu_custom_call.1} parent=83 // pred_fallthru
          _
        // Predicated region
        $region109: #{tpu_custom_call.1} parent=83 // pred_check
          %p596 = pneg %p359
        $region110: #{tpu_custom_call.1} parent=83 // pred_check_branch
          %598 = sbr.rel (%p596) target = $region112
        $region111: #{tpu_custom_call.1} parent=83 // pred_region
          %600 = dma.done [#allocation12], 256
        $region112: #{tpu_custom_call.1} parent=83 // pred_fallthru
          _
        %p601 = scmp.lt.s32.totalorder %s34, 1
        %s602 = scalar_select %p601, %s34, 1
        %s603 = smul.addr %s602, 4
        %s604 = scalar_lea.vmem %s0, %s603
        %p605 = pneg %p55
        %p606 = pneg %p52
        %p607 = scmp.lt.s32.totalorder %s34, 1
        %s608 = scalar_select %p607, %s34, 1
        %s609 = smul.addr %s608, 4
        %s610 = scalar_lea.vmem %s1, %s609
        %p611 = pneg %p81
        %p612 = pneg %p78
        %p613 = scmp.lt.s32.totalorder %s34, 1
        %s614 = scalar_select %p613, %s34, 1
        %s615 = scalar_lea.vmem %s2, %s614
        %p616 = pneg %p107
        %p617 = pneg %p104
        %p618 = pneg %p128
        %p619 = pneg %p125
        %p620 = pneg %p149
        %p621 = pneg %p146
        %p622 = pneg %p170
        %p623 = pneg %p167
        %p624 = pneg %p191
        %p625 = pneg %p188
        %p626 = pneg %p212
        %p627 = pneg %p209
        %p628 = pneg %p233
        %p629 = pneg %p230
        %p630 = pneg %p254
        %p631 = pneg %p251
        %p632 = pneg %p275
        %p633 = pneg %p272
        %p634 = pneg %p296
        %p635 = pneg %p293
        %p636 = pneg %p317
        %p637 = pneg %p314
        %p638 = pneg %p338
        %p639 = pneg %p335
        %p640 = pneg %p359
        %p641 = pneg %p356
        %p642 = pneg %p380
        %p643 = pneg %p377
        %p644 = pneg %p406
        %p645 = pneg %p403
        %s646 = sand.u32 %s393, 1
        %s647 = scalar_lea.sflag [#allocation4], %s646
        %s648 = sand.u32 %s393, 1
        %s649 = smul.addr %s648, 4
        %s650 = scalar_lea.vmem [#allocation14], %s649
        %p651 = scmp.lt.s32.totalorder %s34, 1
        %s652 = scalar_select %p651, %s34, 1
        %s653 = smul.addr %s652, 4
        %s654 = scalar_lea.vmem %s0, %s653
        %p655 = scmp.lt.s32.totalorder %s34, 1
        %s656 = scalar_select %p655, %s34, 1
        %s657 = smul.addr %s656, 4
        %s658 = scalar_lea.vmem %s1, %s657
        %p659 = scmp.lt.s32.totalorder %s34, 1
        %s660 = scalar_select %p659, %s34, 1
        %s661 = scalar_lea.vmem %s2, %s660
        %v663 = vld [vmem:[%s654] sm:$0xf]
        %v664 = vld [vmem:[%s658] sm:$0x7]
        %v665 = vld [vmem:[%s661] sm:$0x1]
        %v666 = vmul.f32 %v663, %v663
        %vm667 = vcmask 257024
        %v668 = vsel %vm667, %v666, 0.0
        %669 = vadd.xlane.f32.xlu0 %v668
        %v670 = vpop.xlane.xlu0 %669
        %v671 = vrcp.pop 32.0
        %v672 = vmul.f32 32.0, %v671
        %v673 = vsub.f32 1.0, %v672
        %v674 = vmul.f32 %v671, %v673
        %v675 = vadd.f32 %v671, %v674
        %vm676 = vweird.f32 %v671
        %v677 = vsel %vm676, %v671, %v675
        %v678 = vmul.f32 %v670, %v677
        %v679 = vadd.f32 %v678, 1e-06
        %v680 = vrsqrt.pop %v679
        %v681 = vmul.f32 %v680, %v679
        %v682 = vmul.f32 %v681, %v680
        %v683 = vmul.f32 0.5, %v682
        %v684 = vsub.f32 1.5, %v683
        %v685 = vmul.f32 %v680, %v684
        %vm686 = vweird.f32 %v679
        %vm687 = vweird.f32 %v680
        %vm688 = vmor %vm686, %vm687
        %v689 = vsel %vm688, %v680, %v685
        %v690 = vmul.f32 %v663, %v689
        %v691 = vld [vmem:[%s3] sm:$0x1]
        %v693 = vperm.slane %v691, 0
        %v695 = vmul.f32 %v690, %v693
        %v696 = vpack.c.bf16 %v695, %v695
        %v697 = vld [vmem:[%s4] sm:$0xf]
        %v698 = vld [vmem:[%s4 + $0x4] sm:$0xf]
        %v699 = vld [vmem:[%s4 + $0x8] sm:$0xf]
        %v700 = vld [vmem:[%s4 + $0xc] sm:$0xf]
        %v705 = vunpack.c.l.b16 %v697
        %v706 = vunpack.c.l.b16 %v698
        %v707 = vunpack.c.l.b16 %v699
        %v708 = vunpack.c.l.b16 %v700
        %v709 = vpack.c.b16 %v706, %v705
        %v710 = vpack.c.b16 %v708, %v707
        %vm713 = vcmask 261120
        %v715 = vsel %vm713, %v696, 0
        %717 = vmatpush.bf16.msra.mxu0 0
        %718 = vmatpush.bf16.msra.mxu0 0
        %719 = vmatpush.bf16.msra.mxu0 0
        %720 = vmatpush.bf16.msra.mxu0 0
        %721 = vmatpush.bf16.msra.mxu0 0
        %722 = vmatpush.bf16.msra.mxu0 0
        %723 = vmatpush.bf16.msra.mxu0 %v710
        %724 = vmatpush.bf16.msra.mxu0 %v709
        %725 = vmatmul.bf16.gmra.mxu0 %v715
        %v726 = vpop.f32.mrf.mxu0
        %v727 = vadd.f32 0.0, %v726
        %v728 = vpop.f32.mrf.mxu0
        %729 = vdwg.mxu0
        %v730 = vld [vmem:[%s5] sm:$0xf]
        %v731 = vld [vmem:[%s5 + $0x4] sm:$0xf]
        %v732 = vld [vmem:[%s5 + $0x8] sm:$0xf]
        %v733 = vld [vmem:[%s5 + $0xc] sm:$0xf]
        %v738 = vunpack.c.l.b16 %v730
        %v739 = vunpack.c.l.b16 %v731
        %v740 = vunpack.c.l.b16 %v732
        %v741 = vunpack.c.l.b16 %v733
        %v742 = vpack.c.b16 %v739, %v738
        %v743 = vpack.c.b16 %v741, %v740
        %746 = vmatpush.bf16.msra.mxu0 0
        %747 = vmatpush.bf16.msra.mxu0 0
        %748 = vmatpush.bf16.msra.mxu0 0
        %749 = vmatpush.bf16.msra.mxu0 0
        %750 = vmatpush.bf16.msra.mxu0 0
        %751 = vmatpush.bf16.msra.mxu0 0
        %752 = vmatpush.bf16.msra.mxu0 %v743
        %753 = vmatpush.bf16.msra.mxu0 %v742
        %754 = vmatmul.bf16.gmra.mxu0 %v715
        %v755 = vpop.f32.mrf.mxu0
        %v756 = vadd.f32 0.0, %v755
        %v757 = vpop.f32.mrf.mxu0
        %758 = vdwg.mxu0
        %v759 = vld [vmem:[%s6] sm:$0xf]
        %v760 = vld [vmem:[%s6 + $0x4] sm:$0xf]
        %v761 = vld [vmem:[%s6 + $0x8] sm:$0xf]
        %v762 = vld [vmem:[%s6 + $0xc] sm:$0xf]
        %v767 = vunpack.c.l.b16 %v759
        %v768 = vunpack.c.l.b16 %v760
        %v769 = vunpack.c.l.b16 %v761
        %v770 = vunpack.c.l.b16 %v762
        %v771 = vpack.c.b16 %v768, %v767
        %v772 = vpack.c.b16 %v770, %v769
        %775 = vmatpush.bf16.msra.mxu0 0
        %776 = vmatpush.bf16.msra.mxu0 0
        %777 = vmatpush.bf16.msra.mxu0 0
        %778 = vmatpush.bf16.msra.mxu0 0
        %779 = vmatpush.bf16.msra.mxu0 0
        %780 = vmatpush.bf16.msra.mxu0 0
        %781 = vmatpush.bf16.msra.mxu0 %v772
        %782 = vmatpush.bf16.msra.mxu0 %v771
        %783 = vmatmul.bf16.gmra.mxu0 %v715
        %v784 = vpop.f32.mrf.mxu0
        %v785 = vadd.f32 0.0, %v784
        %v786 = vpop.f32.mrf.mxu0
        %787 = vdwg.mxu0
        %v788 = vpack.c.bf16 %v727, %v727
        %v789 = vpack.c.bf16 %v756, %v756
        %v790 = vpack.c.bf16 %v785, %v785
        %vm791 = vcmask 64512
        %v793 = vsel %vm791, %v788, 0
        %v796 = vsel %vm791, %v789, 0
        %798 = vmatpush.bf16.xpose.msra.mxu0 0
        %799 = vmatpush.bf16.xpose.msra.mxu0 0
        %800 = vmatpush.bf16.xpose.msra.mxu0 0
        %801 = vmatpush.bf16.xpose.msra.mxu0 0
        %802 = vmatpush.bf16.xpose.msra.mxu0 0
        %803 = vmatpush.bf16.xpose.msra.mxu0 0
        %804 = vmatpush.bf16.xpose.msra.mxu0 0
        %805 = vmatpush.bf16.xpose.msra.mxu0 %v796
        %806 = vmatmul.bf16.gmra.mxu0 %v793
        %v807 = vpop.f32.mrf.mxu0
        %v808 = vadd.f32 0.0, %v807
        %v809 = vpop.f32.mrf.mxu0
        %810 = vdwg.mxu0
        %vm811 = vcmask 27648
        %v812 = vsel %vm811, %v808, -inf
        %813 = vmax.xlane.f32.xlu0 %v812
        %v814 = vpop.xlane.xlu0 %813
        %v815 = vsub.f32 %v808, %v814
        %v816 = vmul.f32 %v815, 1.442695
        %v817 = vpow.pop %v816
        %v818 = vsel %vm811, %v817, 0.0
        %819 = vadd.xlane.f32.xlu0 %v818
        %v820 = vpop.xlane.xlu0 %819
        %v821 = vrcp.pop %v820
        %v822 = vmul.f32 %v817, %v821
        %v823 = vpack.c.bf16 %v822, %v822
        %vm824 = vcmask 31744
        %v826 = vsel %vm824, %v823, 0
        %vm828 = vcmask 1041408
        %v830 = vsel %vm828, %v790, 0
        %832 = vmatpush.bf16.msra.mxu0 0
        %833 = vmatpush.bf16.msra.mxu0 0
        %834 = vmatpush.bf16.msra.mxu0 0
        %835 = vmatpush.bf16.msra.mxu0 0
        %836 = vmatpush.bf16.msra.mxu0 0
        %837 = vmatpush.bf16.msra.mxu0 0
        %838 = vmatpush.bf16.msra.mxu0 0
        %839 = vmatpush.bf16.msra.mxu0 %v830
        %840 = vmatmul.bf16.gmra.mxu0 %v826
        %v841 = vpop.f32.mrf.mxu0
        %v842 = vadd.f32 0.0, %v841
        %v843 = vpop.f32.mrf.mxu0
        %844 = vdwg.mxu0
        %v846 = vunpack.c.l.b16 %v788
        %v847 = vpack.c.b16 %v846, %v846
        %848 = vrot.lane.b32.xlu0 %v847, 120
        %v849 = vpop.permute.xlu0 %848
        %v851 = vunpack.c.l.b16 %v789
        %v852 = vpack.c.b16 %v851, %v851
        %853 = vrot.lane.b32.xlu0 %v852, 120
        %v854 = vpop.permute.xlu0 %853
        %v856 = vsel %vm791, %v849, 0
        %v859 = vsel %vm791, %v854, 0
        %861 = vmatpush.bf16.xpose.msra.mxu0 0
        %862 = vmatpush.bf16.xpose.msra.mxu0 0
        %863 = vmatpush.bf16.xpose.msra.mxu0 0
        %864 = vmatpush.bf16.xpose.msra.mxu0 0
        %865 = vmatpush.bf16.xpose.msra.mxu0 0
        %866 = vmatpush.bf16.xpose.msra.mxu0 0
        %867 = vmatpush.bf16.xpose.msra.mxu0 0
        %868 = vmatpush.bf16.xpose.msra.mxu0 %v859
        %869 = vmatmul.bf16.gmra.mxu0 %v856
        %v870 = vpop.f32.mrf.mxu0
        %v871 = vadd.f32 0.0, %v870
        %v872 = vpop.f32.mrf.mxu0
        %873 = vdwg.mxu0
        %v874 = vsel %vm811, %v871, -inf
        %875 = vmax.xlane.f32.xlu0 %v874
        %v876 = vpop.xlane.xlu0 %875
        %v877 = vsub.f32 %v871, %v876
        %v878 = vmul.f32 %v877, 1.442695
        %v879 = vpow.pop %v878
        %v880 = vsel %vm811, %v879, 0.0
        %881 = vadd.xlane.f32.xlu0 %v880
        %v882 = vpop.xlane.xlu0 %881
        %v883 = vrcp.pop %v882
        %v884 = vmul.f32 %v879, %v883
        %v885 = vpack.c.bf16 %v884, %v884
        %v887 = vunpack.c.l.b16 %v790
        %v888 = vpack.c.b16 %v887, %v887
        %889 = vrot.lane.b32.xlu0 %v888, 120
        %v890 = vpop.permute.xlu0 %889
        %v892 = vsel %vm824, %v885, 0
        %v895 = vsel %vm828, %v890, 0
        %897 = vmatpush.bf16.msra.mxu0 0
        %898 = vmatpush.bf16.msra.mxu0 0
        %899 = vmatpush.bf16.msra.mxu0 0
        %900 = vmatpush.bf16.msra.mxu0 0
        %901 = vmatpush.bf16.msra.mxu0 0
        %902 = vmatpush.bf16.msra.mxu0 0
        %903 = vmatpush.bf16.msra.mxu0 0
        %904 = vmatpush.bf16.msra.mxu0 %v895
        %905 = vmatmul.bf16.gmra.mxu0 %v892
        %v906 = vpop.f32.mrf.mxu0
        %v907 = vadd.f32 0.0, %v906
        %v908 = vpop.f32.mrf.mxu0
        %909 = vdwg.mxu0
        %910 = vrot.lane.b32.xlu0 %v847, 112
        %v911 = vpop.permute.xlu0 %910
        %912 = vrot.lane.b32.xlu0 %v852, 112
        %v913 = vpop.permute.xlu0 %912
        %v915 = vsel %vm791, %v911, 0
        %v918 = vsel %vm791, %v913, 0
        %920 = vmatpush.bf16.xpose.msra.mxu0 0
        %921 = vmatpush.bf16.xpose.msra.mxu0 0
        %922 = vmatpush.bf16.xpose.msra.mxu0 0
        %923 = vmatpush.bf16.xpose.msra.mxu0 0
        %924 = vmatpush.bf16.xpose.msra.mxu0 0
        %925 = vmatpush.bf16.xpose.msra.mxu0 0
        %926 = vmatpush.bf16.xpose.msra.mxu0 0
        %927 = vmatpush.bf16.xpose.msra.mxu0 %v918
        %928 = vmatmul.bf16.gmra.mxu0 %v915
        %v929 = vpop.f32.mrf.mxu0
        %v930 = vadd.f32 0.0, %v929
        %v931 = vpop.f32.mrf.mxu0
        %932 = vdwg.mxu0
        %v933 = vsel %vm811, %v930, -inf
        %934 = vmax.xlane.f32.xlu0 %v933
        %v935 = vpop.xlane.xlu0 %934
        %v936 = vsub.f32 %v930, %v935
        %v937 = vmul.f32 %v936, 1.442695
        %v938 = vpow.pop %v937
        %v939 = vsel %vm811, %v938, 0.0
        %940 = vadd.xlane.f32.xlu0 %v939
        %v941 = vpop.xlane.xlu0 %940
        %v942 = vrcp.pop %v941
        %v943 = vmul.f32 %v938, %v942
        %v944 = vpack.c.bf16 %v943, %v943
        %945 = vrot.lane.b32.xlu0 %v888, 112
        %v946 = vpop.permute.xlu0 %945
        %v948 = vsel %vm824, %v944, 0
        %v951 = vsel %vm828, %v946, 0
        %953 = vmatpush.bf16.msra.mxu0 0
        %954 = vmatpush.bf16.msra.mxu0 0
        %955 = vmatpush.bf16.msra.mxu0 0
        %956 = vmatpush.bf16.msra.mxu0 0
        %957 = vmatpush.bf16.msra.mxu0 0
        %958 = vmatpush.bf16.msra.mxu0 0
        %959 = vmatpush.bf16.msra.mxu0 0
        %960 = vmatpush.bf16.msra.mxu0 %v951
        %961 = vmatmul.bf16.gmra.mxu0 %v948
        %v962 = vpop.f32.mrf.mxu0
        %v963 = vadd.f32 0.0, %v962
        %v964 = vpop.f32.mrf.mxu0
        %965 = vdwg.mxu0
        %966 = vrot.lane.b32.xlu0 %v847, 104
        %v967 = vpop.permute.xlu0 %966
        %968 = vrot.lane.b32.xlu0 %v852, 104
        %v969 = vpop.permute.xlu0 %968
        %v971 = vsel %vm791, %v967, 0
        %v974 = vsel %vm791, %v969, 0
        %976 = vmatpush.bf16.xpose.msra.mxu0 0
        %977 = vmatpush.bf16.xpose.msra.mxu0 0
        %978 = vmatpush.bf16.xpose.msra.mxu0 0
        %979 = vmatpush.bf16.xpose.msra.mxu0 0
        %980 = vmatpush.bf16.xpose.msra.mxu0 0
        %981 = vmatpush.bf16.xpose.msra.mxu0 0
        %982 = vmatpush.bf16.xpose.msra.mxu0 0
        %983 = vmatpush.bf16.xpose.msra.mxu0 %v974
        %984 = vmatmul.bf16.gmra.mxu0 %v971
        %v985 = vpop.f32.mrf.mxu0
        %v986 = vadd.f32 0.0, %v985
        %v987 = vpop.f32.mrf.mxu0
        %988 = vdwg.mxu0
        %v989 = vsel %vm811, %v986, -inf
        %990 = vmax.xlane.f32.xlu0 %v989
        %v991 = vpop.xlane.xlu0 %990
        %v992 = vsub.f32 %v986, %v991
        %v993 = vmul.f32 %v992, 1.442695
        %v994 = vpow.pop %v993
        %v995 = vsel %vm811, %v994, 0.0
        %996 = vadd.xlane.f32.xlu0 %v995
        %v997 = vpop.xlane.xlu0 %996
        %v998 = vrcp.pop %v997
        %v999 = vmul.f32 %v994, %v998
        %v1000 = vpack.c.bf16 %v999, %v999
        %1001 = vrot.lane.b32.xlu0 %v888, 104
        %v1002 = vpop.permute.xlu0 %1001
        %v1004 = vsel %vm824, %v1000, 0
        %v1007 = vsel %vm828, %v1002, 0
        %1009 = vmatpush.bf16.msra.mxu0 0
        %1010 = vmatpush.bf16.msra.mxu0 0
        %1011 = vmatpush.bf16.msra.mxu0 0
        %1012 = vmatpush.bf16.msra.mxu0 0
        %1013 = vmatpush.bf16.msra.mxu0 0
        %1014 = vmatpush.bf16.msra.mxu0 0
        %1015 = vmatpush.bf16.msra.mxu0 0
        %1016 = vmatpush.bf16.msra.mxu0 %v1007
        %1017 = vmatmul.bf16.gmra.mxu0 %v1004
        %v1018 = vpop.f32.mrf.mxu0
        %v1019 = vadd.f32 0.0, %v1018
        %v1020 = vpop.f32.mrf.mxu0
        %1021 = vdwg.mxu0
        %1023 = vrot.lane.b32.xlu0 %v907, 8
        %v1024 = vpop.permute.xlu0 %1023
        %1027 = vrot.lane.b32.xlu0 %v963, 16
        %v1028 = vpop.permute.xlu0 %1027
        %1031 = vrot.lane.b32.xlu0 %v1019, 24
        %v1032 = vpop.permute.xlu0 %1031
        %v1034 = vsel %vm791, %v842, %v1024
        %vm1035 = vcmask 130048
        %v1036 = vsel %vm1035, %v1034, %v1028
        %vm1037 = vcmask 195584
        %v1038 = vsel %vm1037, %v1036, %v1032
        %v1039 = vpack.c.bf16 %v1038, %v1038
        %v1040 = vld [vmem:[#allocation2] sm:$0xf]
        %v1041 = vld [vmem:[#allocation2 + $0x4] sm:$0xf]
        %v1042 = vld [vmem:[#allocation2 + $0x8] sm:$0xf]
        %v1043 = vld [vmem:[#allocation2 + $0xc] sm:$0xf]
        %v1048 = vunpack.c.l.b16 %v1040
        %v1049 = vunpack.c.l.b16 %v1041
        %v1050 = vunpack.c.l.b16 %v1042
        %v1051 = vunpack.c.l.b16 %v1043
        %v1052 = vpack.c.b16 %v1049, %v1048
        %v1053 = vpack.c.b16 %v1051, %v1050
        %v1057 = vsel %vm713, %v1039, 0
        %1059 = vmatpush.bf16.msra.mxu0 0
        %1060 = vmatpush.bf16.msra.mxu0 0
        %1061 = vmatpush.bf16.msra.mxu0 0
        %1062 = vmatpush.bf16.msra.mxu0 0
        %1063 = vmatpush.bf16.msra.mxu0 0
        %1064 = vmatpush.bf16.msra.mxu0 0
        %1065 = vmatpush.bf16.msra.mxu0 %v1053
        %1066 = vmatpush.bf16.msra.mxu0 %v1052
        %1067 = vmatmul.bf16.gmra.mxu0 %v1057
        %v1068 = vpop.f32.mrf.mxu0
        %v1069 = vadd.f32 0.0, %v1068
        %v1070 = vpop.f32.mrf.mxu0
        %1071 = vdwg.mxu0
        %v1072 = vadd.f32 %v663, %v1069
        %v1073 = vmul.f32 %v1072, %v1072
        %v1074 = vsel %vm667, %v1073, 0.0
        %1075 = vadd.xlane.f32.xlu0 %v1074
        %v1076 = vpop.xlane.xlu0 %1075
        %v1077 = vmul.f32 %v1076, %v677
        %v1078 = vadd.f32 %v1077, 1e-06
        %v1079 = vrsqrt.pop %v1078
        %v1080 = vmul.f32 %v1079, %v1078
        %v1081 = vmul.f32 %v1080, %v1079
        %v1082 = vmul.f32 0.5, %v1081
        %v1083 = vsub.f32 1.5, %v1082
        %v1084 = vmul.f32 %v1079, %v1083
        %vm1085 = vweird.f32 %v1078
        %vm1086 = vweird.f32 %v1079
        %vm1087 = vmor %vm1085, %vm1086
        %v1088 = vsel %vm1087, %v1079, %v1084
        %v1089 = vmul.f32 %v1072, %v1088
        %v1090 = vld [vmem:[%s8] sm:$0x1]
        %v1092 = vperm.slane %v1090, 0
        %v1094 = vmul.f32 %v1089, %v1092
        %v1095 = vpack.c.bf16 %v1094, %v1094
        %v1096 = vld [vmem:[#allocation5] sm:$0xf]
        %v1097 = vld [vmem:[#allocation5 + $0x4] sm:$0xf]
        %v1098 = vld [vmem:[#allocation5 + $0x8] sm:$0xf]
        %v1099 = vld [vmem:[#allocation5 + $0xc] sm:$0xf]
        %v1104 = vunpack.c.l.b16 %v1096
        %v1105 = vunpack.c.l.b16 %v1097
        %v1106 = vunpack.c.l.b16 %v1098
        %v1107 = vunpack.c.l.b16 %v1099
        %v1108 = vpack.c.b16 %v1105, %v1104
        %v1109 = vpack.c.b16 %v1107, %v1106
        %v1113 = vsel %vm713, %v1095, 0
        %1115 = vmatpush.bf16.msra.mxu0 0
        %1116 = vmatpush.bf16.msra.mxu0 0
        %1117 = vmatpush.bf16.msra.mxu0 0
        %1118 = vmatpush.bf16.msra.mxu0 0
        %1119 = vmatpush.bf16.msra.mxu0 0
        %1120 = vmatpush.bf16.msra.mxu0 0
        %1121 = vmatpush.bf16.msra.mxu0 %v1109
        %1122 = vmatpush.bf16.msra.mxu0 %v1108
        %1123 = vmatmul.bf16.gmra.mxu0 %v1113
        %v1124 = vpop.f32.mrf.mxu0
        %v1125 = vadd.f32 0.0, %v1124
        %v1126 = vpop.f32.mrf.mxu0
        %1127 = vdwg.mxu0
        %v1128 = vld [vmem:[#allocation7] sm:$0xf]
        %v1129 = vld [vmem:[#allocation7 + $0x4] sm:$0xf]
        %v1130 = vld [vmem:[#allocation7 + $0x8] sm:$0xf]
        %v1131 = vld [vmem:[#allocation7 + $0xc] sm:$0xf]
        %v1136 = vunpack.c.l.b16 %v1128
        %v1137 = vunpack.c.l.b16 %v1129
        %v1138 = vunpack.c.l.b16 %v1130
        %v1139 = vunpack.c.l.b16 %v1131
        %v1140 = vpack.c.b16 %v1137, %v1136
        %v1141 = vpack.c.b16 %v1139, %v1138
        %v1145 = vsel %vm713, %v664, 0
        %1147 = vmatpush.bf16.msra.mxu0 0
        %1148 = vmatpush.bf16.msra.mxu0 0
        %1149 = vmatpush.bf16.msra.mxu0 0
        %1150 = vmatpush.bf16.msra.mxu0 0
        %1151 = vmatpush.bf16.msra.mxu0 0
        %1152 = vmatpush.bf16.msra.mxu0 0
        %1153 = vmatpush.bf16.msra.mxu0 %v1141
        %1154 = vmatpush.bf16.msra.mxu0 %v1140
        %1155 = vmatmul.bf16.gmra.mxu0 %v1145
        %v1156 = vpop.f32.mrf.mxu0
        %v1157 = vadd.f32 0.0, %v1156
        %v1158 = vpop.f32.mrf.mxu0
        %1159 = vdwg.mxu0
        %v1160 = vld [vmem:[#allocation8] sm:$0xf]
        %v1161 = vld [vmem:[#allocation8 + $0x4] sm:$0xf]
        %v1162 = vld [vmem:[#allocation8 + $0x8] sm:$0xf]
        %v1163 = vld [vmem:[#allocation8 + $0xc] sm:$0xf]
        %v1168 = vunpack.c.l.b16 %v1160
        %v1169 = vunpack.c.l.b16 %v1161
        %v1170 = vunpack.c.l.b16 %v1162
        %v1171 = vunpack.c.l.b16 %v1163
        %v1172 = vpack.c.b16 %v1169, %v1168
        %v1173 = vpack.c.b16 %v1171, %v1170
        %1176 = vmatpush.bf16.msra.mxu0 0
        %1177 = vmatpush.bf16.msra.mxu0 0
        %1178 = vmatpush.bf16.msra.mxu0 0
        %1179 = vmatpush.bf16.msra.mxu0 0
        %1180 = vmatpush.bf16.msra.mxu0 0
        %1181 = vmatpush.bf16.msra.mxu0 0
        %1182 = vmatpush.bf16.msra.mxu0 %v1173
        %1183 = vmatpush.bf16.msra.mxu0 %v1172
        %1184 = vmatmul.bf16.gmra.mxu0 %v1145
        %v1185 = vpop.f32.mrf.mxu0
        %v1186 = vadd.f32 0.0, %v1185
        %v1187 = vpop.f32.mrf.mxu0
        %1188 = vdwg.mxu0
        %v1189 = vpack.c.bf16 %v1125, %v1125
        %v1190 = vpack.c.bf16 %v1157, %v1157
        %v1191 = vpack.c.bf16 %v1186, %v1186
        %v1193 = vperm.slane %v665, 0
        %v1196 = vsel %vm791, %v1189, 0
        %v1199 = vsel %vm791, %v1190, 0
        %1201 = vmatpush.bf16.xpose.msra.mxu0 0
        %1202 = vmatpush.bf16.xpose.msra.mxu0 0
        %1203 = vmatpush.bf16.xpose.msra.mxu0 0
        %1204 = vmatpush.bf16.xpose.msra.mxu0 0
        %1205 = vmatpush.bf16.xpose.msra.mxu0 0
        %1206 = vmatpush.bf16.xpose.msra.mxu0 0
        %1207 = vmatpush.bf16.xpose.msra.mxu0 0
        %1208 = vmatpush.bf16.xpose.msra.mxu0 %v1199
        %1209 = vmatmul.bf16.gmra.mxu0 %v1196
        %v1210 = vpop.f32.mrf.mxu0
        %v1211 = vadd.f32 %v1193, %v1210
        %v1212 = vpop.f32.mrf.mxu0
        %1213 = vdwg.mxu0
        %vm1214 = vcmask 44032
        %v1215 = vsel %vm1214, %v1211, -inf
        %1216 = vmax.xlane.f32.xlu0 %v1215
        %v1217 = vpop.xlane.xlu0 %1216
        %v1218 = vsub.f32 %v1211, %v1217
        %v1219 = vmul.f32 %v1218, 1.442695
        %v1220 = vpow.pop %v1219
        %v1221 = vsel %vm1214, %v1220, 0.0
        %1222 = vadd.xlane.f32.xlu0 %v1221
        %v1223 = vpop.xlane.xlu0 %1222
        %v1224 = vrcp.pop %v1223
        %v1225 = vmul.f32 %v1220, %v1224
        %v1226 = vpack.c.bf16 %v1225, %v1225
        %vm1227 = vcmask 48128
        %v1229 = vsel %vm1227, %v1226, 0
        %vm1231 = vcmask 1042432
        %v1233 = vsel %vm1231, %v1191, 0
        %1235 = vmatpush.bf16.msra.mxu0 0
        %1236 = vmatpush.bf16.msra.mxu0 0
        %1237 = vmatpush.bf16.msra.mxu0 0
        %1238 = vmatpush.bf16.msra.mxu0 0
        %1239 = vmatpush.bf16.msra.mxu0 0
        %1240 = vmatpush.bf16.msra.mxu0 0
        %1241 = vmatpush.bf16.msra.mxu0 0
        %1242 = vmatpush.bf16.msra.mxu0 %v1233
        %1243 = vmatmul.bf16.gmra.mxu0 %v1229
        %v1244 = vpop.f32.mrf.mxu0
        %v1245 = vadd.f32 0.0, %v1244
        %v1246 = vpop.f32.mrf.mxu0
        %1247 = vdwg.mxu0
        %v1249 = vunpack.c.l.b16 %v1189
        %v1250 = vpack.c.b16 %v1249, %v1249
        %1251 = vrot.lane.b32.xlu0 %v1250, 120
        %v1252 = vpop.permute.xlu0 %1251
        %v1254 = vunpack.c.l.b16 %v1190
        %v1255 = vpack.c.b16 %v1254, %v1254
        %1256 = vrot.lane.b32.xlu0 %v1255, 120
        %v1257 = vpop.permute.xlu0 %1256
        %v1259 = vsel %vm791, %v1252, 0
        %v1262 = vsel %vm791, %v1257, 0
        %1264 = vmatpush.bf16.xpose.msra.mxu0 0
        %1265 = vmatpush.bf16.xpose.msra.mxu0 0
        %1266 = vmatpush.bf16.xpose.msra.mxu0 0
        %1267 = vmatpush.bf16.xpose.msra.mxu0 0
        %1268 = vmatpush.bf16.xpose.msra.mxu0 0
        %1269 = vmatpush.bf16.xpose.msra.mxu0 0
        %1270 = vmatpush.bf16.xpose.msra.mxu0 0
        %1271 = vmatpush.bf16.xpose.msra.mxu0 %v1262
        %1272 = vmatmul.bf16.gmra.mxu0 %v1259
        %v1273 = vpop.f32.mrf.mxu0
        %v1274 = vadd.f32 %v1193, %v1273
        %v1275 = vpop.f32.mrf.mxu0
        %1276 = vdwg.mxu0
        %v1277 = vsel %vm1214, %v1274, -inf
        %1278 = vmax.xlane.f32.xlu0 %v1277
        %v1279 = vpop.xlane.xlu0 %1278
        %v1280 = vsub.f32 %v1274, %v1279
        %v1281 = vmul.f32 %v1280, 1.442695
        %v1282 = vpow.pop %v1281
        %v1283 = vsel %vm1214, %v1282, 0.0
        %1284 = vadd.xlane.f32.xlu0 %v1283
        %v1285 = vpop.xlane.xlu0 %1284
        %v1286 = vrcp.pop %v1285
        %v1287 = vmul.f32 %v1282, %v1286
        %v1288 = vpack.c.bf16 %v1287, %v1287
        %v1290 = vunpack.c.l.b16 %v1191
        %v1291 = vpack.c.b16 %v1290, %v1290
        %1292 = vrot.lane.b32.xlu0 %v1291, 120
        %v1293 = vpop.permute.xlu0 %1292
        %v1295 = vsel %vm1227, %v1288, 0
        %v1298 = vsel %vm1231, %v1293, 0
        %1300 = vmatpush.bf16.msra.mxu0 0
        %1301 = vmatpush.bf16.msra.mxu0 0
        %1302 = vmatpush.bf16.msra.mxu0 0
        %1303 = vmatpush.bf16.msra.mxu0 0
        %1304 = vmatpush.bf16.msra.mxu0 0
        %1305 = vmatpush.bf16.msra.mxu0 0
        %1306 = vmatpush.bf16.msra.mxu0 0
        %1307 = vmatpush.bf16.msra.mxu0 %v1298
        %1308 = vmatmul.bf16.gmra.mxu0 %v1295
        %v1309 = vpop.f32.mrf.mxu0
        %v1310 = vadd.f32 0.0, %v1309
        %v1311 = vpop.f32.mrf.mxu0
        %1312 = vdwg.mxu0
        %1313 = vrot.lane.b32.xlu0 %v1250, 112
        %v1314 = vpop.permute.xlu0 %1313
        %1315 = vrot.lane.b32.xlu0 %v1255, 112
        %v1316 = vpop.permute.xlu0 %1315
        %v1318 = vsel %vm791, %v1314, 0
        %v1321 = vsel %vm791, %v1316, 0
        %1323 = vmatpush.bf16.xpose.msra.mxu0 0
        %1324 = vmatpush.bf16.xpose.msra.mxu0 0
        %1325 = vmatpush.bf16.xpose.msra.mxu0 0
        %1326 = vmatpush.bf16.xpose.msra.mxu0 0
        %1327 = vmatpush.bf16.xpose.msra.mxu0 0
        %1328 = vmatpush.bf16.xpose.msra.mxu0 0
        %1329 = vmatpush.bf16.xpose.msra.mxu0 0
        %1330 = vmatpush.bf16.xpose.msra.mxu0 %v1321
        %1331 = vmatmul.bf16.gmra.mxu0 %v1318
        %v1332 = vpop.f32.mrf.mxu0
        %v1333 = vadd.f32 %v1193, %v1332
        %v1334 = vpop.f32.mrf.mxu0
        %1335 = vdwg.mxu0
        %v1336 = vsel %vm1214, %v1333, -inf
        %1337 = vmax.xlane.f32.xlu0 %v1336
        %v1338 = vpop.xlane.xlu0 %1337
        %v1339 = vsub.f32 %v1333, %v1338
        %v1340 = vmul.f32 %v1339, 1.442695
        %v1341 = vpow.pop %v1340
        %v1342 = vsel %vm1214, %v1341, 0.0
        %1343 = vadd.xlane.f32.xlu0 %v1342
        %v1344 = vpop.xlane.xlu0 %1343
        %v1345 = vrcp.pop %v1344
        %v1346 = vmul.f32 %v1341, %v1345
        %v1347 = vpack.c.bf16 %v1346, %v1346
        %1348 = vrot.lane.b32.xlu0 %v1291, 112
        %v1349 = vpop.permute.xlu0 %1348
        %v1351 = vsel %vm1227, %v1347, 0
        %v1354 = vsel %vm1231, %v1349, 0
        %1356 = vmatpush.bf16.msra.mxu0 0
        %1357 = vmatpush.bf16.msra.mxu0 0
        %1358 = vmatpush.bf16.msra.mxu0 0
        %1359 = vmatpush.bf16.msra.mxu0 0
        %1360 = vmatpush.bf16.msra.mxu0 0
        %1361 = vmatpush.bf16.msra.mxu0 0
        %1362 = vmatpush.bf16.msra.mxu0 0
        %1363 = vmatpush.bf16.msra.mxu0 %v1354
        %1364 = vmatmul.bf16.gmra.mxu0 %v1351
        %v1365 = vpop.f32.mrf.mxu0
        %v1366 = vadd.f32 0.0, %v1365
        %v1367 = vpop.f32.mrf.mxu0
        %1368 = vdwg.mxu0
        %1369 = vrot.lane.b32.xlu0 %v1250, 104
        %v1370 = vpop.permute.xlu0 %1369
        %1371 = vrot.lane.b32.xlu0 %v1255, 104
        %v1372 = vpop.permute.xlu0 %1371
        %v1374 = vsel %vm791, %v1370, 0
        %v1377 = vsel %vm791, %v1372, 0
        %1379 = vmatpush.bf16.xpose.msra.mxu0 0
        %1380 = vmatpush.bf16.xpose.msra.mxu0 0
        %1381 = vmatpush.bf16.xpose.msra.mxu0 0
        %1382 = vmatpush.bf16.xpose.msra.mxu0 0
        %1383 = vmatpush.bf16.xpose.msra.mxu0 0
        %1384 = vmatpush.bf16.xpose.msra.mxu0 0
        %1385 = vmatpush.bf16.xpose.msra.mxu0 0
        %1386 = vmatpush.bf16.xpose.msra.mxu0 %v1377
        %1387 = vmatmul.bf16.gmra.mxu0 %v1374
        %v1388 = vpop.f32.mrf.mxu0
        %v1389 = vadd.f32 %v1193, %v1388
        %v1390 = vpop.f32.mrf.mxu0
        %1391 = vdwg.mxu0
        %v1392 = vsel %vm1214, %v1389, -inf
        %1393 = vmax.xlane.f32.xlu0 %v1392
        %v1394 = vpop.xlane.xlu0 %1393
        %v1395 = vsub.f32 %v1389, %v1394
        %v1396 = vmul.f32 %v1395, 1.442695
        %v1397 = vpow.pop %v1396
        %v1398 = vsel %vm1214, %v1397, 0.0
        %1399 = vadd.xlane.f32.xlu0 %v1398
        %v1400 = vpop.xlane.xlu0 %1399
        %v1401 = vrcp.pop %v1400
        %v1402 = vmul.f32 %v1397, %v1401
        %v1403 = vpack.c.bf16 %v1402, %v1402
        %1404 = vrot.lane.b32.xlu0 %v1291, 104
        %v1405 = vpop.permute.xlu0 %1404
        %v1407 = vsel %vm1227, %v1403, 0
        %v1410 = vsel %vm1231, %v1405, 0
        %1412 = vmatpush.bf16.msra.mxu0 0
        %1413 = vmatpush.bf16.msra.mxu0 0
        %1414 = vmatpush.bf16.msra.mxu0 0
        %1415 = vmatpush.bf16.msra.mxu0 0
        %1416 = vmatpush.bf16.msra.mxu0 0
        %1417 = vmatpush.bf16.msra.mxu0 0
        %1418 = vmatpush.bf16.msra.mxu0 0
        %1419 = vmatpush.bf16.msra.mxu0 %v1410
        %1420 = vmatmul.bf16.gmra.mxu0 %v1407
        %v1421 = vpop.f32.mrf.mxu0
        %v1422 = vadd.f32 0.0, %v1421
        %v1423 = vpop.f32.mrf.mxu0
        %1424 = vdwg.mxu0
        %1426 = vrot.lane.b32.xlu0 %v1310, 8
        %v1427 = vpop.permute.xlu0 %1426
        %1430 = vrot.lane.b32.xlu0 %v1366, 16
        %v1431 = vpop.permute.xlu0 %1430
        %1434 = vrot.lane.b32.xlu0 %v1422, 24
        %v1435 = vpop.permute.xlu0 %1434
        %v1437 = vsel %vm791, %v1245, %v1427
        %v1438 = vsel %vm1035, %v1437, %v1431
        %v1439 = vsel %vm1037, %v1438, %v1435
        %v1440 = vpack.c.bf16 %v1439, %v1439
        %v1441 = vld [vmem:[#allocation10] sm:$0xf]
        %v1442 = vld [vmem:[#allocation10 + $0x4] sm:$0xf]
        %v1443 = vld [vmem:[#allocation10 + $0x8] sm:$0xf]
        %v1444 = vld [vmem:[#allocation10 + $0xc] sm:$0xf]
        %v1449 = vunpack.c.l.b16 %v1441
        %v1450 = vunpack.c.l.b16 %v1442
        %v1451 = vunpack.c.l.b16 %v1443
        %v1452 = vunpack.c.l.b16 %v1444
        %v1453 = vpack.c.b16 %v1450, %v1449
        %v1454 = vpack.c.b16 %v1452, %v1451
        %v1458 = vsel %vm713, %v1440, 0
        %1460 = vmatpush.bf16.msra.mxu0 0
        %1461 = vmatpush.bf16.msra.mxu0 0
        %1462 = vmatpush.bf16.msra.mxu0 0
        %1463 = vmatpush.bf16.msra.mxu0 0
        %1464 = vmatpush.bf16.msra.mxu0 0
        %1465 = vmatpush.bf16.msra.mxu0 0
        %1466 = vmatpush.bf16.msra.mxu0 %v1454
        %1467 = vmatpush.bf16.msra.mxu0 %v1453
        %1468 = vmatmul.bf16.gmra.mxu0 %v1458
        %v1469 = vpop.f32.mrf.mxu0
        %v1470 = vadd.f32 0.0, %v1469
        %v1471 = vpop.f32.mrf.mxu0
        %1472 = vdwg.mxu0
        %v1473 = vadd.f32 %v1072, %v1470
        %v1474 = vmul.f32 %v1473, %v1473
        %v1475 = vsel %vm667, %v1474, 0.0
        %1476 = vadd.xlane.f32.xlu0 %v1475
        %v1477 = vpop.xlane.xlu0 %1476
        %v1478 = vmul.f32 %v1477, %v677
        %v1479 = vadd.f32 %v1478, 1e-06
        %v1480 = vrsqrt.pop %v1479
        %v1481 = vmul.f32 %v1480, %v1479
        %v1482 = vmul.f32 %v1481, %v1480
        %v1483 = vmul.f32 0.5, %v1482
        %v1484 = vsub.f32 1.5, %v1483
        %v1485 = vmul.f32 %v1480, %v1484
        %vm1486 = vweird.f32 %v1479
        %vm1487 = vweird.f32 %v1480
        %vm1488 = vmor %vm1486, %vm1487
        %v1489 = vsel %vm1488, %v1480, %v1485
        %v1490 = vmul.f32 %v1473, %v1489
        %v1491 = vld [vmem:[#allocation11] sm:$0x1]
        %v1493 = vperm.slane %v1491, 0
        %v1495 = vmul.f32 %v1490, %v1493
        %v1496 = vpack.c.bf16 %v1495, %v1495
        %v1497 = vld [vmem:[#allocation13] sm:$0xf]
        %v1498 = vld [vmem:[#allocation13 + $0x4] sm:$0xf]
        %v1499 = vld [vmem:[#allocation13 + $0x8] sm:$0xf]
        %v1500 = vld [vmem:[#allocation13 + $0xc] sm:$0xf]
        %v1505 = vunpack.c.l.b16 %v1497
        %v1506 = vunpack.c.l.b16 %v1498
        %v1507 = vunpack.c.l.b16 %v1499
        %v1508 = vunpack.c.l.b16 %v1500
        %v1509 = vpack.c.b16 %v1506, %v1505
        %v1510 = vpack.c.b16 %v1508, %v1507
        %v1514 = vsel %vm713, %v1496, 0
        %1516 = vmatpush.bf16.msra.mxu0 0
        %1517 = vmatpush.bf16.msra.mxu0 0
        %1518 = vmatpush.bf16.msra.mxu0 0
        %1519 = vmatpush.bf16.msra.mxu0 0
        %1520 = vmatpush.bf16.msra.mxu0 0
        %1521 = vmatpush.bf16.msra.mxu0 0
        %1522 = vmatpush.bf16.msra.mxu0 %v1510
        %1523 = vmatpush.bf16.msra.mxu0 %v1509
        %1524 = vmatmul.bf16.gmra.mxu0 %v1514
        %v1525 = vpop.f32.mrf.mxu0
        %v1526 = vadd.f32 0.0, %v1525
        %v1527 = vpop.f32.mrf.mxu0
        %1528 = vdwg.mxu0
        %v1529 = vmul.f32 %v1526, 0.5
        %v1530 = vmul.f32 %v1526, 0.044715
        %v1531 = vmul.f32 %v1530, %v1526
        %v1532 = vmul.f32 %v1531, %v1526
        %v1533 = vadd.f32 %v1526, %v1532
        %v1534 = vmul.f32 %v1533, 0.7978846
        %v1535 = vtanh.pop %v1534
        %v1536 = vadd.f32 %v1535, 1.0
        %v1537 = vmul.f32 %v1529, %v1536
        %1539 = vrot.lane.b32.xlu0 %v1526, 64
        %v1540 = vpop.permute.xlu0 %1539
        %v1542 = vmul.f32 %v1537, %v1540
        %v1543 = vpack.c.bf16 %v1542, %v1542
        %v1544 = vld [vmem:[%s15] sm:$0xf]
        %v1545 = vld [vmem:[%s15 + $0x4] sm:$0xf]
        %v1546 = vld [vmem:[%s15 + $0x8] sm:$0xf]
        %v1547 = vld [vmem:[%s15 + $0xc] sm:$0xf]
        %v1548 = vld [vmem:[%s15 + $0x10] sm:$0xf]
        %v1549 = vld [vmem:[%s15 + $0x14] sm:$0xf]
        %v1550 = vld [vmem:[%s15 + $0x18] sm:$0xf]
        %v1551 = vld [vmem:[%s15 + $0x1c] sm:$0xf]
        %v1560 = vunpack.c.l.b16 %v1544
        %v1561 = vunpack.c.l.b16 %v1545
        %v1562 = vunpack.c.l.b16 %v1546
        %v1563 = vunpack.c.l.b16 %v1547
        %v1564 = vunpack.c.l.b16 %v1548
        %v1565 = vunpack.c.l.b16 %v1549
        %v1566 = vunpack.c.l.b16 %v1550
        %v1567 = vunpack.c.l.b16 %v1551
        %v1568 = vpack.c.b16 %v1561, %v1560
        %v1569 = vpack.c.b16 %v1563, %v1562
        %v1570 = vpack.c.b16 %v1565, %v1564
        %v1571 = vpack.c.b16 %v1567, %v1566
        %vm1576 = vcmask 523264
        %v1578 = vsel %vm1576, %v1543, 0
        %1580 = vmatpush.bf16.msra.mxu0 0
        %1581 = vmatpush.bf16.msra.mxu0 0
        %1582 = vmatpush.bf16.msra.mxu0 0
        %1583 = vmatpush.bf16.msra.mxu0 0
        %1584 = vmatpush.bf16.msra.mxu0 %v1571
        %1585 = vmatpush.bf16.msra.mxu0 %v1570
        %1586 = vmatpush.bf16.msra.mxu0 %v1569
        %1587 = vmatpush.bf16.msra.mxu0 %v1568
        %1588 = vmatmul.bf16.gmra.mxu0 %v1578
        %v1589 = vpop.f32.mrf.mxu0
        %v1590 = vadd.f32 0.0, %v1589
        %v1591 = vpop.f32.mrf.mxu0
        %1592 = vdwg.mxu0
        %v1593 = vadd.f32 %v1473, %v1590
        %1594 = vst.msk [vmem:[%s650] sm:$0xf] %vm667, %v1593
        %s1595 = sand.u32 %s393, 1
        %s1596 = scalar_lea.sflag [#allocation4], %s1595
        %s1597 = sand.u32 %s393, 1
        %s1598 = smul.addr %s1597, 4
        %s1599 = scalar_lea.vmem [#allocation14], %s1598
        // Predicated region
        $region113: #{tpu_custom_call.1} parent=83 // pred_check
          %p1600 = pneg %p403
        $region114: #{tpu_custom_call.1} parent=83 // pred_check_branch
          %1602 = sbr.rel (%p1600) target = $region116
        $region115: #{tpu_custom_call.1} parent=83 // pred_region
          %1604 = vsyncadd %s1596, 0
          %s1605 = smul.addr %s34, 4
          %s1606 = scalar_lea.hbm %s16, %s1605
          %s1608 = sshll.u32 %s1599, 4
          %s1609 = int_to_ptr.vmem [resolvable:$true] %s1608
          %s1610 = sshll.u32 %s1606, 4
          %s1611 = int_to_ptr.hbm [resolvable:$true] %s1610
          %1613 = dma.vmem_to_hbm [thread:$0]  %s1609, 64, %s1611, %s1596
        $region116: #{tpu_custom_call.1} parent=83 // pred_fallthru
          _
      $region84: #{tpu_custom_call.1} parent=5 // pred_fallthru
        _
      %p1614 = scmp.le.s32.totalorder 2, %s29
      // Predicated region
      $region117: #{tpu_custom_call.1} parent=5 // pred_check
        %p1615 = pneg %p1614
      $region118: #{tpu_custom_call.1} parent=5 // pred_check_branch
        %1617 = sbr.rel (%p1615) target = $region120
      $region119: #{tpu_custom_call.1} parent=5 // pred_region
        %s1618 = ssub.s32 %s29, 2
        // Predicated region
        $region121: #{tpu_custom_call.1} parent=119 // pred_check
          %p1619 = pneg %p409
        $region122: #{tpu_custom_call.1} parent=119 // pred_check_branch
          %1621 = sbr.rel (%p1619) target = $region124
        $region123: #{tpu_custom_call.1} parent=119 // pred_region
          %s1622 = sand.u32 %s394, 1
          %s1623 = scalar_lea.sflag [#allocation4], %s1622
          %s1624 = sand.u32 %s394, 1
          %s1625 = smul.addr %s1624, 4
          %s1626 = scalar_lea.vmem [#allocation14], %s1625
          %1628 = dma.done %s1623, 64
        $region124: #{tpu_custom_call.1} parent=119 // pred_fallthru
          _
      $region120: #{tpu_custom_call.1} parent=5 // pred_fallthru
        _
    $region6: #{tpu_custom_call.1} parent=1 // loop_footer
      %s33 = sadd.s32 1, %s29
    $region7: #{tpu_custom_call.1} parent=1 // loop_footer_branch
      %28 = sbr.rel target = $region3
    $region8: #{tpu_custom_call.1} parent=1 // loop_exit
      _
    %1629 = vsyncpa [#allocation3], 1
    %s1630 = scalar_lea.sflag [#allocation3], 1
    %1631 = vsyncpa %s1630, 1
    %1632 = vsyncpa [#allocation6], 1
    %1633 = vsyncpa [#allocation9], 1
    %1634 = vsyncpa [#allocation12], 1
    %1635 = vsyncpa [#allocation4], 1
    %s1636 = scalar_lea.sflag [#allocation4], 1
    %1637 = vsyncpa %s1636, 1

// kernel: tpu_custom_call.1
$region0: #{tpu_custom_call.1}
  #allocation0 [shape = 'u32[]', space=smem, size = 0x4, offset = 0x4, fixed_abs, tag = 'smem constant byte address 0x4 - core index']
  #allocation1 [shape = 'u32[72,128]{1,0:T(1,128)}', space=vmem, size = 0x9000, scoped, tag = 'internal scratch']
  %s0 = inlined_call_operand.vmem [shape: f32[2,4,32], index: 0, kind: input, shape index: {}]
  %s1 = inlined_call_operand.vmem [shape: bf16[2,6,32], index: 1, kind: input, shape index: {}]
  %s2 = inlined_call_operand.vmem [shape: f32[2,1,6], index: 2, kind: input, shape index: {}]
  %s3 = inlined_call_operand.vmem [shape: f32[1,32], index: 3, kind: input, shape index: {}]
  %s4 = inlined_call_operand.vmem [shape: bf16[32,32], index: 4, kind: input, shape index: {}]
  %s5 = inlined_call_operand.vmem [shape: bf16[32,32], index: 5, kind: input, shape index: {}]
  %s6 = inlined_call_operand.vmem [shape: bf16[32,32], index: 6, kind: input, shape index: {}]
  %s7 = inlined_call_operand.hbm [shape: bf16[32,32], index: 7, kind: input, shape index: {}]
  %s8 = inlined_call_operand.vmem [shape: f32[1,32], index: 8, kind: input, shape index: {}]
  %s9 = inlined_call_operand.hbm [shape: bf16[32,32], index: 9, kind: input, shape index: {}]
  %s10 = inlined_call_operand.hbm [shape: bf16[32,32], index: 10, kind: input, shape index: {}]
  %s11 = inlined_call_operand.hbm [shape: bf16[32,32], index: 11, kind: input, shape index: {}]
  %s12 = inlined_call_operand.hbm [shape: bf16[32,32], index: 12, kind: input, shape index: {}]
  %s13 = inlined_call_operand.hbm [shape: f32[1,32], index: 13, kind: input, shape index: {}]
  %s14 = inlined_call_operand.hbm [shape: bf16[32,128], index: 14, kind: input, shape index: {}]
  %s15 = inlined_call_operand.vmem [shape: bf16[64,32], index: 15, kind: input, shape index: {}]
  %s16 = inlined_call_operand.hbm [shape: f32[2,4,32], index: 16, kind: output, shape index: {}]
  %s17 = sld [smem:[#allocation0]]
  $region125: #{tpu_custom_call.1} parent=0
    _
  %s19 = ssub.s32 1, %s17
  %s20 = scalar_select 0, %s19, %s17
  $region1: #{tpu_custom_call.1} parent=0
    #allocation2 [shape = 'u8[8192]{0}', space=vmem, size = 0x2000, scoped, tag = 'input window, operand 7, single buffered']
    #allocation3 [shape = 's32[2]{0}', space=sflag, size = 0x8, scoped, tag = 'scoped memory for tpu_custom_call.1']
    #allocation4 [shape = 's32[2]{0}', space=sflag, size = 0x8, scoped, tag = 'scoped memory for tpu_custom_call.1']
    #allocation5 [shape = 'u8[8192]{0}', space=vmem, size = 0x2000, scoped, tag = 'input window, operand 9, single buffered']
    #allocation6 [shape = 's32[1]{0}', space=sflag, size = 0x4, scoped, tag = 'scoped memory for tpu_custom_call.1']
    #allocation7 [shape = 'u8[8192]{0}', space=vmem, size = 0x2000, scoped, tag = 'input window, operand 10, single buffered']
    #allocation8 [shape = 'u8[8192]{0}', space=vmem, size = 0x2000, scoped, tag = 'input window, operand 11, single buffered']
    #allocation9 [shape = 's32[1]{0}', space=sflag, size = 0x4, scoped, tag = 'scoped memory for tpu_custom_call.1']
    #allocation10 [shape = 'u8[8192]{0}', space=vmem, size = 0x2000, scoped, tag = 'input window, operand 12, single buffered']
    #allocation11 [shape = 'u8[512]{0}', space=vmem, size = 0x400, scoped, tag = 'input window, operand 13, single buffered']
    #allocation12 [shape = 's32[1]{0}', space=sflag, size = 0x4, scoped, tag = 'scoped memory for tpu_custom_call.1']
    #allocation13 [shape = 'u8[8192]{0}', space=vmem, size = 0x2000, scoped, tag = 'input window, operand 14, single buffered']
    #allocation14 [shape = 'u8[4096]{0}', space=vmem, size = 0x1000, scoped, tag = 'output window, operand 0']
    %21 = vsyncpa [#allocation3], 0
    %22 = vsyncpa [#allocation6], 0
    %23 = vsyncpa [#allocation9], 0
    %24 = vsyncpa [#allocation12], 0
    %25 = vsyncpa [#allocation4], 0
    %s26 = scalar_lea.sflag [#allocation4], 1
    %27 = vsyncpa %s26, 0
    loop: start=0, step=1, limit=4
    $region2: #{tpu_custom_call.1} parent=1 // loop_pre_header
      _
    $region3: #{tpu_custom_call.1} parent=1 // loop_header
      %s29 = sphi 0, %s33
      %p30 = scmp.ge.s32.totalorder %s29, 4
      %s39 = sphi 0, %s41
      %s42 = sphi 0, %s39
      %s43 = sphi 0, %s42
      %s59 = sphi 0, %s43
      %s65 = sphi 0, %s67
      %s68 = sphi 0, %s65
      %s69 = sphi 0, %s68
      %s85 = sphi 0, %s69
      %s91 = sphi 0, %s93
      %s94 = sphi 0, %s91
      %s95 = sphi 0, %s94
      %s111 = sphi 0, %s95
      %s115 = sphi 0, %s115
      %s117 = sphi 0, %s115
      %s118 = sphi 0, %s117
      %s132 = sphi 0, %s118
      %s136 = sphi 0, %s136
      %s138 = sphi 0, %s136
      %s139 = sphi 0, %s138
      %s153 = sphi 0, %s139
      %s157 = sphi 0, %s157
      %s159 = sphi 0, %s157
      %s160 = sphi 0, %s159
      %s174 = sphi 0, %s160
      %s178 = sphi 0, %s178
      %s180 = sphi 0, %s178
      %s181 = sphi 0, %s180
      %s195 = sphi 0, %s181
      %s199 = sphi 0, %s199
      %s201 = sphi 0, %s199
      %s202 = sphi 0, %s201
      %s216 = sphi 0, %s202
      %s220 = sphi 0, %s220
      %s222 = sphi 0, %s220
      %s223 = sphi 0, %s222
      %s237 = sphi 0, %s223
      %s241 = sphi 0, %s241
      %s243 = sphi 0, %s241
      %s244 = sphi 0, %s243
      %s258 = sphi 0, %s244
      %s262 = sphi 0, %s262
      %s264 = sphi 0, %s262
      %s265 = sphi 0, %s264
      %s279 = sphi 0, %s265
      %s283 = sphi 0, %s283
      %s285 = sphi 0, %s283
      %s286 = sphi 0, %s285
      %s300 = sphi 0, %s286
      %s304 = sphi 0, %s304
      %s306 = sphi 0, %s304
      %s307 = sphi 0, %s306
      %s321 = sphi 0, %s307
      %s325 = sphi 0, %s325
      %s327 = sphi 0, %s325
      %s328 = sphi 0, %s327
      %s342 = sphi 0, %s328
      %s346 = sphi 0, %s346
      %s348 = sphi 0, %s346
      %s349 = sphi 0, %s348
      %s363 = sphi 0, %s349
      %s367 = sphi 0, %s367
      %s369 = sphi 0, %s367
      %s370 = sphi 0, %s369
      %s384 = sphi 0, %s370
      %s390 = sphi 0, %s392
      %s393 = sphi 0, %s390
      %s394 = sphi 0, %s393
      %s410 = sphi 0, %s394
    $region4: #{tpu_custom_call.1} parent=1 // loop_header_branch
      %32 = sbr.rel (%p30) target = $region8
    $region5: #{tpu_custom_call.1} parent=1 // loop_body
      %s34 = ssub.s32 %s29, 1
      %s35 = ssub.s32 %s29, 2
      %s36 = sadd.s32 %s29, 1
      %s37 = ssub.s32 %s29, %s36
      %p38 = scmp.eq.s32.totalorder %s37, 0
      %s40 = sadd.s32 %s39, 1
      %s41 = scalar_select %p38, %s39, %s40
      %p44 = pneg %p38
      %p45 = scmp.eq.s32.totalorder %s29, 1
      %p46 = por %p44, %p45
      %p47 = scmp.ne.s32.totalorder %s39, %s42
      %p48 = scmp.eq.s32.totalorder %s29, 0
      %p49 = por %p47, %p48
      %p50 = scmp.ne.s32.totalorder %s39, %s42
      %p51 = scmp.eq.s32.totalorder %s34, 1
      %p52 = por %p50, %p51
      %p53 = scmp.ne.s32.totalorder %s42, %s43
      %p54 = scmp.eq.s32.totalorder %s34, 0
      %p55 = por %p53, %p54
      %p56 = scmp.ne.s32.totalorder %s42, %s43
      %p57 = scmp.eq.s32.totalorder %s35, 1
      %p58 = por %p56, %p57
      %p60 = scmp.ne.s32.totalorder %s43, %s59
      %p61 = scmp.eq.s32.totalorder %s35, 0
      %p62 = por %p60, %p61
      %s63 = ssub.s32 %s29, %s36
      %p64 = scmp.eq.s32.totalorder %s63, 0
      %s66 = sadd.s32 %s65, 1
      %s67 = scalar_select %p64, %s65, %s66
      %p70 = pneg %p64
      %p71 = scmp.eq.s32.totalorder %s29, 1
      %p72 = por %p70, %p71
      %p73 = scmp.ne.s32.totalorder %s65, %s68
      %p74 = scmp.eq.s32.totalorder %s29, 0
      %p75 = por %p73, %p74
      %p76 = scmp.ne.s32.totalorder %s65, %s68
      %p77 = scmp.eq.s32.totalorder %s34, 1
      %p78 = por %p76, %p77
      %p79 = scmp.ne.s32.totalorder %s68, %s69
      %p80 = scmp.eq.s32.totalorder %s34, 0
      %p81 = por %p79, %p80
      %p82 = scmp.ne.s32.totalorder %s68, %s69
      %p83 = scmp.eq.s32.totalorder %s35, 1
      %p84 = por %p82, %p83
      %p86 = scmp.ne.s32.totalorder %s69, %s85
      %p87 = scmp.eq.s32.totalorder %s35, 0
      %p88 = por %p86, %p87
      %s89 = ssub.s32 %s29, %s36
      %p90 = scmp.eq.s32.totalorder %s89, 0
      %s92 = sadd.s32 %s91, 1
      %s93 = scalar_select %p90, %s91, %s92
      %p96 = pneg %p90
      %p97 = scmp.eq.s32.totalorder %s29, 1
      %p98 = por %p96, %p97
      %p99 = scmp.ne.s32.totalorder %s91, %s94
      %p100 = scmp.eq.s32.totalorder %s29, 0
      %p101 = por %p99, %p100
      %p102 = scmp.ne.s32.totalorder %s91, %s94
      %p103 = scmp.eq.s32.totalorder %s34, 1
      %p104 = por %p102, %p103
      %p105 = scmp.ne.s32.totalorder %s94, %s95
      %p106 = scmp.eq.s32.totalorder %s34, 0
      %p107 = por %p105, %p106
      %p108 = scmp.ne.s32.totalorder %s94, %s95
      %p109 = scmp.eq.s32.totalorder %s35, 1
      %p110 = por %p108, %p109
      %p112 = scmp.ne.s32.totalorder %s95, %s111
      %p113 = scmp.eq.s32.totalorder %s35, 0
      %p114 = por %p112, %p113
      %s116 = sadd.s32 %s115, 1
      %p119 = scmp.eq.s32.totalorder %s29, 1
      %p120 = scmp.ne.s32.totalorder %s115, %s117
      %p121 = scmp.eq.s32.totalorder %s29, 0
      %p122 = por %p120, %p121
      %p123 = scmp.ne.s32.totalorder %s115, %s117
      %p124 = scmp.eq.s32.totalorder %s34, 1
      %p125 = por %p123, %p124
      %p126 = scmp.ne.s32.totalorder %s117, %s118
      %p127 = scmp.eq.s32.totalorder %s34, 0
      %p128 = por %p126, %p127
      %p129 = scmp.ne.s32.totalorder %s117, %s118
      %p130 = scmp.eq.s32.totalorder %s35, 1
      %p131 = por %p129, %p130
      %p133 = scmp.ne.s32.totalorder %s118, %s132
      %p134 = scmp.eq.s32.totalorder %s35, 0
      %p135 = por %p133, %p134
      %s137 = sadd.s32 %s136, 1
      %p140 = scmp.eq.s32.totalorder %s29, 1
      %p141 = scmp.ne.s32.totalorder %s136, %s138
      %p142 = scmp.eq.s32.totalorder %s29, 0
      %p143 = por %p141, %p142
      %p144 = scmp.ne.s32.totalorder %s136, %s138
      %p145 = scmp.eq.s32.totalorder %s34, 1
      %p146 = por %p144, %p145
      %p147 = scmp.ne.s32.totalorder %s138, %s139
      %p148 = scmp.eq.s32.totalorder %s34, 0
      %p149 = por %p147, %p148
      %p150 = scmp.ne.s32.totalorder %s138, %s139
      %p151 = scmp.eq.s32.totalorder %s35, 1
      %p152 = por %p150, %p151
      %p154 = scmp.ne.s32.totalorder %s139, %s153
      %p155 = scmp.eq.s32.totalorder %s35, 0
      %p156 = por %p154, %p155
      %s158 = sadd.s32 %s157, 1
      %p161 = scmp.eq.s32.totalorder %s29, 1
      %p162 = scmp.ne.s32.totalorder %s157, %s159
      %p163 = scmp.eq.s32.totalorder %s29, 0
      %p164 = por %p162, %p163
      %p165 = scmp.ne.s32.totalorder %s157, %s159
      %p166 = scmp.eq.s32.totalorder %s34, 1
      %p167 = por %p165, %p166
      %p168 = scmp.ne.s32.totalorder %s159, %s160
      %p169 = scmp.eq.s32.totalorder %s34, 0
      %p170 = por %p168, %p169
      %p171 = scmp.ne.s32.totalorder %s159, %s160
      %p172 = scmp.eq.s32.totalorder %s35, 1
      %p173 = por %p171, %p172
      %p175 = scmp.ne.s32.totalorder %s160, %s174
      %p176 = scmp.eq.s32.totalorder %s35, 0
      %p177 = por %p175, %p176
      %s179 = sadd.s32 %s178, 1
      %p182 = scmp.eq.s32.totalorder %s29, 1
      %p183 = scmp.ne.s32.totalorder %s178, %s180
      %p184 = scmp.eq.s32.totalorder %s29, 0
      %p185 = por %p183, %p184
      %p186 = scmp.ne.s32.totalorder %s178, %s180
      %p187 = scmp.eq.s32.totalorder %s34, 1
      %p188 = por %p186, %p187
      %p189 = scmp.ne.s32.totalorder %s180, %s181
      %p190 = scmp.eq.s32.totalorder %s34, 0
      %p191 = por %p189, %p190
      %p192 = scmp.ne.s32.totalorder %s180, %s181
      %p193 = scmp.eq.s32.totalorder %s35, 1
      %p194 = por %p192, %p193
      %p196 = scmp.ne.s32.totalorder %s181, %s195
      %p197 = scmp.eq.s32.totalorder %s35, 0
      %p198 = por %p196, %p197
      %s200 = sadd.s32 %s199, 1
      %p203 = scmp.eq.s32.totalorder %s29, 1
      %p204 = scmp.ne.s32.totalorder %s199, %s201
      %p205 = scmp.eq.s32.totalorder %s29, 0
      %p206 = por %p204, %p205
      %p207 = scmp.ne.s32.totalorder %s199, %s201
      %p208 = scmp.eq.s32.totalorder %s34, 1
      %p209 = por %p207, %p208
      %p210 = scmp.ne.s32.totalorder %s201, %s202
      %p211 = scmp.eq.s32.totalorder %s34, 0
      %p212 = por %p210, %p211
      %p213 = scmp.ne.s32.totalorder %s201, %s202
      %p214 = scmp.eq.s32.totalorder %s35, 1
      %p215 = por %p213, %p214
      %p217 = scmp.ne.s32.totalorder %s202, %s216
      %p218 = scmp.eq.s32.totalorder %s35, 0
      %p219 = por %p217, %p218
      %s221 = sadd.s32 %s220, 1
      %p224 = scmp.eq.s32.totalorder %s29, 1
      %p225 = scmp.ne.s32.totalorder %s220, %s222
      %p226 = scmp.eq.s32.totalorder %s29, 0
      %p227 = por %p225, %p226
      %p228 = scmp.ne.s32.totalorder %s220, %s222
      %p229 = scmp.eq.s32.totalorder %s34, 1
      %p230 = por %p228, %p229
      %p231 = scmp.ne.s32.totalorder %s222, %s223
      %p232 = scmp.eq.s32.totalorder %s34, 0
      %p233 = por %p231, %p232
      %p234 = scmp.ne.s32.totalorder %s222, %s223
      %p235 = scmp.eq.s32.totalorder %s35, 1
      %p236 = por %p234, %p235
      %p238 = scmp.ne.s32.totalorder %s223, %s237
      %p239 = scmp.eq.s32.totalorder %s35, 0
      %p240 = por %p238, %p239
      %s242 = sadd.s32 %s241, 1
      %p245 = scmp.eq.s32.totalorder %s29, 1
      %p246 = scmp.ne.s32.totalorder %s241, %s243
      %p247 = scmp.eq.s32.totalorder %s29, 0
      %p248 = por %p246, %p247
      %p249 = scmp.ne.s32.totalorder %s241, %s243
      %p250 = scmp.eq.s32.totalorder %s34, 1
      %p251 = por %p249, %p250
      %p252 = scmp.ne.s32.totalorder %s243, %s244
      %p253 = scmp.eq.s32.totalorder %s34, 0
      %p254 = por %p252, %p253
      %p255 = scmp.ne.s32.totalorder %s243, %s244
      %p256 = scmp.eq.s32.totalorder %s35, 1
      %p257 = por %p255, %p256
      %p259 = scmp.ne.s32.totalorder %s244, %s258
      %p260 = scmp.eq.s32.totalorder %s35, 0
      %p261 = por %p259, %p260
      %s263 = sadd.s32 %s262, 1
      %p266 = scmp.eq.s32.totalorder %s29, 1
      %p267 = scmp.ne.s32.totalorder %s262, %s264
      %p268 = scmp.eq.s32.totalorder %s29, 0
      %p269 = por %p267, %p268
      %p270 = scmp.ne.s32.totalorder %s262, %s264
      %p271 = scmp.eq.s32.totalorder %s34, 1
      %p272 = por %p270, %p271
      %p273 = scmp.ne.s32.totalorder %s264, %s265
      %p274 = scmp.eq.s32.totalorder %s34, 0
      %p275 = por %p273, %p274
      %p276 = scmp.ne.s32.totalorder %s264, %s265
      %p277 = scmp.eq.s32.totalorder %s35, 1
      %p278 = por %p276, %p277
      %p280 = scmp.ne.s32.totalorder %s265, %s279
      %p281 = scmp.eq.s32.totalorder %s35, 0
      %p282 = por %p280, %p281
      %s284 = sadd.s32 %s283, 1
      %p287 = scmp.eq.s32.totalorder %s29, 1
      %p288 = scmp.ne.s32.totalorder %s283, %s285
      %p289 = scmp.eq.s32.totalorder %s29, 0
      %p290 = por %p288, %p289
      %p291 = scmp.ne.s32.totalorder %s283, %s285
      %p292 = scmp.eq.s32.totalorder %s34, 1
      %p293 = por %p291, %p292
      %p294 = scmp.ne.s32.totalorder %s285, %s286
      %p295 = scmp.eq.s32.totalorder %s34, 0
      %p296 = por %p294, %p295
      %p297 = scmp.ne.s32.totalorder %s285, %s286
      %p298 = scmp.eq.s32.totalorder %s35, 1
      %p299 = por %p297, %p298
      %p301 = scmp.ne.s32.totalorder %s286, %s300
      %p302 = scmp.eq.s32.totalorder %s35, 0
      %p303 = por %p301, %p302
      %s305 = sadd.s32 %s304, 1
      %p308 = scmp.eq.s32.totalorder %s29, 1
      %p309 = scmp.ne.s32.totalorder %s304, %s306
      %p310 = scmp.eq.s32.totalorder %s29, 0
      %p311 = por %p309, %p310
      %p312 = scmp.ne.s32.totalorder %s304, %s306
      %p313 = scmp.eq.s32.totalorder %s34, 1
      %p314 = por %p312, %p313
      %p315 = scmp.ne.s32.totalorder %s306, %s307
      %p316 = scmp.eq.s32.totalorder %s34, 0
      %p317 = por %p315, %p316
      %p318 = scmp.ne.s32.totalorder %s306, %s307
      %p319 = scmp.eq.s32.totalorder %s35, 1
      %p320 = por %p318, %p319
      %p322 = scmp.ne.s32.totalorder %s307, %s321
      %p323 = scmp.eq.s32.totalorder %s35, 0
      %p324 = por %p322, %p323
      %s326 = sadd.s32 %s325, 1
      %p329 = scmp.eq.s32.totalorder %s29, 1
      %p330 = scmp.ne.s32.totalorder %s325, %s327
      %p331 = scmp.eq.s32.totalorder %s29, 0
      %p332 = por %p330, %p331
      %p333 = scmp.ne.s32.totalorder %s325, %s327
      %p334 = scmp.eq.s32.totalorder %s34, 1
      %p335 = por %p333, %p334
      %p336 = scmp.ne.s32.totalorder %s327, %s328
      %p337 = scmp.eq.s32.totalorder %s34, 0
      %p338 = por %p336, %p337
      %p339 = scmp.ne.s32.totalorder %s327, %s328
      %p340 = scmp.eq.s32.totalorder %s35, 1
      %p341 = por %p339, %p340
      %p343 = scmp.ne.s32.totalorder %s328, %s342
      %p344 = scmp.eq.s32.totalorder %s35, 0
      %p345 = por %p343, %p344
      %s347 = sadd.s32 %s346, 1
      %p350 = scmp.eq.s32.totalorder %s29, 1
      %p351 = scmp.ne.s32.totalorder %s346, %s348
      %p352 = scmp.eq.s32.totalorder %s29, 0
      %p353 = por %p351, %p352
      %p354 = scmp.ne.s32.totalorder %s346, %s348
      %p355 = scmp.eq.s32.totalorder %s34, 1
      %p356 = por %p354, %p355
      %p357 = scmp.ne.s32.totalorder %s348, %s349
      %p358 = scmp.eq.s32.totalorder %s34, 0
      %p359 = por %p357, %p358
      %p360 = scmp.ne.s32.totalorder %s348, %s349
      %p361 = scmp.eq.s32.totalorder %s35, 1
      %p362 = por %p360, %p361
      %p364 = scmp.ne.s32.totalorder %s349, %s363
      %p365 = scmp.eq.s32.totalorder %s35, 0
      %p366 = por %p364, %p365
      %s368 = sadd.s32 %s367, 1
      %p371 = scmp.eq.s32.totalorder %s29, 1
      %p372 = scmp.ne.s32.totalorder %s367, %s369
      %p373 = scmp.eq.s32.totalorder %s29, 0
      %p374 = por %p372, %p373
      %p375 = scmp.ne.s32.totalorder %s367, %s369
      %p376 = scmp.eq.s32.totalorder %s34, 1
      %p377 = por %p375, %p376
      %p378 = scmp.ne.s32.totalorder %s369, %s370
      %p379 = scmp.eq.s32.totalorder %s34, 0
      %p380 = por %p378, %p379
      %p381 = scmp.ne.s32.totalorder %s369, %s370
      %p382 = scmp.eq.s32.totalorder %s35, 1
      %p383 = por %p381, %p382
      %p385 = scmp.ne.s32.totalorder %s370, %s384
      %p386 = scmp.eq.s32.totalorder %s35, 0
      %p387 = por %p385, %p386
      %s388 = ssub.s32 %s29, %s36
      %p389 = scmp.eq.s32.totalorder %s388, 0
      %s391 = sadd.s32 %s390, 1
      %s392 = scalar_select %p389, %s390, %s391
      %p395 = pneg %p389
      %p396 = scmp.eq.s32.totalorder %s29, 1
      %p397 = por %p395, %p396
      %p398 = scmp.ne.s32.totalorder %s390, %s393
      %p399 = scmp.eq.s32.totalorder %s29, 0
      %p400 = por %p398, %p399
      %p401 = scmp.ne.s32.totalorder %s390, %s393
      %p402 = scmp.eq.s32.totalorder %s34, 1
      %p403 = por %p401, %p402
      %p404 = scmp.ne.s32.totalorder %s393, %s394
      %p405 = scmp.eq.s32.totalorder %s34, 0
      %p406 = por %p404, %p405
      %p407 = scmp.ne.s32.totalorder %s393, %s394
      %p408 = scmp.eq.s32.totalorder %s35, 1
      %p409 = por %p407, %p408
      %p411 = scmp.ne.s32.totalorder %s394, %s410
      %p412 = scmp.eq.s32.totalorder %s35, 0
      %p413 = por %p411, %p412
      %p414 = scmp.le.s32.totalorder 1, %s29
      %p415 = scmp.lt.s32.totalorder %s29, 3
      %p416 = pnand %p414, %p415
      %p417 = pneg %p416
      // Predicated region
      $region9: #{tpu_custom_call.1} parent=5 // pred_check
        _
      $region10: #{tpu_custom_call.1} parent=5 // pred_check_branch
        %419 = sbr.rel (%p416) target = $region12
      $region11: #{tpu_custom_call.1} parent=5 // pred_region
        %s420 = ssub.s32 %s29, 1
        // Predicated region
        $region13: #{tpu_custom_call.1} parent=11 // pred_check
          %p421 = pneg %p128
        $region14: #{tpu_custom_call.1} parent=11 // pred_check_branch
          %423 = sbr.rel (%p421) target = $region16
        $region15: #{tpu_custom_call.1} parent=11 // pred_region
          _
        $region16: #{tpu_custom_call.1} parent=11 // pred_fallthru
          _
        // Predicated region
        $region17: #{tpu_custom_call.1} parent=11 // pred_check
          %p424 = pneg %p149
        $region18: #{tpu_custom_call.1} parent=11 // pred_check_branch
          %426 = sbr.rel (%p424) target = $region20
        $region19: #{tpu_custom_call.1} parent=11 // pred_region
          _
        $region20: #{tpu_custom_call.1} parent=11 // pred_fallthru
          _
        // Predicated region
        $region21: #{tpu_custom_call.1} parent=11 // pred_check
          %p427 = pneg %p170
        $region22: #{tpu_custom_call.1} parent=11 // pred_check_branch
          %429 = sbr.rel (%p427) target = $region24
        $region23: #{tpu_custom_call.1} parent=11 // pred_region
          _
        $region24: #{tpu_custom_call.1} parent=11 // pred_fallthru
          _
        // Predicated region
        $region25: #{tpu_custom_call.1} parent=11 // pred_check
          %p430 = pneg %p191
        $region26: #{tpu_custom_call.1} parent=11 // pred_check_branch
          %432 = sbr.rel (%p430) target = $region28
        $region27: #{tpu_custom_call.1} parent=11 // pred_region
          _
        $region28: #{tpu_custom_call.1} parent=11 // pred_fallthru
          _
        // Predicated region
        $region29: #{tpu_custom_call.1} parent=11 // pred_check
          %p433 = pneg %p212
        $region30: #{tpu_custom_call.1} parent=11 // pred_check_branch
          %435 = sbr.rel (%p433) target = $region32
        $region31: #{tpu_custom_call.1} parent=11 // pred_region
          %437 = vsyncadd [#allocation3], 0
          %s438 = sshll.u32 %s7, 4
          %s439 = int_to_ptr.hbm [resolvable:$true] %s438
          %s440 = sshll.u32 [#allocation2], 4
          %s441 = int_to_ptr.vmem [resolvable:$true] %s440
          %446 = dma.hbm_to_vmem [thread:$0]  %s439, 256, %s441, [#allocation3], 64, 64, 4
        $region32: #{tpu_custom_call.1} parent=11 // pred_fallthru
          _
        // Predicated region
        $region33: #{tpu_custom_call.1} parent=11 // pred_check
          %p447 = pneg %p233
        $region34: #{tpu_custom_call.1} parent=11 // pred_check_branch
          %449 = sbr.rel (%p447) target = $region36
        $region35: #{tpu_custom_call.1} parent=11 // pred_region
          _
        $region36: #{tpu_custom_call.1} parent=11 // pred_fallthru
          _
        // Predicated region
        $region37: #{tpu_custom_call.1} parent=11 // pred_check
          %p450 = pneg %p254
        $region38: #{tpu_custom_call.1} parent=11 // pred_check_branch
          %452 = sbr.rel (%p450) target = $region40
        $region39: #{tpu_custom_call.1} parent=11 // pred_region
          %454 = vsyncadd [#allocation6], 0
          %s455 = sshll.u32 %s9, 4
          %s456 = int_to_ptr.hbm [resolvable:$true] %s455
          %s457 = sshll.u32 [#allocation5], 4
          %s458 = int_to_ptr.vmem [resolvable:$true] %s457
          %463 = dma.hbm_to_vmem [thread:$0]  %s456, 256, %s458, [#allocation6], 64, 64, 4
        $region40: #{tpu_custom_call.1} parent=11 // pred_fallthru
          _
        // Predicated region
        $region41: #{tpu_custom_call.1} parent=11 // pred_check
          %p464 = pneg %p275
        $region42: #{tpu_custom_call.1} parent=11 // pred_check_branch
          %466 = sbr.rel (%p464) target = $region44
        $region43: #{tpu_custom_call.1} parent=11 // pred_region
          %468 = vsyncadd [#allocation6], 0
          %s469 = sshll.u32 %s10, 4
          %s470 = int_to_ptr.hbm [resolvable:$true] %s469
          %s471 = sshll.u32 [#allocation7], 4
          %s472 = int_to_ptr.vmem [resolvable:$true] %s471
          %477 = dma.hbm_to_vmem [thread:$0]  %s470, 256, %s472, [#allocation6], 64, 64, 4
        $region44: #{tpu_custom_call.1} parent=11 // pred_fallthru
          _
        // Predicated region
        $region45: #{tpu_custom_call.1} parent=11 // pred_check
          %p478 = pneg %p296
        $region46: #{tpu_custom_call.1} parent=11 // pred_check_branch
          %480 = sbr.rel (%p478) target = $region48
        $region47: #{tpu_custom_call.1} parent=11 // pred_region
          %482 = vsyncadd [#allocation9], 0
          %s483 = sshll.u32 %s11, 4
          %s484 = int_to_ptr.hbm [resolvable:$true] %s483
          %s485 = sshll.u32 [#allocation8], 4
          %s486 = int_to_ptr.vmem [resolvable:$true] %s485
          %491 = dma.hbm_to_vmem [thread:$0]  %s484, 256, %s486, [#allocation9], 64, 64, 4
        $region48: #{tpu_custom_call.1} parent=11 // pred_fallthru
          _
        // Predicated region
        $region49: #{tpu_custom_call.1} parent=11 // pred_check
          %p492 = pneg %p317
        $region50: #{tpu_custom_call.1} parent=11 // pred_check_branch
          %494 = sbr.rel (%p492) target = $region52
        $region51: #{tpu_custom_call.1} parent=11 // pred_region
          %496 = vsyncadd [#allocation9], 0
          %s497 = sshll.u32 %s12, 4
          %s498 = int_to_ptr.hbm [resolvable:$true] %s497
          %s499 = sshll.u32 [#allocation10], 4
          %s500 = int_to_ptr.vmem [resolvable:$true] %s499
          %505 = dma.hbm_to_vmem [thread:$0]  %s498, 256, %s500, [#allocation9], 64, 64, 4
        $region52: #{tpu_custom_call.1} parent=11 // pred_fallthru
          _
        // Predicated region
        $region53: #{tpu_custom_call.1} parent=11 // pred_check
          %p506 = pneg %p338
        $region54: #{tpu_custom_call.1} parent=11 // pred_check_branch
          %508 = sbr.rel (%p506) target = $region56
        $region55: #{tpu_custom_call.1} parent=11 // pred_region
          %510 = vsyncadd [#allocation12], 0
          %s512 = sshll.u32 %s13, 4
          %s513 = int_to_ptr.hbm [resolvable:$true] %s512
          %s514 = sshll.u32 [#allocation11], 4
          %s515 = int_to_ptr.vmem [resolvable:$true] %s514
          %517 = dma.hbm_to_vmem [thread:$0]  %s513, 16, %s515, [#allocation12]
        $region56: #{tpu_custom_call.1} parent=11 // pred_fallthru
          _
        // Predicated region
        $region57: #{tpu_custom_call.1} parent=11 // pred_check
          %p518 = pneg %p359
        $region58: #{tpu_custom_call.1} parent=11 // pred_check_branch
          %520 = sbr.rel (%p518) target = $region60
        $region59: #{tpu_custom_call.1} parent=11 // pred_region
          %522 = vsyncadd [#allocation12], 0
          %s523 = sshll.u32 %s14, 4
          %s524 = int_to_ptr.hbm [resolvable:$true] %s523
          %s525 = sshll.u32 [#allocation13], 4
          %s526 = int_to_ptr.vmem [resolvable:$true] %s525
          %531 = dma.hbm_to_vmem [thread:$0]  %s524, 256, %s526, [#allocation12], 64, 64, 4
        $region60: #{tpu_custom_call.1} parent=11 // pred_fallthru
          _
        // Predicated region
        $region61: #{tpu_custom_call.1} parent=11 // pred_check
          %p532 = pneg %p380
        $region62: #{tpu_custom_call.1} parent=11 // pred_check_branch
          %534 = sbr.rel (%p532) target = $region64
        $region63: #{tpu_custom_call.1} parent=11 // pred_region
          _
        $region64: #{tpu_custom_call.1} parent=11 // pred_fallthru
          _
      $region12: #{tpu_custom_call.1} parent=5 // pred_fallthru
        _
      %p535 = scmp.lt.s32.totalorder %s29, 2
      // Predicated region
      $region65: #{tpu_custom_call.1} parent=5 // pred_check
        %p536 = pneg %p535
      $region66: #{tpu_custom_call.1} parent=5 // pred_check_branch
        %538 = sbr.rel (%p536) target = $region68
      $region67: #{tpu_custom_call.1} parent=5 // pred_region
        // Predicated region
        $region69: #{tpu_custom_call.1} parent=67 // pred_check
          %p539 = pneg %p49
        $region70: #{tpu_custom_call.1} parent=67 // pred_check_branch
          %541 = sbr.rel (%p539) target = $region72
        $region71: #{tpu_custom_call.1} parent=67 // pred_region
          %p542 = scmp.lt.s32.totalorder %s29, 1
          %s543 = scalar_select %p542, %s29, 1
          %s544 = smul.addr %s543, 4
          %s545 = scalar_lea.vmem %s0, %s544
        $region72: #{tpu_custom_call.1} parent=67 // pred_fallthru
          _
        // Predicated region
        $region73: #{tpu_custom_call.1} parent=67 // pred_check
          %p546 = pneg %p75
        $region74: #{tpu_custom_call.1} parent=67 // pred_check_branch
          %548 = sbr.rel (%p546) target = $region76
        $region75: #{tpu_custom_call.1} parent=67 // pred_region
          %p549 = scmp.lt.s32.totalorder %s29, 1
          %s550 = scalar_select %p549, %s29, 1
          %s551 = smul.addr %s550, 4
          %s552 = scalar_lea.vmem %s1, %s551
        $region76: #{tpu_custom_call.1} parent=67 // pred_fallthru
          _
        // Predicated region
        $region77: #{tpu_custom_call.1} parent=67 // pred_check
          %p553 = pneg %p101
        $region78: #{tpu_custom_call.1} parent=67 // pred_check_branch
          %555 = sbr.rel (%p553) target = $region80
        $region79: #{tpu_custom_call.1} parent=67 // pred_region
          %p556 = scmp.lt.s32.totalorder %s29, 1
          %s557 = scalar_select %p556, %s29, 1
          %s558 = scalar_lea.vmem %s2, %s557
        $region80: #{tpu_custom_call.1} parent=67 // pred_fallthru
          _
      $region68: #{tpu_custom_call.1} parent=5 // pred_fallthru
        _
      %p559 = scmp.le.s32.totalorder 1, %s29
      %p560 = scmp.lt.s32.totalorder %s29, 3
      %p561 = pnand %p559, %p560
      %p562 = pneg %p561
      // Predicated region
      $region81: #{tpu_custom_call.1} parent=5 // pred_check
        _
      $region82: #{tpu_custom_call.1} parent=5 // pred_check_branch
        %564 = sbr.rel (%p561) target = $region84
      $region83: #{tpu_custom_call.1} parent=5 // pred_region
        %s565 = ssub.s32 %s29, 1
        // Predicated region
        $region85: #{tpu_custom_call.1} parent=83 // pred_check
          %p566 = pneg %p212
        $region86: #{tpu_custom_call.1} parent=83 // pred_check_branch
          %568 = sbr.rel (%p566) target = $region88
        $region87: #{tpu_custom_call.1} parent=83 // pred_region
          %570 = dma.done [#allocation3], 256
        $region88: #{tpu_custom_call.1} parent=83 // pred_fallthru
          _
        // Predicated region
        $region89: #{tpu_custom_call.1} parent=83 // pred_check
          %p571 = pneg %p254
        $region90: #{tpu_custom_call.1} parent=83 // pred_check_branch
          %573 = sbr.rel (%p571) target = $region92
        $region91: #{tpu_custom_call.1} parent=83 // pred_region
          %575 = dma.done [#allocation6], 256
        $region92: #{tpu_custom_call.1} parent=83 // pred_fallthru
          _
        // Predicated region
        $region93: #{tpu_custom_call.1} parent=83 // pred_check
          %p576 = pneg %p275
        $region94: #{tpu_custom_call.1} parent=83 // pred_check_branch
          %578 = sbr.rel (%p576) target = $region96
        $region95: #{tpu_custom_call.1} parent=83 // pred_region
          %580 = dma.done [#allocation6], 256
        $region96: #{tpu_custom_call.1} parent=83 // pred_fallthru
          _
        // Predicated region
        $region97: #{tpu_custom_call.1} parent=83 // pred_check
          %p581 = pneg %p296
        $region98: #{tpu_custom_call.1} parent=83 // pred_check_branch
          %583 = sbr.rel (%p581) target = $region100
        $region99: #{tpu_custom_call.1} parent=83 // pred_region
          %585 = dma.done [#allocation9], 256
        $region100: #{tpu_custom_call.1} parent=83 // pred_fallthru
          _
        // Predicated region
        $region101: #{tpu_custom_call.1} parent=83 // pred_check
          %p586 = pneg %p317
        $region102: #{tpu_custom_call.1} parent=83 // pred_check_branch
          %588 = sbr.rel (%p586) target = $region104
        $region103: #{tpu_custom_call.1} parent=83 // pred_region
          %590 = dma.done [#allocation9], 256
        $region104: #{tpu_custom_call.1} parent=83 // pred_fallthru
          _
        // Predicated region
        $region105: #{tpu_custom_call.1} parent=83 // pred_check
          %p591 = pneg %p338
        $region106: #{tpu_custom_call.1} parent=83 // pred_check_branch
          %593 = sbr.rel (%p591) target = $region108
        $region107: #{tpu_custom_call.1} parent=83 // pred_region
          %595 = dma.done [#allocation12], 16
        $region108: #{tpu_custom_call.1} parent=83 // pred_fallthru
          _
        // Predicated region
        $region109: #{tpu_custom_call.1} parent=83 // pred_check
          %p596 = pneg %p359
        $region110: #{tpu_custom_call.1} parent=83 // pred_check_branch
          %598 = sbr.rel (%p596) target = $region112
        $region111: #{tpu_custom_call.1} parent=83 // pred_region
          %600 = dma.done [#allocation12], 256
        $region112: #{tpu_custom_call.1} parent=83 // pred_fallthru
          _
        %p601 = scmp.lt.s32.totalorder %s34, 1
        %s602 = scalar_select %p601, %s34, 1
        %s603 = smul.addr %s602, 4
        %s604 = scalar_lea.vmem %s0, %s603
        %p605 = pneg %p55
        %p606 = pneg %p52
        %p607 = scmp.lt.s32.totalorder %s34, 1
        %s608 = scalar_select %p607, %s34, 1
        %s609 = smul.addr %s608, 4
        %s610 = scalar_lea.vmem %s1, %s609
        %p611 = pneg %p81
        %p612 = pneg %p78
        %p613 = scmp.lt.s32.totalorder %s34, 1
        %s614 = scalar_select %p613, %s34, 1
        %s615 = scalar_lea.vmem %s2, %s614
        %p616 = pneg %p107
        %p617 = pneg %p104
        %p618 = pneg %p128
        %p619 = pneg %p125
        %p620 = pneg %p149
        %p621 = pneg %p146
        %p622 = pneg %p170
        %p623 = pneg %p167
        %p624 = pneg %p191
        %p625 = pneg %p188
        %p626 = pneg %p212
        %p627 = pneg %p209
        %p628 = pneg %p233
        %p629 = pneg %p230
        %p630 = pneg %p254
        %p631 = pneg %p251
        %p632 = pneg %p275
        %p633 = pneg %p272
        %p634 = pneg %p296
        %p635 = pneg %p293
        %p636 = pneg %p317
        %p637 = pneg %p314
        %p638 = pneg %p338
        %p639 = pneg %p335
        %p640 = pneg %p359
        %p641 = pneg %p356
        %p642 = pneg %p380
        %p643 = pneg %p377
        %p644 = pneg %p406
        %p645 = pneg %p403
        %s646 = sand.u32 %s393, 1
        %s647 = scalar_lea.sflag [#allocation4], %s646
        %s648 = sand.u32 %s393, 1
        %s649 = smul.addr %s648, 4
        %s650 = scalar_lea.vmem [#allocation14], %s649
        %p651 = scmp.lt.s32.totalorder %s34, 1
        %s652 = scalar_select %p651, %s34, 1
        %s653 = smul.addr %s652, 4
        %s654 = scalar_lea.vmem %s0, %s653
        %p655 = scmp.lt.s32.totalorder %s34, 1
        %s656 = scalar_select %p655, %s34, 1
        %s657 = smul.addr %s656, 4
        %s658 = scalar_lea.vmem %s1, %s657
        %p659 = scmp.lt.s32.totalorder %s34, 1
        %s660 = scalar_select %p659, %s34, 1
        %s661 = scalar_lea.vmem %s2, %s660
        %v663 = vld [vmem:[%s654] sm:$0xf]
        %v664 = vld [vmem:[%s658] sm:$0x7]
        %v665 = vld [vmem:[%s661] sm:$0x1]
        %v666 = vmul.f32 %v663, %v663
        %vm667 = vcmask 257024
        %v668 = vsel %vm667, %v666, 0.0
        %669 = vadd.xlane.f32.xlu0 %v668
        %v670 = vpop.xlane.xlu0 %669
        %v671 = vrcp.pop 32.0
        %v672 = vmul.f32 32.0, %v671
        %v673 = vsub.f32 1.0, %v672
        %v674 = vmul.f32 %v671, %v673
        %v675 = vadd.f32 %v671, %v674
        %vm676 = vweird.f32 %v671
        %v677 = vsel %vm676, %v671, %v675
        %v678 = vmul.f32 %v670, %v677
        %v679 = vadd.f32 %v678, 1e-06
        %v680 = vrsqrt.pop %v679
        %v681 = vmul.f32 %v680, %v679
        %v682 = vmul.f32 %v681, %v680
        %v683 = vmul.f32 0.5, %v682
        %v684 = vsub.f32 1.5, %v683
        %v685 = vmul.f32 %v680, %v684
        %vm686 = vweird.f32 %v679
        %vm687 = vweird.f32 %v680
        %vm688 = vmor %vm686, %vm687
        %v689 = vsel %vm688, %v680, %v685
        %v690 = vmul.f32 %v663, %v689
        %v691 = vld [vmem:[%s3] sm:$0x1]
        %v693 = vperm.slane %v691, 0
        %v695 = vmul.f32 %v690, %v693
        %v696 = vpack.c.bf16 %v695, %v695
        %v697 = vld [vmem:[%s4] sm:$0xf]
        %v698 = vld [vmem:[%s4 + $0x4] sm:$0xf]
        %v699 = vld [vmem:[%s4 + $0x8] sm:$0xf]
        %v700 = vld [vmem:[%s4 + $0xc] sm:$0xf]
        %v705 = vunpack.c.l.b16 %v697
        %v706 = vunpack.c.l.b16 %v698
        %v707 = vunpack.c.l.b16 %v699
        %v708 = vunpack.c.l.b16 %v700
        %v709 = vpack.c.b16 %v706, %v705
        %v710 = vpack.c.b16 %v708, %v707
        %vm713 = vcmask 261120
        %v715 = vsel %vm713, %v696, 0
        %717 = vmatpush.bf16.msra.mxu0 0
        %718 = vmatpush.bf16.msra.mxu0 0
        %719 = vmatpush.bf16.msra.mxu0 0
        %720 = vmatpush.bf16.msra.mxu0 0
        %721 = vmatpush.bf16.msra.mxu0 0
        %722 = vmatpush.bf16.msra.mxu0 0
        %723 = vmatpush.bf16.msra.mxu0 %v710
        %724 = vmatpush.bf16.msra.mxu0 %v709
        %725 = vmatmul.bf16.gmra.mxu0 %v715
        %v726 = vpop.f32.mrf.mxu0
        %v727 = vadd.f32 0.0, %v726
        %v728 = vpop.f32.mrf.mxu0
        %729 = vdwg.mxu0
        %v730 = vld [vmem:[%s5] sm:$0xf]
        %v731 = vld [vmem:[%s5 + $0x4] sm:$0xf]
        %v732 = vld [vmem:[%s5 + $0x8] sm:$0xf]
        %v733 = vld [vmem:[%s5 + $0xc] sm:$0xf]
        %v738 = vunpack.c.l.b16 %v730
        %v739 = vunpack.c.l.b16 %v731
        %v740 = vunpack.c.l.b16 %v732
        %v741 = vunpack.c.l.b16 %v733
        %v742 = vpack.c.b16 %v739, %v738
        %v743 = vpack.c.b16 %v741, %v740
        %746 = vmatpush.bf16.msra.mxu0 0
        %747 = vmatpush.bf16.msra.mxu0 0
        %748 = vmatpush.bf16.msra.mxu0 0
        %749 = vmatpush.bf16.msra.mxu0 0
        %750 = vmatpush.bf16.msra.mxu0 0
        %751 = vmatpush.bf16.msra.mxu0 0
        %752 = vmatpush.bf16.msra.mxu0 %v743
        %753 = vmatpush.bf16.msra.mxu0 %v742
        %754 = vmatmul.bf16.gmra.mxu0 %v715
        %v755 = vpop.f32.mrf.mxu0
        %v756 = vadd.f32 0.0, %v755
        %v757 = vpop.f32.mrf.mxu0
        %758 = vdwg.mxu0
        %v759 = vld [vmem:[%s6] sm:$0xf]
        %v760 = vld [vmem:[%s6 + $0x4] sm:$0xf]
        %v761 = vld [vmem:[%s6 + $0x8] sm:$0xf]
        %v762 = vld [vmem:[%s6 + $0xc] sm:$0xf]
        %v767 = vunpack.c.l.b16 %v759
        %v768 = vunpack.c.l.b16 %v760
        %v769 = vunpack.c.l.b16 %v761
        %v770 = vunpack.c.l.b16 %v762
        %v771 = vpack.c.b16 %v768, %v767
        %v772 = vpack.c.b16 %v770, %v769
        %775 = vmatpush.bf16.msra.mxu0 0
        %776 = vmatpush.bf16.msra.mxu0 0
        %777 = vmatpush.bf16.msra.mxu0 0
        %778 = vmatpush.bf16.msra.mxu0 0
        %779 = vmatpush.bf16.msra.mxu0 0
        %780 = vmatpush.bf16.msra.mxu0 0
        %781 = vmatpush.bf16.msra.mxu0 %v772
        %782 = vmatpush.bf16.msra.mxu0 %v771
        %783 = vmatmul.bf16.gmra.mxu0 %v715
        %v784 = vpop.f32.mrf.mxu0
        %v785 = vadd.f32 0.0, %v784
        %v786 = vpop.f32.mrf.mxu0
        %787 = vdwg.mxu0
        %v788 = vpack.c.bf16 %v727, %v727
        %v789 = vpack.c.bf16 %v756, %v756
        %v790 = vpack.c.bf16 %v785, %v785
        %vm791 = vcmask 64512
        %v793 = vsel %vm791, %v788, 0
        %v796 = vsel %vm791, %v789, 0
        %798 = vmatpush.bf16.xpose.msra.mxu0 0
        %799 = vmatpush.bf16.xpose.msra.mxu0 0
        %800 = vmatpush.bf16.xpose.msra.mxu0 0
        %801 = vmatpush.bf16.xpose.msra.mxu0 0
        %802 = vmatpush.bf16.xpose.msra.mxu0 0
        %803 = vmatpush.bf16.xpose.msra.mxu0 0
        %804 = vmatpush.bf16.xpose.msra.mxu0 0
        %805 = vmatpush.bf16.xpose.msra.mxu0 %v796
        %806 = vmatmul.bf16.gmra.mxu0 %v793
        %v807 = vpop.f32.mrf.mxu0
        %v808 = vadd.f32 0.0, %v807
        %v809 = vpop.f32.mrf.mxu0
        %810 = vdwg.mxu0
        %vm811 = vcmask 27648
        %v812 = vsel %vm811, %v808, -inf
        %813 = vmax.xlane.f32.xlu0 %v812
        %v814 = vpop.xlane.xlu0 %813
        %v815 = vsub.f32 %v808, %v814
        %v816 = vmul.f32 %v815, 1.442695
        %v817 = vpow.pop %v816
        %v818 = vsel %vm811, %v817, 0.0
        %819 = vadd.xlane.f32.xlu0 %v818
        %v820 = vpop.xlane.xlu0 %819
        %v821 = vrcp.pop %v820
        %v822 = vmul.f32 %v817, %v821
        %v823 = vpack.c.bf16 %v822, %v822
        %vm824 = vcmask 31744
        %v826 = vsel %vm824, %v823, 0
        %vm828 = vcmask 1041408
        %v830 = vsel %vm828, %v790, 0
        %832 = vmatpush.bf16.msra.mxu0 0
        %833 = vmatpush.bf16.msra.mxu0 0
        %834 = vmatpush.bf16.msra.mxu0 0
        %835 = vmatpush.bf16.msra.mxu0 0
        %836 = vmatpush.bf16.msra.mxu0 0
        %837 = vmatpush.bf16.msra.mxu0 0
        %838 = vmatpush.bf16.msra.mxu0 0
        %839 = vmatpush.bf16.msra.mxu0 %v830
        %840 = vmatmul.bf16.gmra.mxu0 %v826
        %v841 = vpop.f32.mrf.mxu0
        %v842 = vadd.f32 0.0, %v841
        %v843 = vpop.f32.mrf.mxu0
        %844 = vdwg.mxu0
        %v846 = vunpack.c.l.b16 %v788
        %v847 = vpack.c.b16 %v846, %v846
        %848 = vrot.lane.b32.xlu0 %v847, 120
        %v849 = vpop.permute.xlu0 %848
        %v851 = vunpack.c.l.b16 %v789
        %v852 = vpack.c.b16 %v851, %v851
        %853 = vrot.lane.b32.xlu0 %v852, 120
        %v854 = vpop.permute.xlu0 %853
        %v856 = vsel %vm791, %v849, 0
        %v859 = vsel %vm791, %v854, 0
        %861 = vmatpush.bf16.xpose.msra.mxu0 0
        %862 = vmatpush.bf16.xpose.msra.mxu0 0
        %863 = vmatpush.bf16.xpose.msra.mxu0 0
        %864 = vmatpush.bf16.xpose.msra.mxu0 0
        %865 = vmatpush.bf16.xpose.msra.mxu0 0
        %866 = vmatpush.bf16.xpose.msra.mxu0 0
        %867 = vmatpush.bf16.xpose.msra.mxu0 0
        %868 = vmatpush.bf16.xpose.msra.mxu0 %v859
        %869 = vmatmul.bf16.gmra.mxu0 %v856
        %v870 = vpop.f32.mrf.mxu0
        %v871 = vadd.f32 0.0, %v870
        %v872 = vpop.f32.mrf.mxu0
        %873 = vdwg.mxu0
        %v874 = vsel %vm811, %v871, -inf
        %875 = vmax.xlane.f32.xlu0 %v874
        %v876 = vpop.xlane.xlu0 %875
        %v877 = vsub.f32 %v871, %v876
        %v878 = vmul.f32 %v877, 1.442695
        %v879 = vpow.pop %v878
        %v880 = vsel %vm811, %v879, 0.0
        %881 = vadd.xlane.f32.xlu0 %v880
        %v882 = vpop.xlane.xlu0 %881
        %v883 = vrcp.pop %v882
        %v884 = vmul.f32 %v879, %v883
        %v885 = vpack.c.bf16 %v884, %v884
        %v887 = vunpack.c.l.b16 %v790
        %v888 = vpack.c.b16 %v887, %v887
        %889 = vrot.lane.b32.xlu0 %v888, 120
        %v890 = vpop.permute.xlu0 %889
        %v892 = vsel %vm824, %v885, 0
        %v895 = vsel %vm828, %v890, 0
        %897 = vmatpush.bf16.msra.mxu0 0
        %898 = vmatpush.bf16.msra.mxu0 0
        %899 = vmatpush.bf16.msra.mxu0 0
        %900 = vmatpush.bf16.msra.mxu0 0
        %901 = vmatpush.bf16.msra.mxu0 0
        %902 = vmatpush.bf16.msra.mxu0 0
        %903 = vmatpush.bf16.msra.mxu0 0
        %904 = vmatpush.bf16.msra.mxu0 %v895
        %905 = vmatmul.bf16.gmra.mxu0 %v892
        %v906 = vpop.f32.mrf.mxu0
        %v907 = vadd.f32 0.0, %v906
        %v908 = vpop.f32.mrf.mxu0
        %909 = vdwg.mxu0
        %910 = vrot.lane.b32.xlu0 %v847, 112
        %v911 = vpop.permute.xlu0 %910
        %912 = vrot.lane.b32.xlu0 %v852, 112
        %v913 = vpop.permute.xlu0 %912
        %v915 = vsel %vm791, %v911, 0
        %v918 = vsel %vm791, %v913, 0
        %920 = vmatpush.bf16.xpose.msra.mxu0 0
        %921 = vmatpush.bf16.xpose.msra.mxu0 0
        %922 = vmatpush.bf16.xpose.msra.mxu0 0
        %923 = vmatpush.bf16.xpose.msra.mxu0 0
        %924 = vmatpush.bf16.xpose.msra.mxu0 0
        %925 = vmatpush.bf16.xpose.msra.mxu0 0
        %926 = vmatpush.bf16.xpose.msra.mxu0 0
        %927 = vmatpush.bf16.xpose.msra.mxu0 %v918
        %928 = vmatmul.bf16.gmra.mxu0 %v915
        %v929 = vpop.f32.mrf.mxu0
        %v930 = vadd.f32 0.0, %v929
        %v931 = vpop.f32.mrf.mxu0
        %932 = vdwg.mxu0
        %v933 = vsel %vm811, %v930, -inf
        %934 = vmax.xlane.f32.xlu0 %v933
        %v935 = vpop.xlane.xlu0 %934
        %v936 = vsub.f32 %v930, %v935
        %v937 = vmul.f32 %v936, 1.442695
        %v938 = vpow.pop %v937
        %v939 = vsel %vm811, %v938, 0.0
        %940 = vadd.xlane.f32.xlu0 %v939
        %v941 = vpop.xlane.xlu0 %940
        %v942 = vrcp.pop %v941
        %v943 = vmul.f32 %v938, %v942
        %v944 = vpack.c.bf16 %v943, %v943
        %945 = vrot.lane.b32.xlu0 %v888, 112
        %v946 = vpop.permute.xlu0 %945
        %v948 = vsel %vm824, %v944, 0
        %v951 = vsel %vm828, %v946, 0
        %953 = vmatpush.bf16.msra.mxu0 0
        %954 = vmatpush.bf16.msra.mxu0 0
        %955 = vmatpush.bf16.msra.mxu0 0
        %956 = vmatpush.bf16.msra.mxu0 0
        %957 = vmatpush.bf16.msra.mxu0 0
        %958 = vmatpush.bf16.msra.mxu0 0
        %959 = vmatpush.bf16.msra.mxu0 0
        %960 = vmatpush.bf16.msra.mxu0 %v951
        %961 = vmatmul.bf16.gmra.mxu0 %v948
        %v962 = vpop.f32.mrf.mxu0
        %v963 = vadd.f32 0.0, %v962
        %v964 = vpop.f32.mrf.mxu0
        %965 = vdwg.mxu0
        %966 = vrot.lane.b32.xlu0 %v847, 104
        %v967 = vpop.permute.xlu0 %966
        %968 = vrot.lane.b32.xlu0 %v852, 104
        %v969 = vpop.permute.xlu0 %968
        %v971 = vsel %vm791, %v967, 0
        %v974 = vsel %vm791, %v969, 0
        %976 = vmatpush.bf16.xpose.msra.mxu0 0
        %977 = vmatpush.bf16.xpose.msra.mxu0 0
        %978 = vmatpush.bf16.xpose.msra.mxu0 0
        %979 = vmatpush.bf16.xpose.msra.mxu0 0
        %980 = vmatpush.bf16.xpose.msra.mxu0 0
        %981 = vmatpush.bf16.xpose.msra.mxu0 0
        %982 = vmatpush.bf16.xpose.msra.mxu0 0
        %983 = vmatpush.bf16.xpose.msra.mxu0 %v974
        %984 = vmatmul.bf16.gmra.mxu0 %v971
        %v985 = vpop.f32.mrf.mxu0
        %v986 = vadd.f32 0.0, %v985
        %v987 = vpop.f32.mrf.mxu0
        %988 = vdwg.mxu0
        %v989 = vsel %vm811, %v986, -inf
        %990 = vmax.xlane.f32.xlu0 %v989
        %v991 = vpop.xlane.xlu0 %990
        %v992 = vsub.f32 %v986, %v991
        %v993 = vmul.f32 %v992, 1.442695
        %v994 = vpow.pop %v993
        %v995 = vsel %vm811, %v994, 0.0
        %996 = vadd.xlane.f32.xlu0 %v995
        %v997 = vpop.xlane.xlu0 %996
        %v998 = vrcp.pop %v997
        %v999 = vmul.f32 %v994, %v998
        %v1000 = vpack.c.bf16 %v999, %v999
        %1001 = vrot.lane.b32.xlu0 %v888, 104
        %v1002 = vpop.permute.xlu0 %1001
        %v1004 = vsel %vm824, %v1000, 0
        %v1007 = vsel %vm828, %v1002, 0
        %1009 = vmatpush.bf16.msra.mxu0 0
        %1010 = vmatpush.bf16.msra.mxu0 0
        %1011 = vmatpush.bf16.msra.mxu0 0
        %1012 = vmatpush.bf16.msra.mxu0 0
        %1013 = vmatpush.bf16.msra.mxu0 0
        %1014 = vmatpush.bf16.msra.mxu0 0
        %1015 = vmatpush.bf16.msra.mxu0 0
        %1016 = vmatpush.bf16.msra.mxu0 %v1007
        %1017 = vmatmul.bf16.gmra.mxu0 %v1004
        %v1018 = vpop.f32.mrf.mxu0
        %v1019 = vadd.f32 0.0, %v1018
        %v1020 = vpop.f32.mrf.mxu0
        %1021 = vdwg.mxu0
        %1023 = vrot.lane.b32.xlu0 %v907, 8
        %v1024 = vpop.permute.xlu0 %1023
        %1027 = vrot.lane.b32.xlu0 %v963, 16
        %v1028 = vpop.permute.xlu0 %1027
        %1031 = vrot.lane.b32.xlu0 %v1019, 24
        %v1032 = vpop.permute.xlu0 %1031
        %v1034 = vsel %vm791, %v842, %v1024
        %vm1035 = vcmask 130048
        %v1036 = vsel %vm1035, %v1034, %v1028
        %vm1037 = vcmask 195584
        %v1038 = vsel %vm1037, %v1036, %v1032
        %v1039 = vpack.c.bf16 %v1038, %v1038
        %v1040 = vld [vmem:[#allocation2] sm:$0xf]
        %v1041 = vld [vmem:[#allocation2 + $0x4] sm:$0xf]
        %v1042 = vld [vmem:[#allocation2 + $0x8] sm:$0xf]
        %v1043 = vld [vmem:[#allocation2 + $0xc] sm:$0xf]
        %v1048 = vunpack.c.l.b16 %v1040
        %v1049 = vunpack.c.l.b16 %v1041
        %v1050 = vunpack.c.l.b16 %v1042
        %v1051 = vunpack.c.l.b16 %v1043
        %v1052 = vpack.c.b16 %v1049, %v1048
        %v1053 = vpack.c.b16 %v1051, %v1050
        %v1057 = vsel %vm713, %v1039, 0
        %1059 = vmatpush.bf16.msra.mxu0 0
        %1060 = vmatpush.bf16.msra.mxu0 0
        %1061 = vmatpush.bf16.msra.mxu0 0
        %1062 = vmatpush.bf16.msra.mxu0 0
        %1063 = vmatpush.bf16.msra.mxu0 0
        %1064 = vmatpush.bf16.msra.mxu0 0
        %1065 = vmatpush.bf16.msra.mxu0 %v1053
        %1066 = vmatpush.bf16.msra.mxu0 %v1052
        %1067 = vmatmul.bf16.gmra.mxu0 %v1057
        %v1068 = vpop.f32.mrf.mxu0
        %v1069 = vadd.f32 0.0, %v1068
        %v1070 = vpop.f32.mrf.mxu0
        %1071 = vdwg.mxu0
        %v1072 = vadd.f32 %v663, %v1069
        %v1073 = vmul.f32 %v1072, %v1072
        %v1074 = vsel %vm667, %v1073, 0.0
        %1075 = vadd.xlane.f32.xlu0 %v1074
        %v1076 = vpop.xlane.xlu0 %1075
        %v1077 = vmul.f32 %v1076, %v677
        %v1078 = vadd.f32 %v1077, 1e-06
        %v1079 = vrsqrt.pop %v1078
        %v1080 = vmul.f32 %v1079, %v1078
        %v1081 = vmul.f32 %v1080, %v1079
        %v1082 = vmul.f32 0.5, %v1081
        %v1083 = vsub.f32 1.5, %v1082
        %v1084 = vmul.f32 %v1079, %v1083
        %vm1085 = vweird.f32 %v1078
        %vm1086 = vweird.f32 %v1079
        %vm1087 = vmor %vm1085, %vm1086
        %v1088 = vsel %vm1087, %v1079, %v1084
        %v1089 = vmul.f32 %v1072, %v1088
        %v1090 = vld [vmem:[%s8] sm:$0x1]
        %v1092 = vperm.slane %v1090, 0
        %v1094 = vmul.f32 %v1089, %v1092
        %v1095 = vpack.c.bf16 %v1094, %v1094
        %v1096 = vld [vmem:[#allocation5] sm:$0xf]
        %v1097 = vld [vmem:[#allocation5 + $0x4] sm:$0xf]
        %v1098 = vld [vmem:[#allocation5 + $0x8] sm:$0xf]
        %v1099 = vld [vmem:[#allocation5 + $0xc] sm:$0xf]
        %v1104 = vunpack.c.l.b16 %v1096
        %v1105 = vunpack.c.l.b16 %v1097
        %v1106 = vunpack.c.l.b16 %v1098
        %v1107 = vunpack.c.l.b16 %v1099
        %v1108 = vpack.c.b16 %v1105, %v1104
        %v1109 = vpack.c.b16 %v1107, %v1106
        %v1113 = vsel %vm713, %v1095, 0
        %1115 = vmatpush.bf16.msra.mxu0 0
        %1116 = vmatpush.bf16.msra.mxu0 0
        %1117 = vmatpush.bf16.msra.mxu0 0
        %1118 = vmatpush.bf16.msra.mxu0 0
        %1119 = vmatpush.bf16.msra.mxu0 0
        %1120 = vmatpush.bf16.msra.mxu0 0
        %1121 = vmatpush.bf16.msra.mxu0 %v1109
        %1122 = vmatpush.bf16.msra.mxu0 %v1108
        %1123 = vmatmul.bf16.gmra.mxu0 %v1113
        %v1124 = vpop.f32.mrf.mxu0
        %v1125 = vadd.f32 0.0, %v1124
        %v1126 = vpop.f32.mrf.mxu0
        %1127 = vdwg.mxu0
        %v1128 = vld [vmem:[#allocation7] sm:$0xf]
        %v1129 = vld [vmem:[#allocation7 + $0x4] sm:$0xf]
        %v1130 = vld [vmem:[#allocation7 + $0x8] sm:$0xf]
        %v1131 = vld [vmem:[#allocation7 + $0xc] sm:$0xf]
        %v1136 = vunpack.c.l.b16 %v1128
        %v1137 = vunpack.c.l.b16 %v1129
        %v1138 = vunpack.c.l.b16 %v1130
        %v1139 = vunpack.c.l.b16 %v1131
        %v1140 = vpack.c.b16 %v1137, %v1136
        %v1141 = vpack.c.b16 %v1139, %v1138
        %v1145 = vsel %vm713, %v664, 0
        %1147 = vmatpush.bf16.msra.mxu0 0
        %1148 = vmatpush.bf16.msra.mxu0 0
        %1149 = vmatpush.bf16.msra.mxu0 0
        %1150 = vmatpush.bf16.msra.mxu0 0
        %1151 = vmatpush.bf16.msra.mxu0 0
        %1152 = vmatpush.bf16.msra.mxu0 0
        %1153 = vmatpush.bf16.msra.mxu0 %v1141
        %1154 = vmatpush.bf16.msra.mxu0 %v1140
        %1155 = vmatmul.bf16.gmra.mxu0 %v1145
        %v1156 = vpop.f32.mrf.mxu0
        %v1157 = vadd.f32 0.0, %v1156
        %v1158 = vpop.f32.mrf.mxu0
        %1159 = vdwg.mxu0
        %v1160 = vld [vmem:[#allocation8] sm:$0xf]
        %v1161 = vld [vmem:[#allocation8 + $0x4] sm:$0xf]
        %v1162 = vld [vmem:[#allocation8 + $0x8] sm:$0xf]
        %v1163 = vld [vmem:[#allocation8 + $0xc] sm:$0xf]
        %v1168 = vunpack.c.l.b16 %v1160
        %v1169 = vunpack.c.l.b16 %v1161
        %v1170 = vunpack.c.l.b16 %v1162
        %v1171 = vunpack.c.l.b16 %v1163
        %v1172 = vpack.c.b16 %v1169, %v1168
        %v1173 = vpack.c.b16 %v1171, %v1170
        %1176 = vmatpush.bf16.msra.mxu0 0
        %1177 = vmatpush.bf16.msra.mxu0 0
        %1178 = vmatpush.bf16.msra.mxu0 0
        %1179 = vmatpush.bf16.msra.mxu0 0
        %1180 = vmatpush.bf16.msra.mxu0 0
        %1181 = vmatpush.bf16.msra.mxu0 0
        %1182 = vmatpush.bf16.msra.mxu0 %v1173
        %1183 = vmatpush.bf16.msra.mxu0 %v1172
        %1184 = vmatmul.bf16.gmra.mxu0 %v1145
        %v1185 = vpop.f32.mrf.mxu0
        %v1186 = vadd.f32 0.0, %v1185
        %v1187 = vpop.f32.mrf.mxu0
        %1188 = vdwg.mxu0
        %v1189 = vpack.c.bf16 %v1125, %v1125
        %v1190 = vpack.c.bf16 %v1157, %v1157
        %v1191 = vpack.c.bf16 %v1186, %v1186
        %v1193 = vperm.slane %v665, 0
        %v1196 = vsel %vm791, %v1189, 0
        %v1199 = vsel %vm791, %v1190, 0
        %1201 = vmatpush.bf16.xpose.msra.mxu0 0
        %1202 = vmatpush.bf16.xpose.msra.mxu0 0
        %1203 = vmatpush.bf16.xpose.msra.mxu0 0
        %1204 = vmatpush.bf16.xpose.msra.mxu0 0
        %1205 = vmatpush.bf16.xpose.msra.mxu0 0
        %1206 = vmatpush.bf16.xpose.msra.mxu0 0
        %1207 = vmatpush.bf16.xpose.msra.mxu0 0
        %1208 = vmatpush.bf16.xpose.msra.mxu0 %v1199
        %1209 = vmatmul.bf16.gmra.mxu0 %v1196
        %v1210 = vpop.f32.mrf.mxu0
        %v1211 = vadd.f32 %v1193, %v1210
        %v1212 = vpop.f32.mrf.mxu0
        %1213 = vdwg.mxu0
        %vm1214 = vcmask 44032
        %v1215 = vsel %vm1214, %v1211, -inf
        %1216 = vmax.xlane.f32.xlu0 %v1215
        %v1217 = vpop.xlane.xlu0 %1216
        %v1218 = vsub.f32 %v1211, %v1217
        %v1219 = vmul.f32 %v1218, 1.442695
        %v1220 = vpow.pop %v1219
        %v1221 = vsel %vm1214, %v1220, 0.0
        %1222 = vadd.xlane.f32.xlu0 %v1221
        %v1223 = vpop.xlane.xlu0 %1222
        %v1224 = vrcp.pop %v1223
        %v1225 = vmul.f32 %v1220, %v1224
        %v1226 = vpack.c.bf16 %v1225, %v1225
        %vm1227 = vcmask 48128
        %v1229 = vsel %vm1227, %v1226, 0
        %vm1231 = vcmask 1042432
        %v1233 = vsel %vm1231, %v1191, 0
        %1235 = vmatpush.bf16.msra.mxu0 0
        %1236 = vmatpush.bf16.msra.mxu0 0
        %1237 = vmatpush.bf16.msra.mxu0 0
        %1238 = vmatpush.bf16.msra.mxu0 0
        %1239 = vmatpush.bf16.msra.mxu0 0
        %1240 = vmatpush.bf16.msra.mxu0 0
        %1241 = vmatpush.bf16.msra.mxu0 0
        %1242 = vmatpush.bf16.msra.mxu0 %v1233
        %1243 = vmatmul.bf16.gmra.mxu0 %v1229
        %v1244 = vpop.f32.mrf.mxu0
        %v1245 = vadd.f32 0.0, %v1244
        %v1246 = vpop.f32.mrf.mxu0
        %1247 = vdwg.mxu0
        %v1249 = vunpack.c.l.b16 %v1189
        %v1250 = vpack.c.b16 %v1249, %v1249
        %1251 = vrot.lane.b32.xlu0 %v1250, 120
        %v1252 = vpop.permute.xlu0 %1251
        %v1254 = vunpack.c.l.b16 %v1190
        %v1255 = vpack.c.b16 %v1254, %v1254
        %1256 = vrot.lane.b32.xlu0 %v1255, 120
        %v1257 = vpop.permute.xlu0 %1256
        %v1259 = vsel %vm791, %v1252, 0
        %v1262 = vsel %vm791, %v1257, 0
        %1264 = vmatpush.bf16.xpose.msra.mxu0 0
        %1265 = vmatpush.bf16.xpose.msra.mxu0 0
        %1266 = vmatpush.bf16.xpose.msra.mxu0 0
        %1267 = vmatpush.bf16.xpose.msra.mxu0 0
        %1268 = vmatpush.bf16.xpose.msra.mxu0 0
        %1269 = vmatpush.bf16.xpose.msra.mxu0 0
        %1270 = vmatpush.bf16.xpose.msra.mxu0 0
        %1271 = vmatpush.bf16.xpose.msra.mxu0 %v1262
        %1272 = vmatmul.bf16.gmra.mxu0 %v1259
        %v1273 = vpop.f32.mrf.mxu0
        %v1274 = vadd.f32 %v1193, %v1273
        %v1275 = vpop.f32.mrf.mxu0
        %1276 = vdwg.mxu0
        %v1277 = vsel %vm1214, %v1274, -inf
        %1278 = vmax.xlane.f32.xlu0 %v1277
        %v1279 = vpop.xlane.xlu0 %1278
        %v1280 = vsub.f32 %v1274, %v1279
        %v1281 = vmul.f32 %v1280, 1.442695
        %v1282 = vpow.pop %v1281
        %v1283 = vsel %vm1214, %v1282, 0.0
        %1284 = vadd.xlane.f32.xlu0 %v1283
        %v1285 = vpop.xlane.xlu0 %1284
        %v1286 = vrcp.pop %v1285
        %v1287 = vmul.f32 %v1282, %v1286
        %v1288 = vpack.c.bf16 %v1287, %v1287
        %v1290 = vunpack.c.l.b16 %v1191
        %v1291 = vpack.c.b16 %v1290, %v1290
        %1292 = vrot.lane.b32.xlu0 %v1291, 120
        %v1293 = vpop.permute.xlu0 %1292
        %v1295 = vsel %vm1227, %v1288, 0
        %v1298 = vsel %vm1231, %v1293, 0
        %1300 = vmatpush.bf16.msra.mxu0 0
        %1301 = vmatpush.bf16.msra.mxu0 0
        %1302 = vmatpush.bf16.msra.mxu0 0
        %1303 = vmatpush.bf16.msra.mxu0 0
        %1304 = vmatpush.bf16.msra.mxu0 0
        %1305 = vmatpush.bf16.msra.mxu0 0
        %1306 = vmatpush.bf16.msra.mxu0 0
        %1307 = vmatpush.bf16.msra.mxu0 %v1298
        %1308 = vmatmul.bf16.gmra.mxu0 %v1295
        %v1309 = vpop.f32.mrf.mxu0
        %v1310 = vadd.f32 0.0, %v1309
        %v1311 = vpop.f32.mrf.mxu0
        %1312 = vdwg.mxu0
        %1313 = vrot.lane.b32.xlu0 %v1250, 112
        %v1314 = vpop.permute.xlu0 %1313
        %1315 = vrot.lane.b32.xlu0 %v1255, 112
        %v1316 = vpop.permute.xlu0 %1315
        %v1318 = vsel %vm791, %v1314, 0
        %v1321 = vsel %vm791, %v1316, 0
        %1323 = vmatpush.bf16.xpose.msra.mxu0 0
        %1324 = vmatpush.bf16.xpose.msra.mxu0 0
        %1325 = vmatpush.bf16.xpose.msra.mxu0 0
        %1326 = vmatpush.bf16.xpose.msra.mxu0 0
        %1327 = vmatpush.bf16.xpose.msra.mxu0 0
        %1328 = vmatpush.bf16.xpose.msra.mxu0 0
        %1329 = vmatpush.bf16.xpose.msra.mxu0 0
        %1330 = vmatpush.bf16.xpose.msra.mxu0 %v1321
        %1331 = vmatmul.bf16.gmra.mxu0 %v1318
        %v1332 = vpop.f32.mrf.mxu0
        %v1333 = vadd.f32 %v1193, %v1332
        %v1334 = vpop.f32.mrf.mxu0
        %1335 = vdwg.mxu0
        %v1336 = vsel %vm1214, %v1333, -inf
        %1337 = vmax.xlane.f32.xlu0 %v1336
        %v1338 = vpop.xlane.xlu0 %1337
        %v1339 = vsub.f32 %v1333, %v1338
        %v1340 = vmul.f32 %v1339, 1.442695
        %v1341 = vpow.pop %v1340
        %v1342 = vsel %vm1214, %v1341, 0.0
        %1343 = vadd.xlane.f32.xlu0 %v1342
        %v1344 = vpop.xlane.xlu0 %1343
        %v1345 = vrcp.pop %v1344
        %v1346 = vmul.f32 %v1341, %v1345
        %v1347 = vpack.c.bf16 %v1346, %v1346
        %1348 = vrot.lane.b32.xlu0 %v1291, 112
        %v1349 = vpop.permute.xlu0 %1348
        %v1351 = vsel %vm1227, %v1347, 0
        %v1354 = vsel %vm1231, %v1349, 0
        %1356 = vmatpush.bf16.msra.mxu0 0
        %1357 = vmatpush.bf16.msra.mxu0 0
        %1358 = vmatpush.bf16.msra.mxu0 0
        %1359 = vmatpush.bf16.msra.mxu0 0
        %1360 = vmatpush.bf16.msra.mxu0 0
        %1361 = vmatpush.bf16.msra.mxu0 0
        %1362 = vmatpush.bf16.msra.mxu0 0
        %1363 = vmatpush.bf16.msra.mxu0 %v1354
        %1364 = vmatmul.bf16.gmra.mxu0 %v1351
        %v1365 = vpop.f32.mrf.mxu0
        %v1366 = vadd.f32 0.0, %v1365
        %v1367 = vpop.f32.mrf.mxu0
        %1368 = vdwg.mxu0
        %1369 = vrot.lane.b32.xlu0 %v1250, 104
        %v1370 = vpop.permute.xlu0 %1369
        %1371 = vrot.lane.b32.xlu0 %v1255, 104
        %v1372 = vpop.permute.xlu0 %1371
        %v1374 = vsel %vm791, %v1370, 0
        %v1377 = vsel %vm791, %v1372, 0
        %1379 = vmatpush.bf16.xpose.msra.mxu0 0
        %1380 = vmatpush.bf16.xpose.msra.mxu0 0
        %1381 = vmatpush.bf16.xpose.msra.mxu0 0
        %1382 = vmatpush.bf16.xpose.msra.mxu0 0
        %1383 = vmatpush.bf16.xpose.msra.mxu0 0
        %1384 = vmatpush.bf16.xpose.msra.mxu0 0
        %1385 = vmatpush.bf16.xpose.msra.mxu0 0
        %1386 = vmatpush.bf16.xpose.msra.mxu0 %v1377
        %1387 = vmatmul.bf16.gmra.mxu0 %v1374
        %v1388 = vpop.f32.mrf.mxu0
        %v1389 = vadd.f32 %v1193, %v1388
        %v1390 = vpop.f32.mrf.mxu0
        %1391 = vdwg.mxu0
        %v1392 = vsel %vm1214, %v1389, -inf
        %1393 = vmax.xlane.f32.xlu0 %v1392
        %v1394 = vpop.xlane.xlu0 %1393
        %v1395 = vsub.f32 %v1389, %v1394
        %v1396 = vmul.f32 %v1395, 1.442695
        %v1397 = vpow.pop %v1396
        %v1398 = vsel %vm1214, %v1397, 0.0
        %1399 = vadd.xlane.f32.xlu0 %v1398
        %v1400 = vpop.xlane.xlu0 %1399
        %v1401 = vrcp.pop %v1400
        %v1402 = vmul.f32 %v1397, %v1401
        %v1403 = vpack.c.bf16 %v1402, %v1402
        %1404 = vrot.lane.b32.xlu0 %v1291, 104
        %v1405 = vpop.permute.xlu0 %1404
        %v1407 = vsel %vm1227, %v1403, 0
        %v1410 = vsel %vm1231, %v1405, 0
        %1412 = vmatpush.bf16.msra.mxu0 0
        %1413 = vmatpush.bf16.msra.mxu0 0
        %1414 = vmatpush.bf16.msra.mxu0 0
        %1415 = vmatpush.bf16.msra.mxu0 0
        %1416 = vmatpush.bf16.msra.mxu0 0
        %1417 = vmatpush.bf16.msra.mxu0 0
        %1418 = vmatpush.bf16.msra.mxu0 0
        %1419 = vmatpush.bf16.msra.mxu0 %v1410
        %1420 = vmatmul.bf16.gmra.mxu0 %v1407
        %v1421 = vpop.f32.mrf.mxu0
        %v1422 = vadd.f32 0.0, %v1421
        %v1423 = vpop.f32.mrf.mxu0
        %1424 = vdwg.mxu0
        %1426 = vrot.lane.b32.xlu0 %v1310, 8
        %v1427 = vpop.permute.xlu0 %1426
        %1430 = vrot.lane.b32.xlu0 %v1366, 16
        %v1431 = vpop.permute.xlu0 %1430
        %1434 = vrot.lane.b32.xlu0 %v1422, 24
        %v1435 = vpop.permute.xlu0 %1434
        %v1437 = vsel %vm791, %v1245, %v1427
        %v1438 = vsel %vm1035, %v1437, %v1431
        %v1439 = vsel %vm1037, %v1438, %v1435
        %v1440 = vpack.c.bf16 %v1439, %v1439
        %v1441 = vld [vmem:[#allocation10] sm:$0xf]
        %v1442 = vld [vmem:[#allocation10 + $0x4] sm:$0xf]
        %v1443 = vld [vmem:[#allocation10 + $0x8] sm:$0xf]
        %v1444 = vld [vmem:[#allocation10 + $0xc] sm:$0xf]
        %v1449 = vunpack.c.l.b16 %v1441
        %v1450 = vunpack.c.l.b16 %v1442
        %v1451 = vunpack.c.l.b16 %v1443
        %v1452 = vunpack.c.l.b16 %v1444
        %v1453 = vpack.c.b16 %v1450, %v1449
        %v1454 = vpack.c.b16 %v1452, %v1451
        %v1458 = vsel %vm713, %v1440, 0
        %1460 = vmatpush.bf16.msra.mxu0 0
        %1461 = vmatpush.bf16.msra.mxu0 0
        %1462 = vmatpush.bf16.msra.mxu0 0
        %1463 = vmatpush.bf16.msra.mxu0 0
        %1464 = vmatpush.bf16.msra.mxu0 0
        %1465 = vmatpush.bf16.msra.mxu0 0
        %1466 = vmatpush.bf16.msra.mxu0 %v1454
        %1467 = vmatpush.bf16.msra.mxu0 %v1453
        %1468 = vmatmul.bf16.gmra.mxu0 %v1458
        %v1469 = vpop.f32.mrf.mxu0
        %v1470 = vadd.f32 0.0, %v1469
        %v1471 = vpop.f32.mrf.mxu0
        %1472 = vdwg.mxu0
        %v1473 = vadd.f32 %v1072, %v1470
        %v1474 = vmul.f32 %v1473, %v1473
        %v1475 = vsel %vm667, %v1474, 0.0
        %1476 = vadd.xlane.f32.xlu0 %v1475
        %v1477 = vpop.xlane.xlu0 %1476
        %v1478 = vmul.f32 %v1477, %v677
        %v1479 = vadd.f32 %v1478, 1e-06
        %v1480 = vrsqrt.pop %v1479
        %v1481 = vmul.f32 %v1480, %v1479
        %v1482 = vmul.f32 %v1481, %v1480
        %v1483 = vmul.f32 0.5, %v1482
        %v1484 = vsub.f32 1.5, %v1483
        %v1485 = vmul.f32 %v1480, %v1484
        %vm1486 = vweird.f32 %v1479
        %vm1487 = vweird.f32 %v1480
        %vm1488 = vmor %vm1486, %vm1487
        %v1489 = vsel %vm1488, %v1480, %v1485
        %v1490 = vmul.f32 %v1473, %v1489
        %v1491 = vld [vmem:[#allocation11] sm:$0x1]
        %v1493 = vperm.slane %v1491, 0
        %v1495 = vmul.f32 %v1490, %v1493
        %v1496 = vpack.c.bf16 %v1495, %v1495
        %v1497 = vld [vmem:[#allocation13] sm:$0xf]
        %v1498 = vld [vmem:[#allocation13 + $0x4] sm:$0xf]
        %v1499 = vld [vmem:[#allocation13 + $0x8] sm:$0xf]
        %v1500 = vld [vmem:[#allocation13 + $0xc] sm:$0xf]
        %v1505 = vunpack.c.l.b16 %v1497
        %v1506 = vunpack.c.l.b16 %v1498
        %v1507 = vunpack.c.l.b16 %v1499
        %v1508 = vunpack.c.l.b16 %v1500
        %v1509 = vpack.c.b16 %v1506, %v1505
        %v1510 = vpack.c.b16 %v1508, %v1507
        %v1514 = vsel %vm713, %v1496, 0
        %1516 = vmatpush.bf16.msra.mxu0 0
        %1517 = vmatpush.bf16.msra.mxu0 0
        %1518 = vmatpush.bf16.msra.mxu0 0
        %1519 = vmatpush.bf16.msra.mxu0 0
        %1520 = vmatpush.bf16.msra.mxu0 0
        %1521 = vmatpush.bf16.msra.mxu0 0
        %1522 = vmatpush.bf16.msra.mxu0 %v1510
        %1523 = vmatpush.bf16.msra.mxu0 %v1509
        %1524 = vmatmul.bf16.gmra.mxu0 %v1514
        %v1525 = vpop.f32.mrf.mxu0
        %v1526 = vadd.f32 0.0, %v1525
        %v1527 = vpop.f32.mrf.mxu0
        %1528 = vdwg.mxu0
        %v1529 = vmul.f32 %v1526, 0.5
        %v1530 = vmul.f32 %v1526, 0.044715
        %v1531 = vmul.f32 %v1530, %v1526
        %v1532 = vmul.f32 %v1531, %v1526
        %v1533 = vadd.f32 %v1526, %v1532
        %v1534 = vmul.f32 %v1533, 0.7978846
        %v1535 = vtanh.pop %v1534
        %v1536 = vadd.f32 %v1535, 1.0
        %v1537 = vmul.f32 %v1529, %v1536
        %1539 = vrot.lane.b32.xlu0 %v1526, 64
        %v1540 = vpop.permute.xlu0 %1539
        %v1542 = vmul.f32 %v1537, %v1540
        %v1543 = vpack.c.bf16 %v1542, %v1542
        %v1544 = vld [vmem:[%s15] sm:$0xf]
        %v1545 = vld [vmem:[%s15 + $0x4] sm:$0xf]
        %v1546 = vld [vmem:[%s15 + $0x8] sm:$0xf]
        %v1547 = vld [vmem:[%s15 + $0xc] sm:$0xf]
        %v1548 = vld [vmem:[%s15 + $0x10] sm:$0xf]
        %v1549 = vld [vmem:[%s15 + $0x14] sm:$0xf]
        %v1550 = vld [vmem:[%s15 + $0x18] sm:$0xf]
        %v1551 = vld [vmem:[%s15 + $0x1c] sm:$0xf]
        %v1560 = vunpack.c.l.b16 %v1544
        %v1561 = vunpack.c.l.b16 %v1545
        %v1562 = vunpack.c.l.b16 %v1546
        %v1563 = vunpack.c.l.b16 %v1547
        %v1564 = vunpack.c.l.b16 %v1548
        %v1565 = vunpack.c.l.b16 %v1549
        %v1566 = vunpack.c.l.b16 %v1550
        %v1567 = vunpack.c.l.b16 %v1551
        %v1568 = vpack.c.b16 %v1561, %v1560
        %v1569 = vpack.c.b16 %v1563, %v1562
        %v1570 = vpack.c.b16 %v1565, %v1564
        %v1571 = vpack.c.b16 %v1567, %v1566
        %vm1576 = vcmask 523264
        %v1578 = vsel %vm1576, %v1543, 0
        %1580 = vmatpush.bf16.msra.mxu0 0
        %1581 = vmatpush.bf16.msra.mxu0 0
        %1582 = vmatpush.bf16.msra.mxu0 0
        %1583 = vmatpush.bf16.msra.mxu0 0
        %1584 = vmatpush.bf16.msra.mxu0 %v1571
        %1585 = vmatpush.bf16.msra.mxu0 %v1570
        %1586 = vmatpush.bf16.msra.mxu0 %v1569
        %1587 = vmatpush.bf16.msra.mxu0 %v1568
        %1588 = vmatmul.bf16.gmra.mxu0 %v1578
        %v1589 = vpop.f32.mrf.mxu0
        %v1590 = vadd.f32 0.0, %v1589
        %v1591 = vpop.f32.mrf.mxu0
        %1592 = vdwg.mxu0
        %v1593 = vadd.f32 %v1473, %v1590
        %1594 = vst.msk [vmem:[%s650] sm:$0xf] %vm667, %v1593
        %s1595 = sand.u32 %s393, 1
        %s1596 = scalar_lea.sflag [#allocation4], %s1595
        %s1597 = sand.u32 %s393, 1
        %s1598 = smul.addr %s1597, 4
        %s1599 = scalar_lea.vmem [#allocation14], %s1598
        // Predicated region
        $region113: #{tpu_custom_call.1} parent=83 // pred_check
          %p1600 = pneg %p403
        $region114: #{tpu_custom_call.1} parent=83 // pred_check_branch
          %1602 = sbr.rel (%p1600) target = $region116
        $region115: #{tpu_custom_call.1} parent=83 // pred_region
          %1604 = vsyncadd %s1596, 0
          %s1605 = smul.addr %s34, 4
          %s1606 = scalar_lea.hbm %s16, %s1605
          %s1608 = sshll.u32 %s1599, 4
          %s1609 = int_to_ptr.vmem [resolvable:$true] %s1608
          %s1610 = sshll.u32 %s1606, 4
          %s1611 = int_to_ptr.hbm [resolvable:$true] %s1610
          %1613 = dma.vmem_to_hbm [thread:$0]  %s1609, 64, %s1611, %s1596
        $region116: #{tpu_custom_call.1} parent=83 // pred_fallthru
          _
      $region84: #{tpu_custom_call.1} parent=5 // pred_fallthru
        _
      %p1614 = scmp.le.s32.totalorder 2, %s29
      // Predicated region
      $region117: #{tpu_custom_call.1} parent=5 // pred_check
        %p1615 = pneg %p1614
      $region118: #{tpu_custom_call.1} parent=5 // pred_check_branch
        %1617 = sbr.rel (%p1615) target = $region120
      $region119: #{tpu_custom_call.1} parent=5 // pred_region
        %s1618 = ssub.s32 %s29, 2
        // Predicated region
        $region121: #{tpu_custom_call.1} parent=119 // pred_check
          %p1619 = pneg %p409
        $region122: #{tpu_custom_call.1} parent=119 // pred_check_branch
          %1621 = sbr.rel (%p1619) target = $region124
        $region123: #{tpu_custom_call.1} parent=119 // pred_region
          %s1622 = sand.u32 %s394, 1
          %s1623 = scalar_lea.sflag [#allocation4], %s1622
          %s1624 = sand.u32 %s394, 1
          %s1625 = smul.addr %s1624, 4
          %s1626 = scalar_lea.vmem [#allocation14], %s1625
          %1628 = dma.done %s1623, 64
        $region124: #{tpu_custom_call.1} parent=119 // pred_fallthru
          _
      $region120: #{tpu_custom_call.1} parent=5 // pred_fallthru
        _
    $region6: #{tpu_custom_call.1} parent=1 // loop_footer
      %s33 = sadd.s32 1, %s29
    $region7: #{tpu_custom_call.1} parent=1 // loop_footer_branch
      %28 = sbr.rel target = $region3
    $region8: #{tpu_custom_call.1} parent=1 // loop_exit
      _
    %1629 = vsyncpa [#allocation3], 1
    %s1630 = scalar_lea.sflag [#allocation3], 1
    %1631 = vsyncpa %s1630, 1
    %1632 = vsyncpa [#allocation6], 1
    %1633 = vsyncpa [#allocation9], 1
    %1634 = vsyncpa [#allocation12], 1
    %1635 = vsyncpa [#allocation4], 1
    %s1636 = scalar_lea.sflag [#allocation4], 1
    %1637 = vsyncpa %s1636, 1

</llo_original>
